<compile_context>
chip_gen: v7x
topology: tpu7x:2x2x1
jax: 0.10.0
libtpu: 0.0.40
codegen_flags: <defaults>
</compile_context>

<pallas_src>
import functools

import jax
import jax.numpy as jnp
from jax.experimental import pallas as pl
from jax.experimental.pallas import tpu as pltpu


def _round_up(x, m):
    return (x + m - 1) // m * m


def _conv_stats_kernel(xp_ref, w_ref, y_ref, stat_ref, *, stride):
    """Conv2d(3x3, stride, pad already applied) + fused BN statistics.

    xp_ref:   (1, Hp, Wp, Cin_p)   zero-padded input image, NHWC, bf16
    w_ref:    (3, 3, Cin_p, Cout_p) conv weights, HWIO, bf16
    y_ref:    (1, Ho, Wo, Cout_p)  conv output (pre-BN), f32
    stat_ref: (1, 2, Cout_p)       per-image [sum, sum-of-squares], f32
    """
    _, Hp, Wp, Cin = xp_ref.shape
    _, Ho, Wo, Cout = y_ref.shape

    xp = xp_ref[0]                                        # (Hp, Wp, Cin)
    acc = jnp.zeros((Ho * Wo, Cout), jnp.float32)
    for kh in range(3):
        for kw in range(3):
            patch = xp[kh:kh + stride * (Ho - 1) + 1:stride,
                       kw:kw + stride * (Wo - 1) + 1:stride, :]   # (Ho, Wo, Cin)
            acc = acc + jnp.dot(patch.reshape(Ho * Wo, Cin),
                                w_ref[kh, kw],
                                preferred_element_type=jnp.float32)

    # Conv output (no bias: it cancels against the BN batch-mean subtraction).
    y_ref[0] = acc.reshape(Ho, Wo, Cout)

    # Fused per-channel statistics for BatchNorm (training mode).
    s = jnp.sum(acc, axis=0, keepdims=True)               # (1, Cout)
    ss = jnp.sum(acc * acc, axis=0, keepdims=True)        # (1, Cout)
    stat_ref[0] = jnp.concatenate([s, ss], axis=0)        # (2, Cout)


def _bn_lrelu_kernel(y_ref, scale_ref, shift_ref, o_ref, *, neg_slope):
    """Elementwise  out = LeakyReLU(y * scale + shift)."""
    scale = scale_ref[...].reshape(1, 1, 1, -1)
    shift = shift_ref[...].reshape(1, 1, 1, -1)
    a = y_ref[...] * scale + shift
    o_ref[...] = jnp.where(a >= 0, a, neg_slope * a)


def convolutional_block_forward(x_nchw, w_oihw, bias, gamma, beta, *,
                                stride=1, eps=1e-5, neg_slope=0.2,
                                compute_dtype=jnp.bfloat16):
    """Forward pass matching the torch ConvolutionalBlock (NCHW in / NCHW out)."""
    del bias  # Per-channel conv bias cancels exactly under training-mode BN.

    N, Cin, H, W = x_nchw.shape
    Cout = w_oihw.shape[0]
    Ho = (H - 1) // stride + 1
    Wo = (W - 1) // stride + 1
    Hp, Wp = H + 2, W + 2

    LANE = 128
    Cin_p = _round_up(Cin, LANE)
    Cout_p = _round_up(Cout, LANE)

    # --- layout glue (plain JAX): NCHW->NHWC, spatial pad, channel pad, bf16 ---
    x_nhwc = jnp.transpose(x_nchw, (0, 2, 3, 1)).astype(compute_dtype)
    x_pad = jnp.pad(x_nhwc, ((0, 0), (1, 1), (1, 1), (0, Cin_p - Cin)))
    w_hwio = jnp.transpose(w_oihw, (2, 3, 1, 0)).astype(compute_dtype)
    w_hwio = jnp.pad(w_hwio, ((0, 0), (0, 0),
                              (0, Cin_p - Cin), (0, Cout_p - Cout)))

    # --- pass 1: conv + fused BN statistics, gridded over the batch ---
    flops = 2 * N * Ho * Wo * 9 * Cin_p * Cout_p
    bytes_accessed = (N * Hp * Wp * Cin_p * 2            # input (bf16)
                      + 9 * Cin_p * Cout_p * 2           # weights (bf16)
                      + N * Ho * Wo * Cout_p * 4         # conv output (f32)
                      + N * 2 * Cout_p * 4)              # stats (f32)

    y, stats = pl.pallas_call(
        functools.partial(_conv_stats_kernel, stride=stride),
        grid=(N,),
        in_specs=[
            pl.BlockSpec((1, Hp, Wp, Cin_p), lambda n: (n, 0, 0, 0)),
            pl.BlockSpec((3, 3, Cin_p, Cout_p), lambda n: (0, 0, 0, 0)),
        ],
        out_specs=[
            pl.BlockSpec((1, Ho, Wo, Cout_p), lambda n: (n, 0, 0, 0)),
            pl.BlockSpec((1, 2, Cout_p), lambda n: (n, 0, 0)),
        ],
        out_shape=[
            jax.ShapeDtypeStruct((N, Ho, Wo, Cout_p), jnp.float32),
            jax.ShapeDtypeStruct((N, 2, Cout_p), jnp.float32),
        ],
        compiler_params=pltpu.CompilerParams(
            dimension_semantics=("parallel",),
            vmem_limit_bytes=64 * 1024 * 1024),
        cost_estimate=pl.CostEstimate(flops=flops, transcendentals=0,
                                      bytes_accessed=bytes_accessed),
    )(x_pad, w_hwio)

    # --- tiny plain-JAX segment: fold stats into per-channel scale/shift ---
    count = float(N * Ho * Wo)
    total = jnp.sum(stats, axis=0)                        # (2, Cout_p)
    mean = total[0] / count
    var = jnp.maximum(total[1] / count - mean * mean, 0.0)   # biased variance
    inv_std = jax.lax.rsqrt(var + eps)
    gamma_p = jnp.pad(gamma.astype(jnp.float32), (0, Cout_p - Cout))
    beta_p = jnp.pad(beta.astype(jnp.float32), (0, Cout_p - Cout))
    scale = (gamma_p * inv_std).reshape(1, Cout_p)
    shift = (beta_p - mean * gamma_p * inv_std).reshape(1, Cout_p)

    # --- pass 2: normalize + LeakyReLU, gridded over the batch ---
    out_p = pl.pallas_call(
        functools.partial(_bn_lrelu_kernel, neg_slope=neg_slope),
        grid=(N,),
        in_specs=[
            pl.BlockSpec((1, Ho, Wo, Cout_p), lambda n: (n, 0, 0, 0)),
            pl.BlockSpec((1, Cout_p), lambda n: (0, 0)),
            pl.BlockSpec((1, Cout_p), lambda n: (0, 0)),
        ],
        out_specs=pl.BlockSpec((1, Ho, Wo, Cout_p), lambda n: (n, 0, 0, 0)),
        out_shape=jax.ShapeDtypeStruct((N, Ho, Wo, Cout_p), jnp.float32),
        compiler_params=pltpu.CompilerParams(
            dimension_semantics=("parallel",),
            vmem_limit_bytes=64 * 1024 * 1024),
    )(y, scale, shift)

    # Slice padded channels off and go back to NCHW.
    return jnp.transpose(out_p[..., :Cout], (0, 3, 1, 2))


def _reference(x_nchw, w_oihw, bias, gamma, beta, *, stride, eps, neg_slope,
               compute_dtype=jnp.bfloat16):
    """Pure-JAX reference (same math, incl. the conv bias) for correctness."""
    x_nhwc = jnp.transpose(x_nchw, (0, 2, 3, 1)).astype(compute_dtype)
    w_hwio = jnp.transpose(w_oihw, (2, 3, 1, 0)).astype(compute_dtype)
    y = jax.lax.conv_general_dilated(
        x_nhwc, w_hwio, window_strides=(stride, stride),
        padding=((1, 1), (1, 1)),
        dimension_numbers=('NHWC', 'HWIO', 'NHWC'),
        preferred_element_type=jnp.float32) + bias
    mean = jnp.mean(y, axis=(0, 1, 2), keepdims=True)
    var = jnp.mean(jnp.square(y - mean), axis=(0, 1, 2), keepdims=True)
    yn = (y - mean) * jax.lax.rsqrt(var + eps) * gamma + beta
    out = jnp.where(yn >= 0, yn, neg_slope * yn)
    return jnp.transpose(out, (0, 3, 1, 2))


if __name__ == "__main__":
    key = jax.random.PRNGKey(0)
    k_x, k_w, k_b, k_g, k_beta = jax.random.split(key, 5)

    N, Cin, H, W = 2, 4, 16, 16
    Cout, stride = 8, 1

    x = jax.random.normal(k_x, (N, Cin, H, W), dtype=jnp.float32)
    w = jax.random.normal(k_w, (Cout, Cin, 3, 3), dtype=jnp.float32) * 0.1
    b = jax.random.normal(k_b, (Cout,), dtype=jnp.float32) * 0.1
    gamma = 1.0 + 0.1 * jax.random.normal(k_g, (Cout,), dtype=jnp.float32)
    beta = 0.1 * jax.random.normal(k_beta, (Cout,), dtype=jnp.float32)

    out = convolutional_block_forward(x, w, b, gamma, beta, stride=stride)
    out = jax.block_until_ready(out)

    ref = _reference(x, w, b, gamma, beta, stride=stride, eps=1e-5,
                     neg_slope=0.2)
    assert out.shape == (N, Cout, (H - 1) // stride + 1, (W - 1) // stride + 1)
    assert jnp.allclose(out, ref, atol=5e-3, rtol=5e-3), "mismatch vs reference"

    print("KERNEL_OK")
</pallas_src>

<mosaic_0001>
module attributes {stable_mosaic.version = 11 : i64} {
  func.func @_conv_stats_kernel(%arg0: i32, %arg1: memref<1x18x18x128xbf16, #tpu.memory_space<vmem>>, %arg2: memref<3x3x128x128xbf16, #tpu.memory_space<vmem>>, %arg3: memref<1x16x16x128xf32, #tpu.memory_space<vmem>>, %arg4: memref<1x2x128xf32, #tpu.memory_space<vmem>>) attributes {dimension_semantics = [#tpu.dimension_semantics<parallel>], iteration_bounds = array<i64: 2>, scalar_prefetch = 0 : i64, scratch_operands = 0 : i64, tpu.core_type = #tpu.core_type<tc>, window_params = [{transform_indices = @transform_0, window_bounds = array<i64: 1, 18, 18, 128>}, {pipeline_mode = #tpu.pipeline_mode<synchronous>, transform_indices = @transform_1, window_bounds = array<i64: 3, 3, 128, 128>}, {transform_indices = @transform_2, window_bounds = array<i64: 1, 16, 16, 128>}, {transform_indices = @transform_3, window_bounds = array<i64: 1, 2, 128>}]} {
    %c0 = arith.constant 0 : index
    %c0_0 = arith.constant 0 : index
    %c0_1 = arith.constant 0 : index
    %c0_2 = arith.constant 0 : index
    %0 = vector.load %arg1[%c0, %c0_0, %c0_1, %c0_2] : memref<1x18x18x128xbf16, #tpu.memory_space<vmem>>, vector<1x18x18x128xbf16>
    %1 = vector.shape_cast %0 : vector<1x18x18x128xbf16> to vector<18x18x128xbf16>
    %cst = arith.constant 0.000000e+00 : f32
    %2 = vector.broadcast %cst : f32 to vector<256x128xf32>
    %3 = vector.extract_strided_slice %1 {offsets = [0, 0, 0], sizes = [16, 16, 128], strides = [1, 1, 1]} : vector<18x18x128xbf16> to vector<16x16x128xbf16>
    %4 = vector.shape_cast %3 : vector<16x16x128xbf16> to vector<256x128xbf16>
    %c0_3 = arith.constant 0 : index
    %c0_4 = arith.constant 0 : index
    %c0_5 = arith.constant 0 : index
    %c0_6 = arith.constant 0 : index
    %5 = vector.load %arg2[%c0_3, %c0_4, %c0_5, %c0_6] : memref<3x3x128x128xbf16, #tpu.memory_space<vmem>>, vector<1x1x128x128xbf16>
    %6 = vector.shape_cast %5 : vector<1x1x128x128xbf16> to vector<128x128xbf16>
    %cst_7 = arith.constant dense<0.000000e+00> : vector<256x128xf32>
    %7 = tpu.matmul %4, %6, %cst_7 {dimension_numbers = #tpu.dot_dimension_numbers<[1], [0], [0], [1], [0, 0, 1, 1], [], []>} : vector<256x128xbf16>, vector<128x128xbf16>, vector<256x128xf32> -> vector<256x128xf32>
    %8 = arith.addf %2, %7 : vector<256x128xf32>
    %9 = vector.extract_strided_slice %1 {offsets = [0, 1, 0], sizes = [16, 16, 128], strides = [1, 1, 1]} : vector<18x18x128xbf16> to vector<16x16x128xbf16>
    %10 = vector.shape_cast %9 : vector<16x16x128xbf16> to vector<256x128xbf16>
    %c0_8 = arith.constant 0 : index
    %c1 = arith.constant 1 : index
    %c0_9 = arith.constant 0 : index
    %c0_10 = arith.constant 0 : index
    %11 = vector.load %arg2[%c0_8, %c1, %c0_9, %c0_10] : memref<3x3x128x128xbf16, #tpu.memory_space<vmem>>, vector<1x1x128x128xbf16>
    %12 = vector.shape_cast %11 : vector<1x1x128x128xbf16> to vector<128x128xbf16>
    %cst_11 = arith.constant dense<0.000000e+00> : vector<256x128xf32>
    %13 = tpu.matmul %10, %12, %cst_11 {dimension_numbers = #tpu.dot_dimension_numbers<[1], [0], [0], [1], [0, 0, 1, 1], [], []>} : vector<256x128xbf16>, vector<128x128xbf16>, vector<256x128xf32> -> vector<256x128xf32>
    %14 = arith.addf %8, %13 : vector<256x128xf32>
    %15 = vector.extract_strided_slice %1 {offsets = [0, 2, 0], sizes = [16, 16, 128], strides = [1, 1, 1]} : vector<18x18x128xbf16> to vector<16x16x128xbf16>
    %16 = vector.shape_cast %15 : vector<16x16x128xbf16> to vector<256x128xbf16>
    %c0_12 = arith.constant 0 : index
    %c2 = arith.constant 2 : index
    %c0_13 = arith.constant 0 : index
    %c0_14 = arith.constant 0 : index
    %17 = vector.load %arg2[%c0_12, %c2, %c0_13, %c0_14] : memref<3x3x128x128xbf16, #tpu.memory_space<vmem>>, vector<1x1x128x128xbf16>
    %18 = vector.shape_cast %17 : vector<1x1x128x128xbf16> to vector<128x128xbf16>
    %cst_15 = arith.constant dense<0.000000e+00> : vector<256x128xf32>
    %19 = tpu.matmul %16, %18, %cst_15 {dimension_numbers = #tpu.dot_dimension_numbers<[1], [0], [0], [1], [0, 0, 1, 1], [], []>} : vector<256x128xbf16>, vector<128x128xbf16>, vector<256x128xf32> -> vector<256x128xf32>
    %20 = arith.addf %14, %19 : vector<256x128xf32>
    %21 = vector.extract_strided_slice %1 {offsets = [1, 0, 0], sizes = [16, 16, 128], strides = [1, 1, 1]} : vector<18x18x128xbf16> to vector<16x16x128xbf16>
    %22 = vector.shape_cast %21 : vector<16x16x128xbf16> to vector<256x128xbf16>
    %c1_16 = arith.constant 1 : index
    %c0_17 = arith.constant 0 : index
    %c0_18 = arith.constant 0 : index
    %c0_19 = arith.constant 0 : index
    %23 = vector.load %arg2[%c1_16, %c0_17, %c0_18, %c0_19] : memref<3x3x128x128xbf16, #tpu.memory_space<vmem>>, vector<1x1x128x128xbf16>
    %24 = vector.shape_cast %23 : vector<1x1x128x128xbf16> to vector<128x128xbf16>
    %cst_20 = arith.constant dense<0.000000e+00> : vector<256x128xf32>
    %25 = tpu.matmul %22, %24, %cst_20 {dimension_numbers = #tpu.dot_dimension_numbers<[1], [0], [0], [1], [0, 0, 1, 1], [], []>} : vector<256x128xbf16>, vector<128x128xbf16>, vector<256x128xf32> -> vector<256x128xf32>
    %26 = arith.addf %20, %25 : vector<256x128xf32>
    %27 = vector.extract_strided_slice %1 {offsets = [1, 1, 0], sizes = [16, 16, 128], strides = [1, 1, 1]} : vector<18x18x128xbf16> to vector<16x16x128xbf16>
    %28 = vector.shape_cast %27 : vector<16x16x128xbf16> to vector<256x128xbf16>
    %c1_21 = arith.constant 1 : index
    %c1_22 = arith.constant 1 : index
    %c0_23 = arith.constant 0 : index
    %c0_24 = arith.constant 0 : index
    %29 = vector.load %arg2[%c1_21, %c1_22, %c0_23, %c0_24] : memref<3x3x128x128xbf16, #tpu.memory_space<vmem>>, vector<1x1x128x128xbf16>
    %30 = vector.shape_cast %29 : vector<1x1x128x128xbf16> to vector<128x128xbf16>
    %cst_25 = arith.constant dense<0.000000e+00> : vector<256x128xf32>
    %31 = tpu.matmul %28, %30, %cst_25 {dimension_numbers = #tpu.dot_dimension_numbers<[1], [0], [0], [1], [0, 0, 1, 1], [], []>} : vector<256x128xbf16>, vector<128x128xbf16>, vector<256x128xf32> -> vector<256x128xf32>
    %32 = arith.addf %26, %31 : vector<256x128xf32>
    %33 = vector.extract_strided_slice %1 {offsets = [1, 2, 0], sizes = [16, 16, 128], strides = [1, 1, 1]} : vector<18x18x128xbf16> to vector<16x16x128xbf16>
    %34 = vector.shape_cast %33 : vector<16x16x128xbf16> to vector<256x128xbf16>
    %c1_26 = arith.constant 1 : index
    %c2_27 = arith.constant 2 : index
    %c0_28 = arith.constant 0 : index
    %c0_29 = arith.constant 0 : index
    %35 = vector.load %arg2[%c1_26, %c2_27, %c0_28, %c0_29] : memref<3x3x128x128xbf16, #tpu.memory_space<vmem>>, vector<1x1x128x128xbf16>
    %36 = vector.shape_cast %35 : vector<1x1x128x128xbf16> to vector<128x128xbf16>
    %cst_30 = arith.constant dense<0.000000e+00> : vector<256x128xf32>
    %37 = tpu.matmul %34, %36, %cst_30 {dimension_numbers = #tpu.dot_dimension_numbers<[1], [0], [0], [1], [0, 0, 1, 1], [], []>} : vector<256x128xbf16>, vector<128x128xbf16>, vector<256x128xf32> -> vector<256x128xf32>
    %38 = arith.addf %32, %37 : vector<256x128xf32>
    %39 = vector.extract_strided_slice %1 {offsets = [2, 0, 0], sizes = [16, 16, 128], strides = [1, 1, 1]} : vector<18x18x128xbf16> to vector<16x16x128xbf16>
    %40 = vector.shape_cast %39 : vector<16x16x128xbf16> to vector<256x128xbf16>
    %c2_31 = arith.constant 2 : index
    %c0_32 = arith.constant 0 : index
    %c0_33 = arith.constant 0 : index
    %c0_34 = arith.constant 0 : index
    %41 = vector.load %arg2[%c2_31, %c0_32, %c0_33, %c0_34] : memref<3x3x128x128xbf16, #tpu.memory_space<vmem>>, vector<1x1x128x128xbf16>
    %42 = vector.shape_cast %41 : vector<1x1x128x128xbf16> to vector<128x128xbf16>
    %cst_35 = arith.constant dense<0.000000e+00> : vector<256x128xf32>
    %43 = tpu.matmul %40, %42, %cst_35 {dimension_numbers = #tpu.dot_dimension_numbers<[1], [0], [0], [1], [0, 0, 1, 1], [], []>} : vector<256x128xbf16>, vector<128x128xbf16>, vector<256x128xf32> -> vector<256x128xf32>
    %44 = arith.addf %38, %43 : vector<256x128xf32>
    %45 = vector.extract_strided_slice %1 {offsets = [2, 1, 0], sizes = [16, 16, 128], strides = [1, 1, 1]} : vector<18x18x128xbf16> to vector<16x16x128xbf16>
    %46 = vector.shape_cast %45 : vector<16x16x128xbf16> to vector<256x128xbf16>
    %c2_36 = arith.constant 2 : index
    %c1_37 = arith.constant 1 : index
    %c0_38 = arith.constant 0 : index
    %c0_39 = arith.constant 0 : index
    %47 = vector.load %arg2[%c2_36, %c1_37, %c0_38, %c0_39] : memref<3x3x128x128xbf16, #tpu.memory_space<vmem>>, vector<1x1x128x128xbf16>
    %48 = vector.shape_cast %47 : vector<1x1x128x128xbf16> to vector<128x128xbf16>
    %cst_40 = arith.constant dense<0.000000e+00> : vector<256x128xf32>
    %49 = tpu.matmul %46, %48, %cst_40 {dimension_numbers = #tpu.dot_dimension_numbers<[1], [0], [0], [1], [0, 0, 1, 1], [], []>} : vector<256x128xbf16>, vector<128x128xbf16>, vector<256x128xf32> -> vector<256x128xf32>
    %50 = arith.addf %44, %49 : vector<256x128xf32>
    %51 = vector.extract_strided_slice %1 {offsets = [2, 2, 0], sizes = [16, 16, 128], strides = [1, 1, 1]} : vector<18x18x128xbf16> to vector<16x16x128xbf16>
    %52 = vector.shape_cast %51 : vector<16x16x128xbf16> to vector<256x128xbf16>
    %c2_41 = arith.constant 2 : index
    %c2_42 = arith.constant 2 : index
    %c0_43 = arith.constant 0 : index
    %c0_44 = arith.constant 0 : index
    %53 = vector.load %arg2[%c2_41, %c2_42, %c0_43, %c0_44] : memref<3x3x128x128xbf16, #tpu.memory_space<vmem>>, vector<1x1x128x128xbf16>
    %54 = vector.shape_cast %53 : vector<1x1x128x128xbf16> to vector<128x128xbf16>
    %cst_45 = arith.constant dense<0.000000e+00> : vector<256x128xf32>
    %55 = tpu.matmul %52, %54, %cst_45 {dimension_numbers = #tpu.dot_dimension_numbers<[1], [0], [0], [1], [0, 0, 1, 1], [], []>} : vector<256x128xbf16>, vector<128x128xbf16>, vector<256x128xf32> -> vector<256x128xf32>
    %56 = arith.addf %50, %55 : vector<256x128xf32>
    %57 = vector.shape_cast %56 : vector<256x128xf32> to vector<16x16x128xf32>
    %c0_46 = arith.constant 0 : index
    %c0_47 = arith.constant 0 : index
    %c0_48 = arith.constant 0 : index
    %c0_49 = arith.constant 0 : index
    %58 = vector.load %arg3[%c0_46, %c0_47, %c0_48, %c0_49] : memref<1x16x16x128xf32, #tpu.memory_space<vmem>>, vector<1x16x16x128xf32>
    %59 = vector.shape_cast %58 : vector<1x16x16x128xf32> to vector<16x16x128xf32>
    %60 = vector.shape_cast %57 : vector<16x16x128xf32> to vector<1x16x16x128xf32>
    tpu.vector_store %arg3[%c0_46, %c0_47, %c0_48, %c0_49], %60 {strides = array<i32>} : memref<1x16x16x128xf32, #tpu.memory_space<vmem>>, vector<1x16x16x128xf32>,
    %cst_50 = arith.constant dense<0.000000e+00> : vector<128xf32>
    %61 = vector.multi_reduction <add>, %56, %cst_50 [0] : vector<256x128xf32> to vector<128xf32>
    %62 = vector.shape_cast %61 : vector<128xf32> to vector<1x128xf32>
    %63 = arith.mulf %56, %56 : vector<256x128xf32>
    %cst_51 = arith.constant dense<0.000000e+00> : vector<128xf32>
    %64 = vector.multi_reduction <add>, %63, %cst_51 [0] : vector<256x128xf32> to vector<128xf32>
    %65 = vector.shape_cast %64 : vector<128xf32> to vector<1x128xf32>
    %66 = tpu.concatenate %62, %65 in 0 : vector<1x128xf32>, vector<1x128xf32> -> vector<2x128xf32>
    %c0_52 = arith.constant 0 : index
    %c0_53 = arith.constant 0 : index
    %c0_54 = arith.constant 0 : index
    %67 = vector.load %arg4[%c0_52, %c0_53, %c0_54] : memref<1x2x128xf32, #tpu.memory_space<vmem>>, vector<1x2x128xf32>
    %68 = vector.shape_cast %67 : vector<1x2x128xf32> to vector<2x128xf32>
    %69 = vector.shape_cast %66 : vector<2x128xf32> to vector<1x2x128xf32>
    tpu.vector_store %arg4[%c0_52, %c0_53, %c0_54], %69 {strides = array<i32>} : memref<1x2x128xf32, #tpu.memory_space<vmem>>, vector<1x2x128xf32>,
    return
  }
  func.func @transform_0(%arg0: i32) -> (i32, i32, i32, i32) {
    %c0_i32 = arith.constant 0 : i32
    %c0_i32_0 = arith.constant 0 : i32
    %c0_i32_1 = arith.constant 0 : i32
    %c0_i32_2 = arith.constant 0 : i32
    return %arg0, %c0_i32, %c0_i32_0, %c0_i32_1 : i32, i32, i32, i32
  }
  func.func @transform_1(%arg0: i32) -> (i32, i32, i32, i32) {
    %c0_i32 = arith.constant 0 : i32
    %c0_i32_0 = arith.constant 0 : i32
    %c0_i32_1 = arith.constant 0 : i32
    %c0_i32_2 = arith.constant 0 : i32
    %c0_i32_3 = arith.constant 0 : i32
    return %c0_i32, %c0_i32_0, %c0_i32_1, %c0_i32_2 : i32, i32, i32, i32
  }
  func.func @transform_2(%arg0: i32) -> (i32, i32, i32, i32) {
    %c0_i32 = arith.constant 0 : i32
    %c0_i32_0 = arith.constant 0 : i32
    %c0_i32_1 = arith.constant 0 : i32
    %c0_i32_2 = arith.constant 0 : i32
    return %arg0, %c0_i32, %c0_i32_0, %c0_i32_1 : i32, i32, i32, i32
  }
  func.func @transform_3(%arg0: i32) -> (i32, i32, i32) {
    %c0_i32 = arith.constant 0 : i32
    %c0_i32_0 = arith.constant 0 : i32
    %c0_i32_1 = arith.constant 0 : i32
    return %arg0, %c0_i32, %c0_i32_0 : i32, i32, i32
  }
}

</mosaic_0001>

<llo_original>
// kernel: tpu_custom_call.1
$region0: #{tpu_custom_call.1}
  #allocation0 [shape = 'u32[]', space=smem, size = 0x4, offset = 0x4, fixed_abs, tag = 'smem constant byte address 0x4 - core index']
  #allocation1 [shape = 'u32[144,128]{1,0:T(1,128)}', space=vmem, size = 0x12000, scoped, tag = 'internal scratch']
  %s0 = inlined_call_operand.hbm [shape: bf16[2,18,18,128], index: 0, kind: input, shape index: {}]
  %s1 = inlined_call_operand.hbm [shape: bf16[3,3,128,128], index: 1, kind: input, shape index: {}]
  %s2 = inlined_call_operand.hbm [shape: f32[2,16,16,128], index: 2, kind: output, shape index: {0}]
  %s3 = inlined_call_operand.hbm [shape: f32[2,2,128], index: 3, kind: output, shape index: {1}]
  %4 = xla_tuple %s2, %s3
  %s5 = sld [smem:[#allocation0]]
  $region57: #{tpu_custom_call.1} parent=0
    _
  %s7 = ssub.s32 1, %s5
  %s8 = scalar_select 0, %s7, %s5
  $region1: #{tpu_custom_call.1} parent=0
    #allocation2 [shape = 'u8[221184]{0}', space=vmem, size = 0x36000, scoped, tag = 'input window, operand 0']
    #allocation3 [shape = 's32[2]{0}', space=sflag, size = 0x8, scoped, tag = 'scoped memory for tpu_custom_call.1']
    #allocation4 [shape = 's32[2]{0}', space=sflag, size = 0x8, scoped, tag = 'scoped memory for tpu_custom_call.1']
    #allocation5 [shape = 'u8[294912]{0}', space=vmem, size = 0x48000, scoped, tag = 'input window, operand 1, single buffered']
    #allocation6 [shape = 's32[1]{0}', space=sflag, size = 0x4, scoped, tag = 'scoped memory for tpu_custom_call.1']
    #allocation7 [shape = 'u8[262144]{0}', space=vmem, size = 0x40000, scoped, tag = 'output window, operand 0']
    #allocation8 [shape = 'u8[2048]{0}', space=vmem, size = 0x800, scoped, tag = 'output window, operand 1']
    #allocation9 [shape = 's32[2]{0}', space=sflag, size = 0x8, scoped, tag = 'scoped memory for tpu_custom_call.1']
    %9 = vsyncpa [#allocation3], 0
    %s10 = scalar_lea.sflag [#allocation3], 1
    %11 = vsyncpa %s10, 0
    %12 = vsyncpa [#allocation6], 0
    %13 = vsyncpa [#allocation4], 0
    %s14 = scalar_lea.sflag [#allocation4], 1
    %15 = vsyncpa %s14, 0
    %16 = vsyncpa [#allocation9], 0
    %s17 = scalar_lea.sflag [#allocation9], 1
    %18 = vsyncpa %s17, 0
    loop: start=0, step=1, limit=4
    $region2: #{tpu_custom_call.1} parent=1 // loop_pre_header
      _
    $region3: #{tpu_custom_call.1} parent=1 // loop_header
      %s20 = sphi 0, %s24
      %p21 = scmp.ge.s32.totalorder %s20, 4
      %s30 = sphi 0, %s32
      %s33 = sphi 0, %s30
      %s34 = sphi 0, %s33
      %s50 = sphi 0, %s34
      %s54 = sphi 0, %s54
      %s56 = sphi 0, %s54
      %s57 = sphi 0, %s56
      %s71 = sphi 0, %s57
      %s77 = sphi 0, %s79
      %s80 = sphi 0, %s77
      %s81 = sphi 0, %s80
      %s97 = sphi 0, %s81
      %s103 = sphi 0, %s105
      %s106 = sphi 0, %s103
      %s107 = sphi 0, %s106
      %s123 = sphi 0, %s107
    $region4: #{tpu_custom_call.1} parent=1 // loop_header_branch
      %23 = sbr.rel (%p21) target = $region8
    $region5: #{tpu_custom_call.1} parent=1 // loop_body
      %s25 = ssub.s32 %s20, 1
      %s26 = ssub.s32 %s20, 2
      %s27 = sadd.s32 %s20, 1
      %s28 = ssub.s32 %s20, %s27
      %p29 = scmp.eq.s32.totalorder %s28, 0
      %s31 = sadd.s32 %s30, 1
      %s32 = scalar_select %p29, %s30, %s31
      %p35 = pneg %p29
      %p36 = scmp.eq.s32.totalorder %s20, 1
      %p37 = por %p35, %p36
      %p38 = scmp.ne.s32.totalorder %s30, %s33
      %p39 = scmp.eq.s32.totalorder %s20, 0
      %p40 = por %p38, %p39
      %p41 = scmp.ne.s32.totalorder %s30, %s33
      %p42 = scmp.eq.s32.totalorder %s25, 1
      %p43 = por %p41, %p42
      %p44 = scmp.ne.s32.totalorder %s33, %s34
      %p45 = scmp.eq.s32.totalorder %s25, 0
      %p46 = por %p44, %p45
      %p47 = scmp.ne.s32.totalorder %s33, %s34
      %p48 = scmp.eq.s32.totalorder %s26, 1
      %p49 = por %p47, %p48
      %p51 = scmp.ne.s32.totalorder %s34, %s50
      %p52 = scmp.eq.s32.totalorder %s26, 0
      %p53 = por %p51, %p52
      %s55 = sadd.s32 %s54, 1
      %p58 = scmp.eq.s32.totalorder %s20, 1
      %p59 = scmp.ne.s32.totalorder %s54, %s56
      %p60 = scmp.eq.s32.totalorder %s20, 0
      %p61 = por %p59, %p60
      %p62 = scmp.ne.s32.totalorder %s54, %s56
      %p63 = scmp.eq.s32.totalorder %s25, 1
      %p64 = por %p62, %p63
      %p65 = scmp.ne.s32.totalorder %s56, %s57
      %p66 = scmp.eq.s32.totalorder %s25, 0
      %p67 = por %p65, %p66
      %p68 = scmp.ne.s32.totalorder %s56, %s57
      %p69 = scmp.eq.s32.totalorder %s26, 1
      %p70 = por %p68, %p69
      %p72 = scmp.ne.s32.totalorder %s57, %s71
      %p73 = scmp.eq.s32.totalorder %s26, 0
      %p74 = por %p72, %p73
      %s75 = ssub.s32 %s20, %s27
      %p76 = scmp.eq.s32.totalorder %s75, 0
      %s78 = sadd.s32 %s77, 1
      %s79 = scalar_select %p76, %s77, %s78
      %p82 = pneg %p76
      %p83 = scmp.eq.s32.totalorder %s20, 1
      %p84 = por %p82, %p83
      %p85 = scmp.ne.s32.totalorder %s77, %s80
      %p86 = scmp.eq.s32.totalorder %s20, 0
      %p87 = por %p85, %p86
      %p88 = scmp.ne.s32.totalorder %s77, %s80
      %p89 = scmp.eq.s32.totalorder %s25, 1
      %p90 = por %p88, %p89
      %p91 = scmp.ne.s32.totalorder %s80, %s81
      %p92 = scmp.eq.s32.totalorder %s25, 0
      %p93 = por %p91, %p92
      %p94 = scmp.ne.s32.totalorder %s80, %s81
      %p95 = scmp.eq.s32.totalorder %s26, 1
      %p96 = por %p94, %p95
      %p98 = scmp.ne.s32.totalorder %s81, %s97
      %p99 = scmp.eq.s32.totalorder %s26, 0
      %p100 = por %p98, %p99
      %s101 = ssub.s32 %s20, %s27
      %p102 = scmp.eq.s32.totalorder %s101, 0
      %s104 = sadd.s32 %s103, 1
      %s105 = scalar_select %p102, %s103, %s104
      %p108 = pneg %p102
      %p109 = scmp.eq.s32.totalorder %s20, 1
      %p110 = por %p108, %p109
      %p111 = scmp.ne.s32.totalorder %s103, %s106
      %p112 = scmp.eq.s32.totalorder %s20, 0
      %p113 = por %p111, %p112
      %p114 = scmp.ne.s32.totalorder %s103, %s106
      %p115 = scmp.eq.s32.totalorder %s25, 1
      %p116 = por %p114, %p115
      %p117 = scmp.ne.s32.totalorder %s106, %s107
      %p118 = scmp.eq.s32.totalorder %s25, 0
      %p119 = por %p117, %p118
      %p120 = scmp.ne.s32.totalorder %s106, %s107
      %p121 = scmp.eq.s32.totalorder %s26, 1
      %p122 = por %p120, %p121
      %p124 = scmp.ne.s32.totalorder %s107, %s123
      %p125 = scmp.eq.s32.totalorder %s26, 0
      %p126 = por %p124, %p125
      %p127 = scmp.le.s32.totalorder 1, %s20
      %p128 = scmp.lt.s32.totalorder %s20, 3
      %p129 = pnand %p127, %p128
      %p130 = pneg %p129
      // Predicated region
      $region9: #{tpu_custom_call.1} parent=5 // pred_check
        _
      $region10: #{tpu_custom_call.1} parent=5 // pred_check_branch
        %132 = sbr.rel (%p129) target = $region12
      $region11: #{tpu_custom_call.1} parent=5 // pred_region
        %s133 = ssub.s32 %s20, 1
        // Predicated region
        $region13: #{tpu_custom_call.1} parent=11 // pred_check
          %p134 = pneg %p67
        $region14: #{tpu_custom_call.1} parent=11 // pred_check_branch
          %136 = sbr.rel (%p134) target = $region16
        $region15: #{tpu_custom_call.1} parent=11 // pred_region
          %s138 = ssub.s32 9216, 9216
          %139 = vsyncadd [#allocation6], %s138
          %s140 = sshll.u32 [#allocation5], 4
          %s141 = int_to_ptr.vmem [resolvable:$true] %s140
          %146 = dma.hbm_to_vmem [thread:$0]  %s1, 9216, %s141, [#allocation6], 64, 64, 4
        $region16: #{tpu_custom_call.1} parent=11 // pred_fallthru
          _
      $region12: #{tpu_custom_call.1} parent=5 // pred_fallthru
        _
      %p147 = scmp.lt.s32.totalorder %s20, 2
      // Predicated region
      $region17: #{tpu_custom_call.1} parent=5 // pred_check
        %p148 = pneg %p147
      $region18: #{tpu_custom_call.1} parent=5 // pred_check_branch
        %150 = sbr.rel (%p148) target = $region20
      $region19: #{tpu_custom_call.1} parent=5 // pred_region
        // Predicated region
        $region21: #{tpu_custom_call.1} parent=19 // pred_check
          %p151 = pneg %p40
        $region22: #{tpu_custom_call.1} parent=19 // pred_check_branch
          %153 = sbr.rel (%p151) target = $region24
        $region23: #{tpu_custom_call.1} parent=19 // pred_region
          %s154 = sand.u32 %s30, 1
          %s155 = scalar_lea.sflag [#allocation3], %s154
          %s156 = sand.u32 %s30, 1
          %s157 = smul.addr %s156, 216
          %s158 = scalar_lea.vmem [#allocation2], %s157
          %s160 = ssub.s32 3456, 3456
          %161 = vsyncadd %s155, %s160
          %s162 = smul.addr %s20, 54
          %s163 = smul.addr %s162, 64
          %s164 = scalar_lea.hbm %s0, %s163
          %s165 = sshll.u32 %s158, 4
          %s166 = int_to_ptr.vmem [resolvable:$true] %s165
          %171 = dma.hbm_to_vmem [thread:$0]  %s164, 3456, %s166, %s155, 64, 64, 4
        $region24: #{tpu_custom_call.1} parent=19 // pred_fallthru
          _
      $region20: #{tpu_custom_call.1} parent=5 // pred_fallthru
        _
      %p172 = scmp.le.s32.totalorder 1, %s20
      %p173 = scmp.lt.s32.totalorder %s20, 3
      %p174 = pnand %p172, %p173
      %p175 = pneg %p174
      // Predicated region
      $region25: #{tpu_custom_call.1} parent=5 // pred_check
        _
      $region26: #{tpu_custom_call.1} parent=5 // pred_check_branch
        %177 = sbr.rel (%p174) target = $region28
      $region27: #{tpu_custom_call.1} parent=5 // pred_region
        %s178 = ssub.s32 %s20, 1
        %s179 = sand.u32 %s33, 1
        %s180 = scalar_lea.sflag [#allocation3], %s179
        %s181 = sand.u32 %s33, 1
        %s182 = smul.addr %s181, 216
        %s183 = scalar_lea.vmem [#allocation2], %s182
        // Predicated region
        $region29: #{tpu_custom_call.1} parent=27 // pred_check
          %p184 = pneg %p46
        $region30: #{tpu_custom_call.1} parent=27 // pred_check_branch
          %186 = sbr.rel (%p184) target = $region32
        $region31: #{tpu_custom_call.1} parent=27 // pred_region
          %187 = dma.done %s180, 3456
        $region32: #{tpu_custom_call.1} parent=27 // pred_fallthru
          _
        // Predicated region
        $region33: #{tpu_custom_call.1} parent=27 // pred_check
          %p188 = pneg %p67
        $region34: #{tpu_custom_call.1} parent=27 // pred_check_branch
          %190 = sbr.rel (%p188) target = $region36
        $region35: #{tpu_custom_call.1} parent=27 // pred_region
          %191 = dma.done [#allocation6], 9216
        $region36: #{tpu_custom_call.1} parent=27 // pred_fallthru
          _
        %s192 = sand.u32 %s33, 1
        %s193 = scalar_lea.sflag [#allocation3], %s192
        %s194 = sand.u32 %s33, 1
        %s195 = smul.addr %s194, 216
        %s196 = scalar_lea.vmem [#allocation2], %s195
        %p197 = pneg %p46
        %p198 = pneg %p43
        %p199 = pneg %p67
        %p200 = pneg %p64
        %p201 = pneg %p93
        %p202 = pneg %p90
        %s203 = sand.u32 %s80, 1
        %s204 = scalar_lea.sflag [#allocation4], %s203
        %s205 = sand.u32 %s80, 1
        %s206 = smul.addr %s205, 256
        %s207 = scalar_lea.vmem [#allocation7], %s206
        %p208 = pneg %p119
        %p209 = pneg %p116
        %s210 = sand.u32 %s106, 1
        %s211 = scalar_lea.sflag [#allocation9], %s210
        %s212 = sand.u32 %s106, 1
        %s213 = smul.addr %s212, 2
        %s214 = scalar_lea.vmem [#allocation8], %s213
        %v216 = vld [vmem:[%s183] sm:$0xf]
        %v217 = vld [vmem:[%s183 + $0x4] sm:$0xf]
        %v218 = vld [vmem:[%s183 + $0x8] sm:$0x1]
        %v219 = vld [vmem:[%s183 + $0xc] sm:$0xf]
        %v220 = vld [vmem:[%s183 + $0x10] sm:$0xf]
        %v221 = vld [vmem:[%s183 + $0x14] sm:$0x1]
        %v222 = vld [vmem:[%s183 + $0x18] sm:$0xf]
        %v223 = vld [vmem:[%s183 + $0x1c] sm:$0xf]
        %v224 = vld [vmem:[%s183 + $0x20] sm:$0x1]
        %v225 = vld [vmem:[%s183 + $0x24] sm:$0xf]
        %v226 = vld [vmem:[%s183 + $0x28] sm:$0xf]
        %v227 = vld [vmem:[%s183 + $0x2c] sm:$0x1]
        %v228 = vld [vmem:[%s183 + $0x30] sm:$0xf]
        %v229 = vld [vmem:[%s183 + $0x34] sm:$0xf]
        %v230 = vld [vmem:[%s183 + $0x38] sm:$0x1]
        %v231 = vld [vmem:[%s183 + $0x3c] sm:$0xf]
        %v232 = vld [vmem:[%s183 + $0x40] sm:$0xf]
        %v233 = vld [vmem:[%s183 + $0x44] sm:$0x1]
        %v234 = vld [vmem:[%s183 + $0x48] sm:$0xf]
        %v235 = vld [vmem:[%s183 + $0x4c] sm:$0xf]
        %v236 = vld [vmem:[%s183 + $0x50] sm:$0x1]
        %v237 = vld [vmem:[%s183 + $0x54] sm:$0xf]
        %v238 = vld [vmem:[%s183 + $0x58] sm:$0xf]
        %v239 = vld [vmem:[%s183 + $0x5c] sm:$0x1]
        %v240 = vld [vmem:[%s183 + $0x60] sm:$0xf]
        %v241 = vld [vmem:[%s183 + $0x64] sm:$0xf]
        %v242 = vld [vmem:[%s183 + $0x68] sm:$0x1]
        %v243 = vld [vmem:[%s183 + $0x6c] sm:$0xf]
        %v244 = vld [vmem:[%s183 + $0x70] sm:$0xf]
        %v245 = vld [vmem:[%s183 + $0x74] sm:$0x1]
        %v246 = vld [vmem:[%s183 + $0x78] sm:$0xf]
        %v247 = vld [vmem:[%s183 + $0x7c] sm:$0xf]
        %v248 = vld [vmem:[%s183 + $0x80] sm:$0x1]
        %v249 = vld [vmem:[%s183 + $0x84] sm:$0xf]
        %v250 = vld [vmem:[%s183 + $0x88] sm:$0xf]
        %v251 = vld [vmem:[%s183 + $0x8c] sm:$0x1]
        %v252 = vld [vmem:[%s183 + $0x90] sm:$0xf]
        %v253 = vld [vmem:[%s183 + $0x94] sm:$0xf]
        %v254 = vld [vmem:[%s183 + $0x98] sm:$0x1]
        %v255 = vld [vmem:[%s183 + $0x9c] sm:$0xf]
        %v256 = vld [vmem:[%s183 + $0xa0] sm:$0xf]
        %v257 = vld [vmem:[%s183 + $0xa4] sm:$0x1]
        %v258 = vld [vmem:[%s183 + $0xa8] sm:$0xf]
        %v259 = vld [vmem:[%s183 + $0xac] sm:$0xf]
        %v260 = vld [vmem:[%s183 + $0xb0] sm:$0x1]
        %v261 = vld [vmem:[%s183 + $0xb4] sm:$0xf]
        %v262 = vld [vmem:[%s183 + $0xb8] sm:$0xf]
        %v263 = vld [vmem:[%s183 + $0xbc] sm:$0x1]
        %v264 = vld [vmem:[%s183 + $0xc0] sm:$0xf]
        %v265 = vld [vmem:[%s183 + $0xc4] sm:$0xf]
        %v266 = vld [vmem:[%s183 + $0xc8] sm:$0x1]
        %v267 = vld [vmem:[%s183 + $0xcc] sm:$0xf]
        %v268 = vld [vmem:[%s183 + $0xd0] sm:$0xf]
        %v269 = vld [vmem:[%s183 + $0xd4] sm:$0x1]
        %v270 = vld [vmem:[#allocation5] sm:$0xf]
        %v271 = vld [vmem:[#allocation5 + $0x4] sm:$0xf]
        %v272 = vld [vmem:[#allocation5 + $0x8] sm:$0xf]
        %v273 = vld [vmem:[#allocation5 + $0xc] sm:$0xf]
        %v274 = vld [vmem:[#allocation5 + $0x10] sm:$0xf]
        %v275 = vld [vmem:[#allocation5 + $0x14] sm:$0xf]
        %v276 = vld [vmem:[#allocation5 + $0x18] sm:$0xf]
        %v277 = vld [vmem:[#allocation5 + $0x1c] sm:$0xf]
        %v278 = vld [vmem:[#allocation5 + $0x20] sm:$0xf]
        %v279 = vld [vmem:[#allocation5 + $0x24] sm:$0xf]
        %v280 = vld [vmem:[#allocation5 + $0x28] sm:$0xf]
        %v281 = vld [vmem:[#allocation5 + $0x2c] sm:$0xf]
        %v282 = vld [vmem:[#allocation5 + $0x30] sm:$0xf]
        %v283 = vld [vmem:[#allocation5 + $0x34] sm:$0xf]
        %v284 = vld [vmem:[#allocation5 + $0x38] sm:$0xf]
        %v285 = vld [vmem:[#allocation5 + $0x3c] sm:$0xf]
        %vm286 = vsmask.f32 3328
        %vm287 = vsmask.f32 7440
        %vm288 = vmor %vm286, %vm287
        %v290 = vshrl.u32 %v216, 16
        %v292 = vrot.slane %v290, 4
        %v293 = vshll.u32 %v216, 16
        %v295 = vrot.slane %v293, 5
        %v296 = vor.u32 %v292, %v295
        %v297 = vrot.slane %v296, 4
        %v299 = vshll.u32 %v217, 16
        %v301 = vrot.slane %v299, 5
        %v302 = vsel %vm288, %v297, %v301
        %v303 = vshrl.u32 %v217, 16
        %v305 = vrot.slane %v303, 4
        %v306 = vor.u32 %v305, %v301
        %v307 = vrot.slane %v306, 4
        %v309 = vshll.u32 %v218, 16
        %v311 = vrot.slane %v309, 5
        %v312 = vsel %vm288, %v307, %v311
        %v314 = vshrl.u32 %v219, 16
        %v316 = vrot.slane %v314, 4
        %v317 = vshll.u32 %v219, 16
        %v319 = vrot.slane %v317, 5
        %v320 = vor.u32 %v316, %v319
        %v321 = vrot.slane %v320, 4
        %v323 = vshll.u32 %v220, 16
        %v325 = vrot.slane %v323, 5
        %v326 = vsel %vm288, %v321, %v325
        %v327 = vshrl.u32 %v220, 16
        %v329 = vrot.slane %v327, 4
        %v330 = vor.u32 %v329, %v325
        %v331 = vrot.slane %v330, 4
        %v333 = vshll.u32 %v221, 16
        %v335 = vrot.slane %v333, 5
        %v336 = vsel %vm288, %v331, %v335
        %v338 = vshrl.u32 %v222, 16
        %v340 = vrot.slane %v338, 4
        %v341 = vshll.u32 %v222, 16
        %v343 = vrot.slane %v341, 5
        %v344 = vor.u32 %v340, %v343
        %v345 = vrot.slane %v344, 4
        %v347 = vshll.u32 %v223, 16
        %v349 = vrot.slane %v347, 5
        %v350 = vsel %vm288, %v345, %v349
        %v351 = vshrl.u32 %v223, 16
        %v353 = vrot.slane %v351, 4
        %v354 = vor.u32 %v353, %v349
        %v355 = vrot.slane %v354, 4
        %v357 = vshll.u32 %v224, 16
        %v359 = vrot.slane %v357, 5
        %v360 = vsel %vm288, %v355, %v359
        %v362 = vshrl.u32 %v225, 16
        %v364 = vrot.slane %v362, 4
        %v365 = vshll.u32 %v225, 16
        %v367 = vrot.slane %v365, 5
        %v368 = vor.u32 %v364, %v367
        %v369 = vrot.slane %v368, 4
        %v371 = vshll.u32 %v226, 16
        %v373 = vrot.slane %v371, 5
        %v374 = vsel %vm288, %v369, %v373
        %v375 = vshrl.u32 %v226, 16
        %v377 = vrot.slane %v375, 4
        %v378 = vor.u32 %v377, %v373
        %v379 = vrot.slane %v378, 4
        %v381 = vshll.u32 %v227, 16
        %v383 = vrot.slane %v381, 5
        %v384 = vsel %vm288, %v379, %v383
        %v386 = vshrl.u32 %v228, 16
        %v388 = vrot.slane %v386, 4
        %v389 = vshll.u32 %v228, 16
        %v391 = vrot.slane %v389, 5
        %v392 = vor.u32 %v388, %v391
        %v393 = vrot.slane %v392, 4
        %v395 = vshll.u32 %v229, 16
        %v397 = vrot.slane %v395, 5
        %v398 = vsel %vm288, %v393, %v397
        %v399 = vshrl.u32 %v229, 16
        %v401 = vrot.slane %v399, 4
        %v402 = vor.u32 %v401, %v397
        %v403 = vrot.slane %v402, 4
        %v405 = vshll.u32 %v230, 16
        %v407 = vrot.slane %v405, 5
        %v408 = vsel %vm288, %v403, %v407
        %v410 = vshrl.u32 %v231, 16
        %v412 = vrot.slane %v410, 4
        %v413 = vshll.u32 %v231, 16
        %v415 = vrot.slane %v413, 5
        %v416 = vor.u32 %v412, %v415
        %v417 = vrot.slane %v416, 4
        %v419 = vshll.u32 %v232, 16
        %v421 = vrot.slane %v419, 5
        %v422 = vsel %vm288, %v417, %v421
        %v423 = vshrl.u32 %v232, 16
        %v425 = vrot.slane %v423, 4
        %v426 = vor.u32 %v425, %v421
        %v427 = vrot.slane %v426, 4
        %v429 = vshll.u32 %v233, 16
        %v431 = vrot.slane %v429, 5
        %v432 = vsel %vm288, %v427, %v431
        %v434 = vshrl.u32 %v234, 16
        %v436 = vrot.slane %v434, 4
        %v437 = vshll.u32 %v234, 16
        %v439 = vrot.slane %v437, 5
        %v440 = vor.u32 %v436, %v439
        %v441 = vrot.slane %v440, 4
        %v443 = vshll.u32 %v235, 16
        %v445 = vrot.slane %v443, 5
        %v446 = vsel %vm288, %v441, %v445
        %v447 = vshrl.u32 %v235, 16
        %v449 = vrot.slane %v447, 4
        %v450 = vor.u32 %v449, %v445
        %v451 = vrot.slane %v450, 4
        %v453 = vshll.u32 %v236, 16
        %v455 = vrot.slane %v453, 5
        %v456 = vsel %vm288, %v451, %v455
        %v458 = vshrl.u32 %v237, 16
        %v460 = vrot.slane %v458, 4
        %v461 = vshll.u32 %v237, 16
        %v463 = vrot.slane %v461, 5
        %v464 = vor.u32 %v460, %v463
        %v465 = vrot.slane %v464, 4
        %v467 = vshll.u32 %v238, 16
        %v469 = vrot.slane %v467, 5
        %v470 = vsel %vm288, %v465, %v469
        %v471 = vshrl.u32 %v238, 16
        %v473 = vrot.slane %v471, 4
        %v474 = vor.u32 %v473, %v469
        %v475 = vrot.slane %v474, 4
        %v477 = vshll.u32 %v239, 16
        %v479 = vrot.slane %v477, 5
        %v480 = vsel %vm288, %v475, %v479
        %v482 = vshrl.u32 %v240, 16
        %v484 = vrot.slane %v482, 4
        %v485 = vshll.u32 %v240, 16
        %v487 = vrot.slane %v485, 5
        %v488 = vor.u32 %v484, %v487
        %v489 = vrot.slane %v488, 4
        %v491 = vshll.u32 %v241, 16
        %v493 = vrot.slane %v491, 5
        %v494 = vsel %vm288, %v489, %v493
        %v495 = vshrl.u32 %v241, 16
        %v497 = vrot.slane %v495, 4
        %v498 = vor.u32 %v497, %v493
        %v499 = vrot.slane %v498, 4
        %v501 = vshll.u32 %v242, 16
        %v503 = vrot.slane %v501, 5
        %v504 = vsel %vm288, %v499, %v503
        %v506 = vshrl.u32 %v243, 16
        %v508 = vrot.slane %v506, 4
        %v509 = vshll.u32 %v243, 16
        %v511 = vrot.slane %v509, 5
        %v512 = vor.u32 %v508, %v511
        %v513 = vrot.slane %v512, 4
        %v515 = vshll.u32 %v244, 16
        %v517 = vrot.slane %v515, 5
        %v518 = vsel %vm288, %v513, %v517
        %v519 = vshrl.u32 %v244, 16
        %v521 = vrot.slane %v519, 4
        %v522 = vor.u32 %v521, %v517
        %v523 = vrot.slane %v522, 4
        %v525 = vshll.u32 %v245, 16
        %v527 = vrot.slane %v525, 5
        %v528 = vsel %vm288, %v523, %v527
        %v530 = vshrl.u32 %v246, 16
        %v532 = vrot.slane %v530, 4
        %v533 = vshll.u32 %v246, 16
        %v535 = vrot.slane %v533, 5
        %v536 = vor.u32 %v532, %v535
        %v537 = vrot.slane %v536, 4
        %v539 = vshll.u32 %v247, 16
        %v541 = vrot.slane %v539, 5
        %v542 = vsel %vm288, %v537, %v541
        %v543 = vshrl.u32 %v247, 16
        %v545 = vrot.slane %v543, 4
        %v546 = vor.u32 %v545, %v541
        %v547 = vrot.slane %v546, 4
        %v549 = vshll.u32 %v248, 16
        %v551 = vrot.slane %v549, 5
        %v552 = vsel %vm288, %v547, %v551
        %v554 = vshrl.u32 %v249, 16
        %v556 = vrot.slane %v554, 4
        %v557 = vshll.u32 %v249, 16
        %v559 = vrot.slane %v557, 5
        %v560 = vor.u32 %v556, %v559
        %v561 = vrot.slane %v560, 4
        %v563 = vshll.u32 %v250, 16
        %v565 = vrot.slane %v563, 5
        %v566 = vsel %vm288, %v561, %v565
        %v567 = vshrl.u32 %v250, 16
        %v569 = vrot.slane %v567, 4
        %v570 = vor.u32 %v569, %v565
        %v571 = vrot.slane %v570, 4
        %v573 = vshll.u32 %v251, 16
        %v575 = vrot.slane %v573, 5
        %v576 = vsel %vm288, %v571, %v575
        %v578 = vshrl.u32 %v252, 16
        %v580 = vrot.slane %v578, 4
        %v581 = vshll.u32 %v252, 16
        %v583 = vrot.slane %v581, 5
        %v584 = vor.u32 %v580, %v583
        %v585 = vrot.slane %v584, 4
        %v587 = vshll.u32 %v253, 16
        %v589 = vrot.slane %v587, 5
        %v590 = vsel %vm288, %v585, %v589
        %v591 = vshrl.u32 %v253, 16
        %v593 = vrot.slane %v591, 4
        %v594 = vor.u32 %v593, %v589
        %v595 = vrot.slane %v594, 4
        %v597 = vshll.u32 %v254, 16
        %v599 = vrot.slane %v597, 5
        %v600 = vsel %vm288, %v595, %v599
        %v602 = vshrl.u32 %v255, 16
        %v604 = vrot.slane %v602, 4
        %v605 = vshll.u32 %v255, 16
        %v607 = vrot.slane %v605, 5
        %v608 = vor.u32 %v604, %v607
        %v609 = vrot.slane %v608, 4
        %v611 = vshll.u32 %v256, 16
        %v613 = vrot.slane %v611, 5
        %v614 = vsel %vm288, %v609, %v613
        %v615 = vshrl.u32 %v256, 16
        %v617 = vrot.slane %v615, 4
        %v618 = vor.u32 %v617, %v613
        %v619 = vrot.slane %v618, 4
        %v621 = vshll.u32 %v257, 16
        %v623 = vrot.slane %v621, 5
        %v624 = vsel %vm288, %v619, %v623
        %v626 = vshrl.u32 %v258, 16
        %v628 = vrot.slane %v626, 4
        %v629 = vshll.u32 %v258, 16
        %v631 = vrot.slane %v629, 5
        %v632 = vor.u32 %v628, %v631
        %v633 = vrot.slane %v632, 4
        %v635 = vshll.u32 %v259, 16
        %v637 = vrot.slane %v635, 5
        %v638 = vsel %vm288, %v633, %v637
        %v639 = vshrl.u32 %v259, 16
        %v641 = vrot.slane %v639, 4
        %v642 = vor.u32 %v641, %v637
        %v643 = vrot.slane %v642, 4
        %v645 = vshll.u32 %v260, 16
        %v647 = vrot.slane %v645, 5
        %v648 = vsel %vm288, %v643, %v647
        %v650 = vshrl.u32 %v261, 16
        %v652 = vrot.slane %v650, 4
        %v653 = vshll.u32 %v261, 16
        %v655 = vrot.slane %v653, 5
        %v656 = vor.u32 %v652, %v655
        %v657 = vrot.slane %v656, 4
        %v659 = vshll.u32 %v262, 16
        %v661 = vrot.slane %v659, 5
        %v662 = vsel %vm288, %v657, %v661
        %v663 = vshrl.u32 %v262, 16
        %v665 = vrot.slane %v663, 4
        %v666 = vor.u32 %v665, %v661
        %v667 = vrot.slane %v666, 4
        %v669 = vshll.u32 %v263, 16
        %v671 = vrot.slane %v669, 5
        %v672 = vsel %vm288, %v667, %v671
        %s673 = scalar_lea.vmem [#allocation5], 64
        %v674 = vld [vmem:[%s673] sm:$0xf]
        %v675 = vld [vmem:[%s673 + $0x4] sm:$0xf]
        %v676 = vld [vmem:[%s673 + $0x8] sm:$0xf]
        %v677 = vld [vmem:[%s673 + $0xc] sm:$0xf]
        %v678 = vld [vmem:[%s673 + $0x10] sm:$0xf]
        %v679 = vld [vmem:[%s673 + $0x14] sm:$0xf]
        %v680 = vld [vmem:[%s673 + $0x18] sm:$0xf]
        %v681 = vld [vmem:[%s673 + $0x1c] sm:$0xf]
        %v682 = vld [vmem:[%s673 + $0x20] sm:$0xf]
        %v683 = vld [vmem:[%s673 + $0x24] sm:$0xf]
        %v684 = vld [vmem:[%s673 + $0x28] sm:$0xf]
        %v685 = vld [vmem:[%s673 + $0x2c] sm:$0xf]
        %v686 = vld [vmem:[%s673 + $0x30] sm:$0xf]
        %v687 = vld [vmem:[%s673 + $0x34] sm:$0xf]
        %v688 = vld [vmem:[%s673 + $0x38] sm:$0xf]
        %v689 = vld [vmem:[%s673 + $0x3c] sm:$0xf]
        %v690 = vunpack.c.l.b16 %v302
        %v691 = vunpack.c.l.b16 %v312
        %v692 = vunpack.c.l.b16 %v326
        %v693 = vunpack.c.l.b16 %v336
        %v694 = vunpack.c.l.b16 %v350
        %v695 = vunpack.c.l.b16 %v360
        %v696 = vunpack.c.l.b16 %v374
        %v697 = vunpack.c.l.b16 %v384
        %v698 = vunpack.c.l.b16 %v398
        %v699 = vunpack.c.l.b16 %v408
        %v700 = vunpack.c.l.b16 %v422
        %v701 = vunpack.c.l.b16 %v432
        %v702 = vunpack.c.l.b16 %v446
        %v703 = vunpack.c.l.b16 %v456
        %v704 = vunpack.c.l.b16 %v470
        %v705 = vunpack.c.l.b16 %v480
        %v706 = vunpack.c.l.b16 %v494
        %v707 = vunpack.c.l.b16 %v504
        %v708 = vunpack.c.l.b16 %v518
        %v709 = vunpack.c.l.b16 %v528
        %v710 = vunpack.c.l.b16 %v542
        %v711 = vunpack.c.l.b16 %v552
        %v712 = vunpack.c.l.b16 %v566
        %v713 = vunpack.c.l.b16 %v576
        %v714 = vunpack.c.l.b16 %v590
        %v715 = vunpack.c.l.b16 %v600
        %v716 = vunpack.c.l.b16 %v614
        %v717 = vunpack.c.l.b16 %v624
        %v718 = vunpack.c.l.b16 %v638
        %v719 = vunpack.c.l.b16 %v648
        %v720 = vunpack.c.l.b16 %v662
        %v721 = vunpack.c.l.b16 %v672
        %v722 = vpack.c.b16 %v691, %v690
        %v723 = vpack.c.b16 %v693, %v692
        %v724 = vpack.c.b16 %v695, %v694
        %v725 = vpack.c.b16 %v697, %v696
        %v726 = vpack.c.b16 %v699, %v698
        %v727 = vpack.c.b16 %v701, %v700
        %v728 = vpack.c.b16 %v703, %v702
        %v729 = vpack.c.b16 %v705, %v704
        %v730 = vpack.c.b16 %v707, %v706
        %v731 = vpack.c.b16 %v709, %v708
        %v732 = vpack.c.b16 %v711, %v710
        %v733 = vpack.c.b16 %v713, %v712
        %v734 = vpack.c.b16 %v715, %v714
        %v735 = vpack.c.b16 %v717, %v716
        %v736 = vpack.c.b16 %v719, %v718
        %v737 = vpack.c.b16 %v721, %v720
        %v770 = vunpack.c.l.b16 %v674
        %v771 = vunpack.c.l.b16 %v675
        %v772 = vunpack.c.l.b16 %v676
        %v773 = vunpack.c.l.b16 %v677
        %v774 = vunpack.c.l.b16 %v678
        %v775 = vunpack.c.l.b16 %v679
        %v776 = vunpack.c.l.b16 %v680
        %v777 = vunpack.c.l.b16 %v681
        %v778 = vunpack.c.l.b16 %v682
        %v779 = vunpack.c.l.b16 %v683
        %v780 = vunpack.c.l.b16 %v684
        %v781 = vunpack.c.l.b16 %v685
        %v782 = vunpack.c.l.b16 %v686
        %v783 = vunpack.c.l.b16 %v687
        %v784 = vunpack.c.l.b16 %v688
        %v785 = vunpack.c.l.b16 %v689
        %v786 = vpack.c.b16 %v771, %v770
        %v787 = vpack.c.b16 %v773, %v772
        %v788 = vpack.c.b16 %v775, %v774
        %v789 = vpack.c.b16 %v777, %v776
        %v790 = vpack.c.b16 %v779, %v778
        %v791 = vpack.c.b16 %v781, %v780
        %v792 = vpack.c.b16 %v783, %v782
        %v793 = vpack.c.b16 %v785, %v784
        %802 = vmatprep.subr.bf16.mxu0 0
        %803 = vmatpush1.bf16.msra.mxu0 %v786
        %804 = vmatprep.subr.bf16.mxu0 0
        %805 = vmatpush1.bf16.msra.mxu0 %v787
        %806 = vmatprep.subr.bf16.mxu0 0
        %807 = vmatpush1.bf16.msra.mxu0 %v788
        %808 = vmatprep.subr.bf16.mxu0 0
        %809 = vmatpush1.bf16.msra.mxu0 %v789
        %810 = vmatprep.subr.bf16.mxu0 0
        %811 = vmatpush1.bf16.msra.mxu0 %v790
        %812 = vmatprep.subr.bf16.mxu0 0
        %813 = vmatpush1.bf16.msra.mxu0 %v791
        %814 = vmatprep.subr.bf16.mxu0 0
        %815 = vmatpush1.bf16.msra.mxu0 %v792
        %816 = vmatprep.subr.bf16.mxu0 0
        %817 = vmatpush1.bf16.msra.mxu0 %v793
        %818 = vmatprep.subr.bf16.mxu0 0
        %819 = vmatpush1.bf16.msra.mxu0 0
        %820 = vmatprep.subr.bf16.mxu0 0
        %821 = vmatpush1.bf16.msra.mxu0 0
        %822 = vmatprep.subr.bf16.mxu0 0
        %823 = vmatpush1.bf16.msra.mxu0 0
        %824 = vmatprep.subr.bf16.mxu0 0
        %825 = vmatpush1.bf16.msra.mxu0 0
        %826 = vmatprep.subr.bf16.mxu0 0
        %827 = vmatpush1.bf16.msra.mxu0 0
        %828 = vmatprep.subr.bf16.mxu0 0
        %829 = vmatpush1.bf16.msra.mxu0 0
        %830 = vmatprep.subr.bf16.mxu0 0
        %831 = vmatpush1.bf16.msra.mxu0 0
        %832 = vmatprep.subr.bf16.mxu0 0
        %833 = vmatpush1.bf16.msra.mxu0 0
        %834 = vmatprep.mubr.bf16.mxu0 0
        %835 = vmatmul.mubr.bf16.gmra.mrb[0].mxu0 %v722
        %v836 = vpop.f32.mrb[0].mxu0
        %v837 = vadd.f32 0.0, %v836
        %v838 = vpop.f32.mrb[0].mxu0
        %v839 = vpop.f32.mrb[0].mxu0
        %v840 = vadd.f32 0.0, %v839
        %v841 = vpop.f32.mrb[0].mxu0
        %842 = vmatprep.mubr.bf16.mxu0 0
        %843 = vmatmul.mubr.bf16.gmra.mrb[0].mxu0 %v723
        %v844 = vpop.f32.mrb[0].mxu0
        %v845 = vadd.f32 0.0, %v844
        %v846 = vpop.f32.mrb[0].mxu0
        %v847 = vpop.f32.mrb[0].mxu0
        %v848 = vadd.f32 0.0, %v847
        %v849 = vpop.f32.mrb[0].mxu0
        %850 = vmatprep.mubr.bf16.mxu0 0
        %851 = vmatmul.mubr.bf16.gmra.mrb[0].mxu0 %v724
        %v852 = vpop.f32.mrb[0].mxu0
        %v853 = vadd.f32 0.0, %v852
        %v854 = vpop.f32.mrb[0].mxu0
        %v855 = vpop.f32.mrb[0].mxu0
        %v856 = vadd.f32 0.0, %v855
        %v857 = vpop.f32.mrb[0].mxu0
        %858 = vmatprep.mubr.bf16.mxu0 0
        %859 = vmatmul.mubr.bf16.gmra.mrb[0].mxu0 %v725
        %v860 = vpop.f32.mrb[0].mxu0
        %v861 = vadd.f32 0.0, %v860
        %v862 = vpop.f32.mrb[0].mxu0
        %v863 = vpop.f32.mrb[0].mxu0
        %v864 = vadd.f32 0.0, %v863
        %v865 = vpop.f32.mrb[0].mxu0
        %866 = vmatprep.mubr.bf16.mxu0 0
        %867 = vmatmul.mubr.bf16.gmra.mrb[0].mxu0 %v726
        %v868 = vpop.f32.mrb[0].mxu0
        %v869 = vadd.f32 0.0, %v868
        %v870 = vpop.f32.mrb[0].mxu0
        %v871 = vpop.f32.mrb[0].mxu0
        %v872 = vadd.f32 0.0, %v871
        %v873 = vpop.f32.mrb[0].mxu0
        %874 = vmatprep.mubr.bf16.mxu0 0
        %875 = vmatmul.mubr.bf16.gmra.mrb[0].mxu0 %v727
        %v876 = vpop.f32.mrb[0].mxu0
        %v877 = vadd.f32 0.0, %v876
        %v878 = vpop.f32.mrb[0].mxu0
        %v879 = vpop.f32.mrb[0].mxu0
        %v880 = vadd.f32 0.0, %v879
        %v881 = vpop.f32.mrb[0].mxu0
        %882 = vmatprep.mubr.bf16.mxu0 0
        %883 = vmatmul.mubr.bf16.gmra.mrb[0].mxu0 %v728
        %v884 = vpop.f32.mrb[0].mxu0
        %v885 = vadd.f32 0.0, %v884
        %v886 = vpop.f32.mrb[0].mxu0
        %v887 = vpop.f32.mrb[0].mxu0
        %v888 = vadd.f32 0.0, %v887
        %v889 = vpop.f32.mrb[0].mxu0
        %890 = vmatprep.mubr.bf16.mxu0 0
        %891 = vmatmul.mubr.bf16.gmra.mrb[0].mxu0 %v729
        %v892 = vpop.f32.mrb[0].mxu0
        %v893 = vadd.f32 0.0, %v892
        %v894 = vpop.f32.mrb[0].mxu0
        %v895 = vpop.f32.mrb[0].mxu0
        %v896 = vadd.f32 0.0, %v895
        %v897 = vpop.f32.mrb[0].mxu0
        %898 = vmatprep.mubr.bf16.mxu0 0
        %899 = vmatmul.mubr.bf16.gmra.mrb[0].mxu0 %v730
        %v900 = vpop.f32.mrb[0].mxu0
        %v901 = vadd.f32 0.0, %v900
        %v902 = vpop.f32.mrb[0].mxu0
        %v903 = vpop.f32.mrb[0].mxu0
        %v904 = vadd.f32 0.0, %v903
        %v905 = vpop.f32.mrb[0].mxu0
        %906 = vmatprep.mubr.bf16.mxu0 0
        %907 = vmatmul.mubr.bf16.gmra.mrb[0].mxu0 %v731
        %v908 = vpop.f32.mrb[0].mxu0
        %v909 = vadd.f32 0.0, %v908
        %v910 = vpop.f32.mrb[0].mxu0
        %v911 = vpop.f32.mrb[0].mxu0
        %v912 = vadd.f32 0.0, %v911
        %v913 = vpop.f32.mrb[0].mxu0
        %914 = vmatprep.mubr.bf16.mxu0 0
        %915 = vmatmul.mubr.bf16.gmra.mrb[0].mxu0 %v732
        %v916 = vpop.f32.mrb[0].mxu0
        %v917 = vadd.f32 0.0, %v916
        %v918 = vpop.f32.mrb[0].mxu0
        %v919 = vpop.f32.mrb[0].mxu0
        %v920 = vadd.f32 0.0, %v919
        %v921 = vpop.f32.mrb[0].mxu0
        %922 = vmatprep.mubr.bf16.mxu0 0
        %923 = vmatmul.mubr.bf16.gmra.mrb[0].mxu0 %v733
        %v924 = vpop.f32.mrb[0].mxu0
        %v925 = vadd.f32 0.0, %v924
        %v926 = vpop.f32.mrb[0].mxu0
        %v927 = vpop.f32.mrb[0].mxu0
        %v928 = vadd.f32 0.0, %v927
        %v929 = vpop.f32.mrb[0].mxu0
        %930 = vmatprep.mubr.bf16.mxu0 0
        %931 = vmatmul.mubr.bf16.gmra.mrb[0].mxu0 %v734
        %v932 = vpop.f32.mrb[0].mxu0
        %v933 = vadd.f32 0.0, %v932
        %v934 = vpop.f32.mrb[0].mxu0
        %v935 = vpop.f32.mrb[0].mxu0
        %v936 = vadd.f32 0.0, %v935
        %v937 = vpop.f32.mrb[0].mxu0
        %938 = vmatprep.mubr.bf16.mxu0 0
        %939 = vmatmul.mubr.bf16.gmra.mrb[0].mxu0 %v735
        %v940 = vpop.f32.mrb[0].mxu0
        %v941 = vadd.f32 0.0, %v940
        %v942 = vpop.f32.mrb[0].mxu0
        %v943 = vpop.f32.mrb[0].mxu0
        %v944 = vadd.f32 0.0, %v943
        %v945 = vpop.f32.mrb[0].mxu0
        %946 = vmatprep.mubr.bf16.mxu0 0
        %947 = vmatmul.mubr.bf16.gmra.mrb[0].mxu0 %v736
        %v948 = vpop.f32.mrb[0].mxu0
        %v949 = vadd.f32 0.0, %v948
        %v950 = vpop.f32.mrb[0].mxu0
        %v951 = vpop.f32.mrb[0].mxu0
        %v952 = vadd.f32 0.0, %v951
        %v953 = vpop.f32.mrb[0].mxu0
        %954 = vmatprep.mubr.bf16.mxu0 0
        %955 = vmatmul.mubr.bf16.gmra.mrb[0].mxu0 %v737
        %v956 = vpop.f32.mrb[0].mxu0
        %v957 = vadd.f32 0.0, %v956
        %v958 = vpop.f32.mrb[0].mxu0
        %v959 = vpop.f32.mrb[0].mxu0
        %v960 = vadd.f32 0.0, %v959
        %v961 = vpop.f32.mrb[0].mxu0
        %962 = vdwg.mxu0
        %v995 = vunpack.c.l.b16 %v216
        %v996 = vunpack.c.l.b16 %v217
        %v997 = vunpack.c.l.b16 %v219
        %v998 = vunpack.c.l.b16 %v220
        %v999 = vunpack.c.l.b16 %v222
        %v1000 = vunpack.c.l.b16 %v223
        %v1001 = vunpack.c.l.b16 %v225
        %v1002 = vunpack.c.l.b16 %v226
        %v1003 = vunpack.c.l.b16 %v228
        %v1004 = vunpack.c.l.b16 %v229
        %v1005 = vunpack.c.l.b16 %v231
        %v1006 = vunpack.c.l.b16 %v232
        %v1007 = vunpack.c.l.b16 %v234
        %v1008 = vunpack.c.l.b16 %v235
        %v1009 = vunpack.c.l.b16 %v237
        %v1010 = vunpack.c.l.b16 %v238
        %v1011 = vunpack.c.l.b16 %v240
        %v1012 = vunpack.c.l.b16 %v241
        %v1013 = vunpack.c.l.b16 %v243
        %v1014 = vunpack.c.l.b16 %v244
        %v1015 = vunpack.c.l.b16 %v246
        %v1016 = vunpack.c.l.b16 %v247
        %v1017 = vunpack.c.l.b16 %v249
        %v1018 = vunpack.c.l.b16 %v250
        %v1019 = vunpack.c.l.b16 %v252
        %v1020 = vunpack.c.l.b16 %v253
        %v1021 = vunpack.c.l.b16 %v255
        %v1022 = vunpack.c.l.b16 %v256
        %v1023 = vunpack.c.l.b16 %v258
        %v1024 = vunpack.c.l.b16 %v259
        %v1025 = vunpack.c.l.b16 %v261
        %v1026 = vunpack.c.l.b16 %v262
        %v1027 = vpack.c.b16 %v996, %v995
        %v1028 = vpack.c.b16 %v998, %v997
        %v1029 = vpack.c.b16 %v1000, %v999
        %v1030 = vpack.c.b16 %v1002, %v1001
        %v1031 = vpack.c.b16 %v1004, %v1003
        %v1032 = vpack.c.b16 %v1006, %v1005
        %v1033 = vpack.c.b16 %v1008, %v1007
        %v1034 = vpack.c.b16 %v1010, %v1009
        %v1035 = vpack.c.b16 %v1012, %v1011
        %v1036 = vpack.c.b16 %v1014, %v1013
        %v1037 = vpack.c.b16 %v1016, %v1015
        %v1038 = vpack.c.b16 %v1018, %v1017
        %v1039 = vpack.c.b16 %v1020, %v1019
        %v1040 = vpack.c.b16 %v1022, %v1021
        %v1041 = vpack.c.b16 %v1024, %v1023
        %v1042 = vpack.c.b16 %v1026, %v1025
        %v1075 = vunpack.c.l.b16 %v270
        %v1076 = vunpack.c.l.b16 %v271
        %v1077 = vunpack.c.l.b16 %v272
        %v1078 = vunpack.c.l.b16 %v273
        %v1079 = vunpack.c.l.b16 %v274
        %v1080 = vunpack.c.l.b16 %v275
        %v1081 = vunpack.c.l.b16 %v276
        %v1082 = vunpack.c.l.b16 %v277
        %v1083 = vunpack.c.l.b16 %v278
        %v1084 = vunpack.c.l.b16 %v279
        %v1085 = vunpack.c.l.b16 %v280
        %v1086 = vunpack.c.l.b16 %v281
        %v1087 = vunpack.c.l.b16 %v282
        %v1088 = vunpack.c.l.b16 %v283
        %v1089 = vunpack.c.l.b16 %v284
        %v1090 = vunpack.c.l.b16 %v285
        %v1091 = vpack.c.b16 %v1076, %v1075
        %v1092 = vpack.c.b16 %v1078, %v1077
        %v1093 = vpack.c.b16 %v1080, %v1079
        %v1094 = vpack.c.b16 %v1082, %v1081
        %v1095 = vpack.c.b16 %v1084, %v1083
        %v1096 = vpack.c.b16 %v1086, %v1085
        %v1097 = vpack.c.b16 %v1088, %v1087
        %v1098 = vpack.c.b16 %v1090, %v1089
        %1107 = vmatprep.subr.bf16.mxu0 0
        %1108 = vmatpush1.bf16.msra.mxu0 %v1091
        %1109 = vmatprep.subr.bf16.mxu0 0
        %1110 = vmatpush1.bf16.msra.mxu0 %v1092
        %1111 = vmatprep.subr.bf16.mxu0 0
        %1112 = vmatpush1.bf16.msra.mxu0 %v1093
        %1113 = vmatprep.subr.bf16.mxu0 0
        %1114 = vmatpush1.bf16.msra.mxu0 %v1094
        %1115 = vmatprep.subr.bf16.mxu0 0
        %1116 = vmatpush1.bf16.msra.mxu0 %v1095
        %1117 = vmatprep.subr.bf16.mxu0 0
        %1118 = vmatpush1.bf16.msra.mxu0 %v1096
        %1119 = vmatprep.subr.bf16.mxu0 0
        %1120 = vmatpush1.bf16.msra.mxu0 %v1097
        %1121 = vmatprep.subr.bf16.mxu0 0
        %1122 = vmatpush1.bf16.msra.mxu0 %v1098
        %1123 = vmatprep.subr.bf16.mxu0 0
        %1124 = vmatpush1.bf16.msra.mxu0 0
        %1125 = vmatprep.subr.bf16.mxu0 0
        %1126 = vmatpush1.bf16.msra.mxu0 0
        %1127 = vmatprep.subr.bf16.mxu0 0
        %1128 = vmatpush1.bf16.msra.mxu0 0
        %1129 = vmatprep.subr.bf16.mxu0 0
        %1130 = vmatpush1.bf16.msra.mxu0 0
        %1131 = vmatprep.subr.bf16.mxu0 0
        %1132 = vmatpush1.bf16.msra.mxu0 0
        %1133 = vmatprep.subr.bf16.mxu0 0
        %1134 = vmatpush1.bf16.msra.mxu0 0
        %1135 = vmatprep.subr.bf16.mxu0 0
        %1136 = vmatpush1.bf16.msra.mxu0 0
        %1137 = vmatprep.subr.bf16.mxu0 0
        %1138 = vmatpush1.bf16.msra.mxu0 0
        %1139 = vmatprep.mubr.bf16.mxu0 0
        %1140 = vmatmul.mubr.bf16.gmra.mrb[0].mxu0 %v1027
        %v1141 = vpop.f32.mrb[0].mxu0
        %v1142 = vadd.f32 %v837, %v1141
        %v1143 = vpop.f32.mrb[0].mxu0
        %v1144 = vpop.f32.mrb[0].mxu0
        %v1145 = vadd.f32 %v840, %v1144
        %v1146 = vpop.f32.mrb[0].mxu0
        %1147 = vmatprep.mubr.bf16.mxu0 0
        %1148 = vmatmul.mubr.bf16.gmra.mrb[0].mxu0 %v1028
        %v1149 = vpop.f32.mrb[0].mxu0
        %v1150 = vadd.f32 %v845, %v1149
        %v1151 = vpop.f32.mrb[0].mxu0
        %v1152 = vpop.f32.mrb[0].mxu0
        %v1153 = vadd.f32 %v848, %v1152
        %v1154 = vpop.f32.mrb[0].mxu0
        %1155 = vmatprep.mubr.bf16.mxu0 0
        %1156 = vmatmul.mubr.bf16.gmra.mrb[0].mxu0 %v1029
        %v1157 = vpop.f32.mrb[0].mxu0
        %v1158 = vadd.f32 %v853, %v1157
        %v1159 = vpop.f32.mrb[0].mxu0
        %v1160 = vpop.f32.mrb[0].mxu0
        %v1161 = vadd.f32 %v856, %v1160
        %v1162 = vpop.f32.mrb[0].mxu0
        %1163 = vmatprep.mubr.bf16.mxu0 0
        %1164 = vmatmul.mubr.bf16.gmra.mrb[0].mxu0 %v1030
        %v1165 = vpop.f32.mrb[0].mxu0
        %v1166 = vadd.f32 %v861, %v1165
        %v1167 = vpop.f32.mrb[0].mxu0
        %v1168 = vpop.f32.mrb[0].mxu0
        %v1169 = vadd.f32 %v864, %v1168
        %v1170 = vpop.f32.mrb[0].mxu0
        %1171 = vmatprep.mubr.bf16.mxu0 0
        %1172 = vmatmul.mubr.bf16.gmra.mrb[0].mxu0 %v1031
        %v1173 = vpop.f32.mrb[0].mxu0
        %v1174 = vadd.f32 %v869, %v1173
        %v1175 = vpop.f32.mrb[0].mxu0
        %v1176 = vpop.f32.mrb[0].mxu0
        %v1177 = vadd.f32 %v872, %v1176
        %v1178 = vpop.f32.mrb[0].mxu0
        %1179 = vmatprep.mubr.bf16.mxu0 0
        %1180 = vmatmul.mubr.bf16.gmra.mrb[0].mxu0 %v1032
        %v1181 = vpop.f32.mrb[0].mxu0
        %v1182 = vadd.f32 %v877, %v1181
        %v1183 = vpop.f32.mrb[0].mxu0
        %v1184 = vpop.f32.mrb[0].mxu0
        %v1185 = vadd.f32 %v880, %v1184
        %v1186 = vpop.f32.mrb[0].mxu0
        %1187 = vmatprep.mubr.bf16.mxu0 0
        %1188 = vmatmul.mubr.bf16.gmra.mrb[0].mxu0 %v1033
        %v1189 = vpop.f32.mrb[0].mxu0
        %v1190 = vadd.f32 %v885, %v1189
        %v1191 = vpop.f32.mrb[0].mxu0
        %v1192 = vpop.f32.mrb[0].mxu0
        %v1193 = vadd.f32 %v888, %v1192
        %v1194 = vpop.f32.mrb[0].mxu0
        %1195 = vmatprep.mubr.bf16.mxu0 0
        %1196 = vmatmul.mubr.bf16.gmra.mrb[0].mxu0 %v1034
        %v1197 = vpop.f32.mrb[0].mxu0
        %v1198 = vadd.f32 %v893, %v1197
        %v1199 = vpop.f32.mrb[0].mxu0
        %v1200 = vpop.f32.mrb[0].mxu0
        %v1201 = vadd.f32 %v896, %v1200
        %v1202 = vpop.f32.mrb[0].mxu0
        %1203 = vmatprep.mubr.bf16.mxu0 0
        %1204 = vmatmul.mubr.bf16.gmra.mrb[0].mxu0 %v1035
        %v1205 = vpop.f32.mrb[0].mxu0
        %v1206 = vadd.f32 %v901, %v1205
        %v1207 = vpop.f32.mrb[0].mxu0
        %v1208 = vpop.f32.mrb[0].mxu0
        %v1209 = vadd.f32 %v904, %v1208
        %v1210 = vpop.f32.mrb[0].mxu0
        %1211 = vmatprep.mubr.bf16.mxu0 0
        %1212 = vmatmul.mubr.bf16.gmra.mrb[0].mxu0 %v1036
        %v1213 = vpop.f32.mrb[0].mxu0
        %v1214 = vadd.f32 %v909, %v1213
        %v1215 = vpop.f32.mrb[0].mxu0
        %v1216 = vpop.f32.mrb[0].mxu0
        %v1217 = vadd.f32 %v912, %v1216
        %v1218 = vpop.f32.mrb[0].mxu0
        %1219 = vmatprep.mubr.bf16.mxu0 0
        %1220 = vmatmul.mubr.bf16.gmra.mrb[0].mxu0 %v1037
        %v1221 = vpop.f32.mrb[0].mxu0
        %v1222 = vadd.f32 %v917, %v1221
        %v1223 = vpop.f32.mrb[0].mxu0
        %v1224 = vpop.f32.mrb[0].mxu0
        %v1225 = vadd.f32 %v920, %v1224
        %v1226 = vpop.f32.mrb[0].mxu0
        %1227 = vmatprep.mubr.bf16.mxu0 0
        %1228 = vmatmul.mubr.bf16.gmra.mrb[0].mxu0 %v1038
        %v1229 = vpop.f32.mrb[0].mxu0
        %v1230 = vadd.f32 %v925, %v1229
        %v1231 = vpop.f32.mrb[0].mxu0
        %v1232 = vpop.f32.mrb[0].mxu0
        %v1233 = vadd.f32 %v928, %v1232
        %v1234 = vpop.f32.mrb[0].mxu0
        %1235 = vmatprep.mubr.bf16.mxu0 0
        %1236 = vmatmul.mubr.bf16.gmra.mrb[0].mxu0 %v1039
        %v1237 = vpop.f32.mrb[0].mxu0
        %v1238 = vadd.f32 %v933, %v1237
        %v1239 = vpop.f32.mrb[0].mxu0
        %v1240 = vpop.f32.mrb[0].mxu0
        %v1241 = vadd.f32 %v936, %v1240
        %v1242 = vpop.f32.mrb[0].mxu0
        %1243 = vmatprep.mubr.bf16.mxu0 0
        %1244 = vmatmul.mubr.bf16.gmra.mrb[0].mxu0 %v1040
        %v1245 = vpop.f32.mrb[0].mxu0
        %v1246 = vadd.f32 %v941, %v1245
        %v1247 = vpop.f32.mrb[0].mxu0
        %v1248 = vpop.f32.mrb[0].mxu0
        %v1249 = vadd.f32 %v944, %v1248
        %v1250 = vpop.f32.mrb[0].mxu0
        %1251 = vmatprep.mubr.bf16.mxu0 0
        %1252 = vmatmul.mubr.bf16.gmra.mrb[0].mxu0 %v1041
        %v1253 = vpop.f32.mrb[0].mxu0
        %v1254 = vadd.f32 %v949, %v1253
        %v1255 = vpop.f32.mrb[0].mxu0
        %v1256 = vpop.f32.mrb[0].mxu0
        %v1257 = vadd.f32 %v952, %v1256
        %v1258 = vpop.f32.mrb[0].mxu0
        %1259 = vmatprep.mubr.bf16.mxu0 0
        %1260 = vmatmul.mubr.bf16.gmra.mrb[0].mxu0 %v1042
        %v1261 = vpop.f32.mrb[0].mxu0
        %v1262 = vadd.f32 %v957, %v1261
        %v1263 = vpop.f32.mrb[0].mxu0
        %v1264 = vpop.f32.mrb[0].mxu0
        %v1265 = vadd.f32 %v960, %v1264
        %v1266 = vpop.f32.mrb[0].mxu0
        %1267 = vdwg.mxu0
        %vm1284 = vcmask 1042432
        %vm1285 = vcmask 1046532
        %vm1286 = vmor %vm1284, %vm1285
        %v1287 = vrot.slane %v216, 5
        %v1288 = vrot.slane %v1287, 4
        %v1289 = vrot.slane %v217, 5
        %v1290 = vsel %vm1286, %v1288, %v1289
        %v1291 = vrot.slane %v1289, 4
        %v1292 = vrot.slane %v218, 5
        %v1293 = vsel %vm1286, %v1291, %v1292
        %v1294 = vrot.slane %v219, 5
        %v1295 = vrot.slane %v1294, 4
        %v1296 = vrot.slane %v220, 5
        %v1297 = vsel %vm1286, %v1295, %v1296
        %v1298 = vrot.slane %v1296, 4
        %v1299 = vrot.slane %v221, 5
        %v1300 = vsel %vm1286, %v1298, %v1299
        %v1301 = vrot.slane %v222, 5
        %v1302 = vrot.slane %v1301, 4
        %v1303 = vrot.slane %v223, 5
        %v1304 = vsel %vm1286, %v1302, %v1303
        %v1305 = vrot.slane %v1303, 4
        %v1306 = vrot.slane %v224, 5
        %v1307 = vsel %vm1286, %v1305, %v1306
        %v1308 = vrot.slane %v225, 5
        %v1309 = vrot.slane %v1308, 4
        %v1310 = vrot.slane %v226, 5
        %v1311 = vsel %vm1286, %v1309, %v1310
        %v1312 = vrot.slane %v1310, 4
        %v1313 = vrot.slane %v227, 5
        %v1314 = vsel %vm1286, %v1312, %v1313
        %v1315 = vrot.slane %v228, 5
        %v1316 = vrot.slane %v1315, 4
        %v1317 = vrot.slane %v229, 5
        %v1318 = vsel %vm1286, %v1316, %v1317
        %v1319 = vrot.slane %v1317, 4
        %v1320 = vrot.slane %v230, 5
        %v1321 = vsel %vm1286, %v1319, %v1320
        %v1322 = vrot.slane %v231, 5
        %v1323 = vrot.slane %v1322, 4
        %v1324 = vrot.slane %v232, 5
        %v1325 = vsel %vm1286, %v1323, %v1324
        %v1326 = vrot.slane %v1324, 4
        %v1327 = vrot.slane %v233, 5
        %v1328 = vsel %vm1286, %v1326, %v1327
        %v1329 = vrot.slane %v234, 5
        %v1330 = vrot.slane %v1329, 4
        %v1331 = vrot.slane %v235, 5
        %v1332 = vsel %vm1286, %v1330, %v1331
        %v1333 = vrot.slane %v1331, 4
        %v1334 = vrot.slane %v236, 5
        %v1335 = vsel %vm1286, %v1333, %v1334
        %v1336 = vrot.slane %v237, 5
        %v1337 = vrot.slane %v1336, 4
        %v1338 = vrot.slane %v238, 5
        %v1339 = vsel %vm1286, %v1337, %v1338
        %v1340 = vrot.slane %v1338, 4
        %v1341 = vrot.slane %v239, 5
        %v1342 = vsel %vm1286, %v1340, %v1341
        %v1343 = vrot.slane %v240, 5
        %v1344 = vrot.slane %v1343, 4
        %v1345 = vrot.slane %v241, 5
        %v1346 = vsel %vm1286, %v1344, %v1345
        %v1347 = vrot.slane %v1345, 4
        %v1348 = vrot.slane %v242, 5
        %v1349 = vsel %vm1286, %v1347, %v1348
        %v1350 = vrot.slane %v243, 5
        %v1351 = vrot.slane %v1350, 4
        %v1352 = vrot.slane %v244, 5
        %v1353 = vsel %vm1286, %v1351, %v1352
        %v1354 = vrot.slane %v1352, 4
        %v1355 = vrot.slane %v245, 5
        %v1356 = vsel %vm1286, %v1354, %v1355
        %v1357 = vrot.slane %v246, 5
        %v1358 = vrot.slane %v1357, 4
        %v1359 = vrot.slane %v247, 5
        %v1360 = vsel %vm1286, %v1358, %v1359
        %v1361 = vrot.slane %v1359, 4
        %v1362 = vrot.slane %v248, 5
        %v1363 = vsel %vm1286, %v1361, %v1362
        %v1364 = vrot.slane %v249, 5
        %v1365 = vrot.slane %v1364, 4
        %v1366 = vrot.slane %v250, 5
        %v1367 = vsel %vm1286, %v1365, %v1366
        %v1368 = vrot.slane %v1366, 4
        %v1369 = vrot.slane %v251, 5
        %v1370 = vsel %vm1286, %v1368, %v1369
        %v1371 = vrot.slane %v252, 5
        %v1372 = vrot.slane %v1371, 4
        %v1373 = vrot.slane %v253, 5
        %v1374 = vsel %vm1286, %v1372, %v1373
        %v1375 = vrot.slane %v1373, 4
        %v1376 = vrot.slane %v254, 5
        %v1377 = vsel %vm1286, %v1375, %v1376
        %v1378 = vrot.slane %v255, 5
        %v1379 = vrot.slane %v1378, 4
        %v1380 = vrot.slane %v256, 5
        %v1381 = vsel %vm1286, %v1379, %v1380
        %v1382 = vrot.slane %v1380, 4
        %v1383 = vrot.slane %v257, 5
        %v1384 = vsel %vm1286, %v1382, %v1383
        %v1385 = vrot.slane %v258, 5
        %v1386 = vrot.slane %v1385, 4
        %v1387 = vrot.slane %v259, 5
        %v1388 = vsel %vm1286, %v1386, %v1387
        %v1389 = vrot.slane %v1387, 4
        %v1390 = vrot.slane %v260, 5
        %v1391 = vsel %vm1286, %v1389, %v1390
        %v1392 = vrot.slane %v261, 5
        %v1393 = vrot.slane %v1392, 4
        %v1394 = vrot.slane %v262, 5
        %v1395 = vsel %vm1286, %v1393, %v1394
        %v1396 = vrot.slane %v1394, 4
        %v1397 = vrot.slane %v263, 5
        %v1398 = vsel %vm1286, %v1396, %v1397
        %s1399 = scalar_lea.vmem [#allocation5], 128
        %v1400 = vld [vmem:[%s1399] sm:$0xf]
        %v1401 = vld [vmem:[%s1399 + $0x4] sm:$0xf]
        %v1402 = vld [vmem:[%s1399 + $0x8] sm:$0xf]
        %v1403 = vld [vmem:[%s1399 + $0xc] sm:$0xf]
        %v1404 = vld [vmem:[%s1399 + $0x10] sm:$0xf]
        %v1405 = vld [vmem:[%s1399 + $0x14] sm:$0xf]
        %v1406 = vld [vmem:[%s1399 + $0x18] sm:$0xf]
        %v1407 = vld [vmem:[%s1399 + $0x1c] sm:$0xf]
        %v1408 = vld [vmem:[%s1399 + $0x20] sm:$0xf]
        %v1409 = vld [vmem:[%s1399 + $0x24] sm:$0xf]
        %v1410 = vld [vmem:[%s1399 + $0x28] sm:$0xf]
        %v1411 = vld [vmem:[%s1399 + $0x2c] sm:$0xf]
        %v1412 = vld [vmem:[%s1399 + $0x30] sm:$0xf]
        %v1413 = vld [vmem:[%s1399 + $0x34] sm:$0xf]
        %v1414 = vld [vmem:[%s1399 + $0x38] sm:$0xf]
        %v1415 = vld [vmem:[%s1399 + $0x3c] sm:$0xf]
        %v1416 = vunpack.c.l.b16 %v1290
        %v1417 = vunpack.c.l.b16 %v1293
        %v1418 = vunpack.c.l.b16 %v1297
        %v1419 = vunpack.c.l.b16 %v1300
        %v1420 = vunpack.c.l.b16 %v1304
        %v1421 = vunpack.c.l.b16 %v1307
        %v1422 = vunpack.c.l.b16 %v1311
        %v1423 = vunpack.c.l.b16 %v1314
        %v1424 = vunpack.c.l.b16 %v1318
        %v1425 = vunpack.c.l.b16 %v1321
        %v1426 = vunpack.c.l.b16 %v1325
        %v1427 = vunpack.c.l.b16 %v1328
        %v1428 = vunpack.c.l.b16 %v1332
        %v1429 = vunpack.c.l.b16 %v1335
        %v1430 = vunpack.c.l.b16 %v1339
        %v1431 = vunpack.c.l.b16 %v1342
        %v1432 = vunpack.c.l.b16 %v1346
        %v1433 = vunpack.c.l.b16 %v1349
        %v1434 = vunpack.c.l.b16 %v1353
        %v1435 = vunpack.c.l.b16 %v1356
        %v1436 = vunpack.c.l.b16 %v1360
        %v1437 = vunpack.c.l.b16 %v1363
        %v1438 = vunpack.c.l.b16 %v1367
        %v1439 = vunpack.c.l.b16 %v1370
        %v1440 = vunpack.c.l.b16 %v1374
        %v1441 = vunpack.c.l.b16 %v1377
        %v1442 = vunpack.c.l.b16 %v1381
        %v1443 = vunpack.c.l.b16 %v1384
        %v1444 = vunpack.c.l.b16 %v1388
        %v1445 = vunpack.c.l.b16 %v1391
        %v1446 = vunpack.c.l.b16 %v1395
        %v1447 = vunpack.c.l.b16 %v1398
        %v1448 = vpack.c.b16 %v1417, %v1416
        %v1449 = vpack.c.b16 %v1419, %v1418
        %v1450 = vpack.c.b16 %v1421, %v1420
        %v1451 = vpack.c.b16 %v1423, %v1422
        %v1452 = vpack.c.b16 %v1425, %v1424
        %v1453 = vpack.c.b16 %v1427, %v1426
        %v1454 = vpack.c.b16 %v1429, %v1428
        %v1455 = vpack.c.b16 %v1431, %v1430
        %v1456 = vpack.c.b16 %v1433, %v1432
        %v1457 = vpack.c.b16 %v1435, %v1434
        %v1458 = vpack.c.b16 %v1437, %v1436
        %v1459 = vpack.c.b16 %v1439, %v1438
        %v1460 = vpack.c.b16 %v1441, %v1440
        %v1461 = vpack.c.b16 %v1443, %v1442
        %v1462 = vpack.c.b16 %v1445, %v1444
        %v1463 = vpack.c.b16 %v1447, %v1446
        %v1496 = vunpack.c.l.b16 %v1400
        %v1497 = vunpack.c.l.b16 %v1401
        %v1498 = vunpack.c.l.b16 %v1402
        %v1499 = vunpack.c.l.b16 %v1403
        %v1500 = vunpack.c.l.b16 %v1404
        %v1501 = vunpack.c.l.b16 %v1405
        %v1502 = vunpack.c.l.b16 %v1406
        %v1503 = vunpack.c.l.b16 %v1407
        %v1504 = vunpack.c.l.b16 %v1408
        %v1505 = vunpack.c.l.b16 %v1409
        %v1506 = vunpack.c.l.b16 %v1410
        %v1507 = vunpack.c.l.b16 %v1411
        %v1508 = vunpack.c.l.b16 %v1412
        %v1509 = vunpack.c.l.b16 %v1413
        %v1510 = vunpack.c.l.b16 %v1414
        %v1511 = vunpack.c.l.b16 %v1415
        %v1512 = vpack.c.b16 %v1497, %v1496
        %v1513 = vpack.c.b16 %v1499, %v1498
        %v1514 = vpack.c.b16 %v1501, %v1500
        %v1515 = vpack.c.b16 %v1503, %v1502
        %v1516 = vpack.c.b16 %v1505, %v1504
        %v1517 = vpack.c.b16 %v1507, %v1506
        %v1518 = vpack.c.b16 %v1509, %v1508
        %v1519 = vpack.c.b16 %v1511, %v1510
        %1528 = vmatprep.subr.bf16.mxu0 0
        %1529 = vmatpush1.bf16.msra.mxu0 %v1512
        %1530 = vmatprep.subr.bf16.mxu0 0
        %1531 = vmatpush1.bf16.msra.mxu0 %v1513
        %1532 = vmatprep.subr.bf16.mxu0 0
        %1533 = vmatpush1.bf16.msra.mxu0 %v1514
        %1534 = vmatprep.subr.bf16.mxu0 0
        %1535 = vmatpush1.bf16.msra.mxu0 %v1515
        %1536 = vmatprep.subr.bf16.mxu0 0
        %1537 = vmatpush1.bf16.msra.mxu0 %v1516
        %1538 = vmatprep.subr.bf16.mxu0 0
        %1539 = vmatpush1.bf16.msra.mxu0 %v1517
        %1540 = vmatprep.subr.bf16.mxu0 0
        %1541 = vmatpush1.bf16.msra.mxu0 %v1518
        %1542 = vmatprep.subr.bf16.mxu0 0
        %1543 = vmatpush1.bf16.msra.mxu0 %v1519
        %1544 = vmatprep.subr.bf16.mxu0 0
        %1545 = vmatpush1.bf16.msra.mxu0 0
        %1546 = vmatprep.subr.bf16.mxu0 0
        %1547 = vmatpush1.bf16.msra.mxu0 0
        %1548 = vmatprep.subr.bf16.mxu0 0
        %1549 = vmatpush1.bf16.msra.mxu0 0
        %1550 = vmatprep.subr.bf16.mxu0 0
        %1551 = vmatpush1.bf16.msra.mxu0 0
        %1552 = vmatprep.subr.bf16.mxu0 0
        %1553 = vmatpush1.bf16.msra.mxu0 0
        %1554 = vmatprep.subr.bf16.mxu0 0
        %1555 = vmatpush1.bf16.msra.mxu0 0
        %1556 = vmatprep.subr.bf16.mxu0 0
        %1557 = vmatpush1.bf16.msra.mxu0 0
        %1558 = vmatprep.subr.bf16.mxu0 0
        %1559 = vmatpush1.bf16.msra.mxu0 0
        %1560 = vmatprep.mubr.bf16.mxu0 0
        %1561 = vmatmul.mubr.bf16.gmra.mrb[0].mxu0 %v1448
        %v1562 = vpop.f32.mrb[0].mxu0
        %v1563 = vadd.f32 0.0, %v1562
        %v1564 = vpop.f32.mrb[0].mxu0
        %v1565 = vpop.f32.mrb[0].mxu0
        %v1566 = vadd.f32 0.0, %v1565
        %v1567 = vpop.f32.mrb[0].mxu0
        %1568 = vmatprep.mubr.bf16.mxu0 0
        %1569 = vmatmul.mubr.bf16.gmra.mrb[0].mxu0 %v1449
        %v1570 = vpop.f32.mrb[0].mxu0
        %v1571 = vadd.f32 0.0, %v1570
        %v1572 = vpop.f32.mrb[0].mxu0
        %v1573 = vpop.f32.mrb[0].mxu0
        %v1574 = vadd.f32 0.0, %v1573
        %v1575 = vpop.f32.mrb[0].mxu0
        %1576 = vmatprep.mubr.bf16.mxu0 0
        %1577 = vmatmul.mubr.bf16.gmra.mrb[0].mxu0 %v1450
        %v1578 = vpop.f32.mrb[0].mxu0
        %v1579 = vadd.f32 0.0, %v1578
        %v1580 = vpop.f32.mrb[0].mxu0
        %v1581 = vpop.f32.mrb[0].mxu0
        %v1582 = vadd.f32 0.0, %v1581
        %v1583 = vpop.f32.mrb[0].mxu0
        %1584 = vmatprep.mubr.bf16.mxu0 0
        %1585 = vmatmul.mubr.bf16.gmra.mrb[0].mxu0 %v1451
        %v1586 = vpop.f32.mrb[0].mxu0
        %v1587 = vadd.f32 0.0, %v1586
        %v1588 = vpop.f32.mrb[0].mxu0
        %v1589 = vpop.f32.mrb[0].mxu0
        %v1590 = vadd.f32 0.0, %v1589
        %v1591 = vpop.f32.mrb[0].mxu0
        %1592 = vmatprep.mubr.bf16.mxu0 0
        %1593 = vmatmul.mubr.bf16.gmra.mrb[0].mxu0 %v1452
        %v1594 = vpop.f32.mrb[0].mxu0
        %v1595 = vadd.f32 0.0, %v1594
        %v1596 = vpop.f32.mrb[0].mxu0
        %v1597 = vpop.f32.mrb[0].mxu0
        %v1598 = vadd.f32 0.0, %v1597
        %v1599 = vpop.f32.mrb[0].mxu0
        %1600 = vmatprep.mubr.bf16.mxu0 0
        %1601 = vmatmul.mubr.bf16.gmra.mrb[0].mxu0 %v1453
        %v1602 = vpop.f32.mrb[0].mxu0
        %v1603 = vadd.f32 0.0, %v1602
        %v1604 = vpop.f32.mrb[0].mxu0
        %v1605 = vpop.f32.mrb[0].mxu0
        %v1606 = vadd.f32 0.0, %v1605
        %v1607 = vpop.f32.mrb[0].mxu0
        %1608 = vmatprep.mubr.bf16.mxu0 0
        %1609 = vmatmul.mubr.bf16.gmra.mrb[0].mxu0 %v1454
        %v1610 = vpop.f32.mrb[0].mxu0
        %v1611 = vadd.f32 0.0, %v1610
        %v1612 = vpop.f32.mrb[0].mxu0
        %v1613 = vpop.f32.mrb[0].mxu0
        %v1614 = vadd.f32 0.0, %v1613
        %v1615 = vpop.f32.mrb[0].mxu0
        %1616 = vmatprep.mubr.bf16.mxu0 0
        %1617 = vmatmul.mubr.bf16.gmra.mrb[0].mxu0 %v1455
        %v1618 = vpop.f32.mrb[0].mxu0
        %v1619 = vadd.f32 0.0, %v1618
        %v1620 = vpop.f32.mrb[0].mxu0
        %v1621 = vpop.f32.mrb[0].mxu0
        %v1622 = vadd.f32 0.0, %v1621
        %v1623 = vpop.f32.mrb[0].mxu0
        %1624 = vmatprep.mubr.bf16.mxu0 0
        %1625 = vmatmul.mubr.bf16.gmra.mrb[0].mxu0 %v1456
        %v1626 = vpop.f32.mrb[0].mxu0
        %v1627 = vadd.f32 0.0, %v1626
        %v1628 = vpop.f32.mrb[0].mxu0
        %v1629 = vpop.f32.mrb[0].mxu0
        %v1630 = vadd.f32 0.0, %v1629
        %v1631 = vpop.f32.mrb[0].mxu0
        %1632 = vmatprep.mubr.bf16.mxu0 0
        %1633 = vmatmul.mubr.bf16.gmra.mrb[0].mxu0 %v1457
        %v1634 = vpop.f32.mrb[0].mxu0
        %v1635 = vadd.f32 0.0, %v1634
        %v1636 = vpop.f32.mrb[0].mxu0
        %v1637 = vpop.f32.mrb[0].mxu0
        %v1638 = vadd.f32 0.0, %v1637
        %v1639 = vpop.f32.mrb[0].mxu0
        %1640 = vmatprep.mubr.bf16.mxu0 0
        %1641 = vmatmul.mubr.bf16.gmra.mrb[0].mxu0 %v1458
        %v1642 = vpop.f32.mrb[0].mxu0
        %v1643 = vadd.f32 0.0, %v1642
        %v1644 = vpop.f32.mrb[0].mxu0
        %v1645 = vpop.f32.mrb[0].mxu0
        %v1646 = vadd.f32 0.0, %v1645
        %v1647 = vpop.f32.mrb[0].mxu0
        %1648 = vmatprep.mubr.bf16.mxu0 0
        %1649 = vmatmul.mubr.bf16.gmra.mrb[0].mxu0 %v1459
        %v1650 = vpop.f32.mrb[0].mxu0
        %v1651 = vadd.f32 0.0, %v1650
        %v1652 = vpop.f32.mrb[0].mxu0
        %v1653 = vpop.f32.mrb[0].mxu0
        %v1654 = vadd.f32 0.0, %v1653
        %v1655 = vpop.f32.mrb[0].mxu0
        %1656 = vmatprep.mubr.bf16.mxu0 0
        %1657 = vmatmul.mubr.bf16.gmra.mrb[0].mxu0 %v1460
        %v1658 = vpop.f32.mrb[0].mxu0
        %v1659 = vadd.f32 0.0, %v1658
        %v1660 = vpop.f32.mrb[0].mxu0
        %v1661 = vpop.f32.mrb[0].mxu0
        %v1662 = vadd.f32 0.0, %v1661
        %v1663 = vpop.f32.mrb[0].mxu0
        %1664 = vmatprep.mubr.bf16.mxu0 0
        %1665 = vmatmul.mubr.bf16.gmra.mrb[0].mxu0 %v1461
        %v1666 = vpop.f32.mrb[0].mxu0
        %v1667 = vadd.f32 0.0, %v1666
        %v1668 = vpop.f32.mrb[0].mxu0
        %v1669 = vpop.f32.mrb[0].mxu0
        %v1670 = vadd.f32 0.0, %v1669
        %v1671 = vpop.f32.mrb[0].mxu0
        %1672 = vmatprep.mubr.bf16.mxu0 0
        %1673 = vmatmul.mubr.bf16.gmra.mrb[0].mxu0 %v1462
        %v1674 = vpop.f32.mrb[0].mxu0
        %v1675 = vadd.f32 0.0, %v1674
        %v1676 = vpop.f32.mrb[0].mxu0
        %v1677 = vpop.f32.mrb[0].mxu0
        %v1678 = vadd.f32 0.0, %v1677
        %v1679 = vpop.f32.mrb[0].mxu0
        %1680 = vmatprep.mubr.bf16.mxu0 0
        %1681 = vmatmul.mubr.bf16.gmra.mrb[0].mxu0 %v1463
        %v1682 = vpop.f32.mrb[0].mxu0
        %v1683 = vadd.f32 0.0, %v1682
        %v1684 = vpop.f32.mrb[0].mxu0
        %v1685 = vpop.f32.mrb[0].mxu0
        %v1686 = vadd.f32 0.0, %v1685
        %v1687 = vpop.f32.mrb[0].mxu0
        %1688 = vdwg.mxu0
        %v1689 = vadd.f32 %v1142, %v1563
        %v1690 = vadd.f32 %v1145, %v1566
        %v1691 = vadd.f32 %v1150, %v1571
        %v1692 = vadd.f32 %v1153, %v1574
        %v1693 = vadd.f32 %v1158, %v1579
        %v1694 = vadd.f32 %v1161, %v1582
        %v1695 = vadd.f32 %v1166, %v1587
        %v1696 = vadd.f32 %v1169, %v1590
        %v1697 = vadd.f32 %v1174, %v1595
        %v1698 = vadd.f32 %v1177, %v1598
        %v1699 = vadd.f32 %v1182, %v1603
        %v1700 = vadd.f32 %v1185, %v1606
        %v1701 = vadd.f32 %v1190, %v1611
        %v1702 = vadd.f32 %v1193, %v1614
        %v1703 = vadd.f32 %v1198, %v1619
        %v1704 = vadd.f32 %v1201, %v1622
        %v1705 = vadd.f32 %v1206, %v1627
        %v1706 = vadd.f32 %v1209, %v1630
        %v1707 = vadd.f32 %v1214, %v1635
        %v1708 = vadd.f32 %v1217, %v1638
        %v1709 = vadd.f32 %v1222, %v1643
        %v1710 = vadd.f32 %v1225, %v1646
        %v1711 = vadd.f32 %v1230, %v1651
        %v1712 = vadd.f32 %v1233, %v1654
        %v1713 = vadd.f32 %v1238, %v1659
        %v1714 = vadd.f32 %v1241, %v1662
        %v1715 = vadd.f32 %v1246, %v1667
        %v1716 = vadd.f32 %v1249, %v1670
        %v1717 = vadd.f32 %v1254, %v1675
        %v1718 = vadd.f32 %v1257, %v1678
        %v1719 = vadd.f32 %v1262, %v1683
        %v1720 = vadd.f32 %v1265, %v1686
        %s1721 = scalar_lea.vmem [#allocation5], 192
        %v1722 = vld [vmem:[%s1721] sm:$0xf]
        %v1723 = vld [vmem:[%s1721 + $0x4] sm:$0xf]
        %v1724 = vld [vmem:[%s1721 + $0x8] sm:$0xf]
        %v1725 = vld [vmem:[%s1721 + $0xc] sm:$0xf]
        %v1726 = vld [vmem:[%s1721 + $0x10] sm:$0xf]
        %v1727 = vld [vmem:[%s1721 + $0x14] sm:$0xf]
        %v1728 = vld [vmem:[%s1721 + $0x18] sm:$0xf]
        %v1729 = vld [vmem:[%s1721 + $0x1c] sm:$0xf]
        %v1730 = vld [vmem:[%s1721 + $0x20] sm:$0xf]
        %v1731 = vld [vmem:[%s1721 + $0x24] sm:$0xf]
        %v1732 = vld [vmem:[%s1721 + $0x28] sm:$0xf]
        %v1733 = vld [vmem:[%s1721 + $0x2c] sm:$0xf]
        %v1734 = vld [vmem:[%s1721 + $0x30] sm:$0xf]
        %v1735 = vld [vmem:[%s1721 + $0x34] sm:$0xf]
        %v1736 = vld [vmem:[%s1721 + $0x38] sm:$0xf]
        %v1737 = vld [vmem:[%s1721 + $0x3c] sm:$0xf]
        %v1740 = vunpack.c.l.b16 %v264
        %v1741 = vunpack.c.l.b16 %v265
        %v1742 = vpack.c.b16 %v1741, %v1740
        %v1760 = vunpack.c.l.b16 %v1722
        %v1761 = vunpack.c.l.b16 %v1723
        %v1762 = vunpack.c.l.b16 %v1724
        %v1763 = vunpack.c.l.b16 %v1725
        %v1764 = vunpack.c.l.b16 %v1726
        %v1765 = vunpack.c.l.b16 %v1727
        %v1766 = vunpack.c.l.b16 %v1728
        %v1767 = vunpack.c.l.b16 %v1729
        %v1768 = vunpack.c.l.b16 %v1730
        %v1769 = vunpack.c.l.b16 %v1731
        %v1770 = vunpack.c.l.b16 %v1732
        %v1771 = vunpack.c.l.b16 %v1733
        %v1772 = vunpack.c.l.b16 %v1734
        %v1773 = vunpack.c.l.b16 %v1735
        %v1774 = vunpack.c.l.b16 %v1736
        %v1775 = vunpack.c.l.b16 %v1737
        %v1776 = vpack.c.b16 %v1761, %v1760
        %v1777 = vpack.c.b16 %v1763, %v1762
        %v1778 = vpack.c.b16 %v1765, %v1764
        %v1779 = vpack.c.b16 %v1767, %v1766
        %v1780 = vpack.c.b16 %v1769, %v1768
        %v1781 = vpack.c.b16 %v1771, %v1770
        %v1782 = vpack.c.b16 %v1773, %v1772
        %v1783 = vpack.c.b16 %v1775, %v1774
        %1792 = vmatprep.subr.bf16.mxu0 0
        %1793 = vmatpush1.bf16.msra.mxu0 %v1776
        %1794 = vmatprep.subr.bf16.mxu0 0
        %1795 = vmatpush1.bf16.msra.mxu0 %v1777
        %1796 = vmatprep.subr.bf16.mxu0 0
        %1797 = vmatpush1.bf16.msra.mxu0 %v1778
        %1798 = vmatprep.subr.bf16.mxu0 0
        %1799 = vmatpush1.bf16.msra.mxu0 %v1779
        %1800 = vmatprep.subr.bf16.mxu0 0
        %1801 = vmatpush1.bf16.msra.mxu0 %v1780
        %1802 = vmatprep.subr.bf16.mxu0 0
        %1803 = vmatpush1.bf16.msra.mxu0 %v1781
        %1804 = vmatprep.subr.bf16.mxu0 0
        %1805 = vmatpush1.bf16.msra.mxu0 %v1782
        %1806 = vmatprep.subr.bf16.mxu0 0
        %1807 = vmatpush1.bf16.msra.mxu0 %v1783
        %1808 = vmatprep.subr.bf16.mxu0 0
        %1809 = vmatpush1.bf16.msra.mxu0 0
        %1810 = vmatprep.subr.bf16.mxu0 0
        %1811 = vmatpush1.bf16.msra.mxu0 0
        %1812 = vmatprep.subr.bf16.mxu0 0
        %1813 = vmatpush1.bf16.msra.mxu0 0
        %1814 = vmatprep.subr.bf16.mxu0 0
        %1815 = vmatpush1.bf16.msra.mxu0 0
        %1816 = vmatprep.subr.bf16.mxu0 0
        %1817 = vmatpush1.bf16.msra.mxu0 0
        %1818 = vmatprep.subr.bf16.mxu0 0
        %1819 = vmatpush1.bf16.msra.mxu0 0
        %1820 = vmatprep.subr.bf16.mxu0 0
        %1821 = vmatpush1.bf16.msra.mxu0 0
        %1822 = vmatprep.subr.bf16.mxu0 0
        %1823 = vmatpush1.bf16.msra.mxu0 0
        %1824 = vmatprep.mubr.bf16.mxu0 0
        %1825 = vmatmul.mubr.bf16.gmra.mrb[0].mxu0 %v1028
        %v1826 = vpop.f32.mrb[0].mxu0
        %v1827 = vadd.f32 0.0, %v1826
        %v1828 = vpop.f32.mrb[0].mxu0
        %v1829 = vpop.f32.mrb[0].mxu0
        %v1830 = vadd.f32 0.0, %v1829
        %v1831 = vpop.f32.mrb[0].mxu0
        %1832 = vmatprep.mubr.bf16.mxu0 0
        %1833 = vmatmul.mubr.bf16.gmra.mrb[0].mxu0 %v1029
        %v1834 = vpop.f32.mrb[0].mxu0
        %v1835 = vadd.f32 0.0, %v1834
        %v1836 = vpop.f32.mrb[0].mxu0
        %v1837 = vpop.f32.mrb[0].mxu0
        %v1838 = vadd.f32 0.0, %v1837
        %v1839 = vpop.f32.mrb[0].mxu0
        %1840 = vmatprep.mubr.bf16.mxu0 0
        %1841 = vmatmul.mubr.bf16.gmra.mrb[0].mxu0 %v1030
        %v1842 = vpop.f32.mrb[0].mxu0
        %v1843 = vadd.f32 0.0, %v1842
        %v1844 = vpop.f32.mrb[0].mxu0
        %v1845 = vpop.f32.mrb[0].mxu0
        %v1846 = vadd.f32 0.0, %v1845
        %v1847 = vpop.f32.mrb[0].mxu0
        %1848 = vmatprep.mubr.bf16.mxu0 0
        %1849 = vmatmul.mubr.bf16.gmra.mrb[0].mxu0 %v1031
        %v1850 = vpop.f32.mrb[0].mxu0
        %v1851 = vadd.f32 0.0, %v1850
        %v1852 = vpop.f32.mrb[0].mxu0
        %v1853 = vpop.f32.mrb[0].mxu0
        %v1854 = vadd.f32 0.0, %v1853
        %v1855 = vpop.f32.mrb[0].mxu0
        %1856 = vmatprep.mubr.bf16.mxu0 0
        %1857 = vmatmul.mubr.bf16.gmra.mrb[0].mxu0 %v1032
        %v1858 = vpop.f32.mrb[0].mxu0
        %v1859 = vadd.f32 0.0, %v1858
        %v1860 = vpop.f32.mrb[0].mxu0
        %v1861 = vpop.f32.mrb[0].mxu0
        %v1862 = vadd.f32 0.0, %v1861
        %v1863 = vpop.f32.mrb[0].mxu0
        %1864 = vmatprep.mubr.bf16.mxu0 0
        %1865 = vmatmul.mubr.bf16.gmra.mrb[0].mxu0 %v1033
        %v1866 = vpop.f32.mrb[0].mxu0
        %v1867 = vadd.f32 0.0, %v1866
        %v1868 = vpop.f32.mrb[0].mxu0
        %v1869 = vpop.f32.mrb[0].mxu0
        %v1870 = vadd.f32 0.0, %v1869
        %v1871 = vpop.f32.mrb[0].mxu0
        %1872 = vmatprep.mubr.bf16.mxu0 0
        %1873 = vmatmul.mubr.bf16.gmra.mrb[0].mxu0 %v1034
        %v1874 = vpop.f32.mrb[0].mxu0
        %v1875 = vadd.f32 0.0, %v1874
        %v1876 = vpop.f32.mrb[0].mxu0
        %v1877 = vpop.f32.mrb[0].mxu0
        %v1878 = vadd.f32 0.0, %v1877
        %v1879 = vpop.f32.mrb[0].mxu0
        %1880 = vmatprep.mubr.bf16.mxu0 0
        %1881 = vmatmul.mubr.bf16.gmra.mrb[0].mxu0 %v1035
        %v1882 = vpop.f32.mrb[0].mxu0
        %v1883 = vadd.f32 0.0, %v1882
        %v1884 = vpop.f32.mrb[0].mxu0
        %v1885 = vpop.f32.mrb[0].mxu0
        %v1886 = vadd.f32 0.0, %v1885
        %v1887 = vpop.f32.mrb[0].mxu0
        %1888 = vmatprep.mubr.bf16.mxu0 0
        %1889 = vmatmul.mubr.bf16.gmra.mrb[0].mxu0 %v1036
        %v1890 = vpop.f32.mrb[0].mxu0
        %v1891 = vadd.f32 0.0, %v1890
        %v1892 = vpop.f32.mrb[0].mxu0
        %v1893 = vpop.f32.mrb[0].mxu0
        %v1894 = vadd.f32 0.0, %v1893
        %v1895 = vpop.f32.mrb[0].mxu0
        %1896 = vmatprep.mubr.bf16.mxu0 0
        %1897 = vmatmul.mubr.bf16.gmra.mrb[0].mxu0 %v1037
        %v1898 = vpop.f32.mrb[0].mxu0
        %v1899 = vadd.f32 0.0, %v1898
        %v1900 = vpop.f32.mrb[0].mxu0
        %v1901 = vpop.f32.mrb[0].mxu0
        %v1902 = vadd.f32 0.0, %v1901
        %v1903 = vpop.f32.mrb[0].mxu0
        %1904 = vmatprep.mubr.bf16.mxu0 0
        %1905 = vmatmul.mubr.bf16.gmra.mrb[0].mxu0 %v1038
        %v1906 = vpop.f32.mrb[0].mxu0
        %v1907 = vadd.f32 0.0, %v1906
        %v1908 = vpop.f32.mrb[0].mxu0
        %v1909 = vpop.f32.mrb[0].mxu0
        %v1910 = vadd.f32 0.0, %v1909
        %v1911 = vpop.f32.mrb[0].mxu0
        %1912 = vmatprep.mubr.bf16.mxu0 0
        %1913 = vmatmul.mubr.bf16.gmra.mrb[0].mxu0 %v1039
        %v1914 = vpop.f32.mrb[0].mxu0
        %v1915 = vadd.f32 0.0, %v1914
        %v1916 = vpop.f32.mrb[0].mxu0
        %v1917 = vpop.f32.mrb[0].mxu0
        %v1918 = vadd.f32 0.0, %v1917
        %v1919 = vpop.f32.mrb[0].mxu0
        %1920 = vmatprep.mubr.bf16.mxu0 0
        %1921 = vmatmul.mubr.bf16.gmra.mrb[0].mxu0 %v1040
        %v1922 = vpop.f32.mrb[0].mxu0
        %v1923 = vadd.f32 0.0, %v1922
        %v1924 = vpop.f32.mrb[0].mxu0
        %v1925 = vpop.f32.mrb[0].mxu0
        %v1926 = vadd.f32 0.0, %v1925
        %v1927 = vpop.f32.mrb[0].mxu0
        %1928 = vmatprep.mubr.bf16.mxu0 0
        %1929 = vmatmul.mubr.bf16.gmra.mrb[0].mxu0 %v1041
        %v1930 = vpop.f32.mrb[0].mxu0
        %v1931 = vadd.f32 0.0, %v1930
        %v1932 = vpop.f32.mrb[0].mxu0
        %v1933 = vpop.f32.mrb[0].mxu0
        %v1934 = vadd.f32 0.0, %v1933
        %v1935 = vpop.f32.mrb[0].mxu0
        %1936 = vmatprep.mubr.bf16.mxu0 0
        %1937 = vmatmul.mubr.bf16.gmra.mrb[0].mxu0 %v1042
        %v1938 = vpop.f32.mrb[0].mxu0
        %v1939 = vadd.f32 0.0, %v1938
        %v1940 = vpop.f32.mrb[0].mxu0
        %v1941 = vpop.f32.mrb[0].mxu0
        %v1942 = vadd.f32 0.0, %v1941
        %v1943 = vpop.f32.mrb[0].mxu0
        %1944 = vmatprep.mubr.bf16.mxu0 0
        %1945 = vmatmul.mubr.bf16.gmra.mrb[0].mxu0 %v1742
        %v1946 = vpop.f32.mrb[0].mxu0
        %v1947 = vadd.f32 0.0, %v1946
        %v1948 = vpop.f32.mrb[0].mxu0
        %v1949 = vpop.f32.mrb[0].mxu0
        %v1950 = vadd.f32 0.0, %v1949
        %v1951 = vpop.f32.mrb[0].mxu0
        %1952 = vdwg.mxu0
        %v1953 = vadd.f32 %v1689, %v1827
        %v1954 = vadd.f32 %v1690, %v1830
        %v1955 = vadd.f32 %v1691, %v1835
        %v1956 = vadd.f32 %v1692, %v1838
        %v1957 = vadd.f32 %v1693, %v1843
        %v1958 = vadd.f32 %v1694, %v1846
        %v1959 = vadd.f32 %v1695, %v1851
        %v1960 = vadd.f32 %v1696, %v1854
        %v1961 = vadd.f32 %v1697, %v1859
        %v1962 = vadd.f32 %v1698, %v1862
        %v1963 = vadd.f32 %v1699, %v1867
        %v1964 = vadd.f32 %v1700, %v1870
        %v1965 = vadd.f32 %v1701, %v1875
        %v1966 = vadd.f32 %v1702, %v1878
        %v1967 = vadd.f32 %v1703, %v1883
        %v1968 = vadd.f32 %v1704, %v1886
        %v1969 = vadd.f32 %v1705, %v1891
        %v1970 = vadd.f32 %v1706, %v1894
        %v1971 = vadd.f32 %v1707, %v1899
        %v1972 = vadd.f32 %v1708, %v1902
        %v1973 = vadd.f32 %v1709, %v1907
        %v1974 = vadd.f32 %v1710, %v1910
        %v1975 = vadd.f32 %v1711, %v1915
        %v1976 = vadd.f32 %v1712, %v1918
        %v1977 = vadd.f32 %v1713, %v1923
        %v1978 = vadd.f32 %v1714, %v1926
        %v1979 = vadd.f32 %v1715, %v1931
        %v1980 = vadd.f32 %v1716, %v1934
        %v1981 = vadd.f32 %v1717, %v1939
        %v1982 = vadd.f32 %v1718, %v1942
        %v1983 = vadd.f32 %v1719, %v1947
        %v1984 = vadd.f32 %v1720, %v1950
        %v1986 = vshrl.u32 %v264, 16
        %v1988 = vrot.slane %v1986, 4
        %v1989 = vshll.u32 %v264, 16
        %v1991 = vrot.slane %v1989, 5
        %v1992 = vor.u32 %v1988, %v1991
        %v1993 = vrot.slane %v1992, 4
        %v1995 = vshll.u32 %v265, 16
        %v1997 = vrot.slane %v1995, 5
        %v1998 = vsel %vm288, %v1993, %v1997
        %v1999 = vshrl.u32 %v265, 16
        %v2001 = vrot.slane %v1999, 4
        %v2002 = vor.u32 %v2001, %v1997
        %v2003 = vrot.slane %v2002, 4
        %v2005 = vshll.u32 %v266, 16
        %v2007 = vrot.slane %v2005, 5
        %v2008 = vsel %vm288, %v2003, %v2007
        %s2009 = scalar_lea.vmem [#allocation5], 256
        %v2010 = vld [vmem:[%s2009] sm:$0xf]
        %v2011 = vld [vmem:[%s2009 + $0x4] sm:$0xf]
        %v2012 = vld [vmem:[%s2009 + $0x8] sm:$0xf]
        %v2013 = vld [vmem:[%s2009 + $0xc] sm:$0xf]
        %v2014 = vld [vmem:[%s2009 + $0x10] sm:$0xf]
        %v2015 = vld [vmem:[%s2009 + $0x14] sm:$0xf]
        %v2016 = vld [vmem:[%s2009 + $0x18] sm:$0xf]
        %v2017 = vld [vmem:[%s2009 + $0x1c] sm:$0xf]
        %v2018 = vld [vmem:[%s2009 + $0x20] sm:$0xf]
        %v2019 = vld [vmem:[%s2009 + $0x24] sm:$0xf]
        %v2020 = vld [vmem:[%s2009 + $0x28] sm:$0xf]
        %v2021 = vld [vmem:[%s2009 + $0x2c] sm:$0xf]
        %v2022 = vld [vmem:[%s2009 + $0x30] sm:$0xf]
        %v2023 = vld [vmem:[%s2009 + $0x34] sm:$0xf]
        %v2024 = vld [vmem:[%s2009 + $0x38] sm:$0xf]
        %v2025 = vld [vmem:[%s2009 + $0x3c] sm:$0xf]
        %v2026 = vunpack.c.l.b16 %v1998
        %v2027 = vunpack.c.l.b16 %v2008
        %v2028 = vpack.c.b16 %v2027, %v2026
        %v2046 = vunpack.c.l.b16 %v2010
        %v2047 = vunpack.c.l.b16 %v2011
        %v2048 = vunpack.c.l.b16 %v2012
        %v2049 = vunpack.c.l.b16 %v2013
        %v2050 = vunpack.c.l.b16 %v2014
        %v2051 = vunpack.c.l.b16 %v2015
        %v2052 = vunpack.c.l.b16 %v2016
        %v2053 = vunpack.c.l.b16 %v2017
        %v2054 = vunpack.c.l.b16 %v2018
        %v2055 = vunpack.c.l.b16 %v2019
        %v2056 = vunpack.c.l.b16 %v2020
        %v2057 = vunpack.c.l.b16 %v2021
        %v2058 = vunpack.c.l.b16 %v2022
        %v2059 = vunpack.c.l.b16 %v2023
        %v2060 = vunpack.c.l.b16 %v2024
        %v2061 = vunpack.c.l.b16 %v2025
        %v2062 = vpack.c.b16 %v2047, %v2046
        %v2063 = vpack.c.b16 %v2049, %v2048
        %v2064 = vpack.c.b16 %v2051, %v2050
        %v2065 = vpack.c.b16 %v2053, %v2052
        %v2066 = vpack.c.b16 %v2055, %v2054
        %v2067 = vpack.c.b16 %v2057, %v2056
        %v2068 = vpack.c.b16 %v2059, %v2058
        %v2069 = vpack.c.b16 %v2061, %v2060
        %2078 = vmatprep.subr.bf16.mxu0 0
        %2079 = vmatpush1.bf16.msra.mxu0 %v2062
        %2080 = vmatprep.subr.bf16.mxu0 0
        %2081 = vmatpush1.bf16.msra.mxu0 %v2063
        %2082 = vmatprep.subr.bf16.mxu0 0
        %2083 = vmatpush1.bf16.msra.mxu0 %v2064
        %2084 = vmatprep.subr.bf16.mxu0 0
        %2085 = vmatpush1.bf16.msra.mxu0 %v2065
        %2086 = vmatprep.subr.bf16.mxu0 0
        %2087 = vmatpush1.bf16.msra.mxu0 %v2066
        %2088 = vmatprep.subr.bf16.mxu0 0
        %2089 = vmatpush1.bf16.msra.mxu0 %v2067
        %2090 = vmatprep.subr.bf16.mxu0 0
        %2091 = vmatpush1.bf16.msra.mxu0 %v2068
        %2092 = vmatprep.subr.bf16.mxu0 0
        %2093 = vmatpush1.bf16.msra.mxu0 %v2069
        %2094 = vmatprep.subr.bf16.mxu0 0
        %2095 = vmatpush1.bf16.msra.mxu0 0
        %2096 = vmatprep.subr.bf16.mxu0 0
        %2097 = vmatpush1.bf16.msra.mxu0 0
        %2098 = vmatprep.subr.bf16.mxu0 0
        %2099 = vmatpush1.bf16.msra.mxu0 0
        %2100 = vmatprep.subr.bf16.mxu0 0
        %2101 = vmatpush1.bf16.msra.mxu0 0
        %2102 = vmatprep.subr.bf16.mxu0 0
        %2103 = vmatpush1.bf16.msra.mxu0 0
        %2104 = vmatprep.subr.bf16.mxu0 0
        %2105 = vmatpush1.bf16.msra.mxu0 0
        %2106 = vmatprep.subr.bf16.mxu0 0
        %2107 = vmatpush1.bf16.msra.mxu0 0
        %2108 = vmatprep.subr.bf16.mxu0 0
        %2109 = vmatpush1.bf16.msra.mxu0 0
        %2110 = vmatprep.mubr.bf16.mxu0 0
        %2111 = vmatmul.mubr.bf16.gmra.mrb[0].mxu0 %v723
        %v2112 = vpop.f32.mrb[0].mxu0
        %v2113 = vadd.f32 0.0, %v2112
        %v2114 = vpop.f32.mrb[0].mxu0
        %v2115 = vpop.f32.mrb[0].mxu0
        %v2116 = vadd.f32 0.0, %v2115
        %v2117 = vpop.f32.mrb[0].mxu0
        %2118 = vmatprep.mubr.bf16.mxu0 0
        %2119 = vmatmul.mubr.bf16.gmra.mrb[0].mxu0 %v724
        %v2120 = vpop.f32.mrb[0].mxu0
        %v2121 = vadd.f32 0.0, %v2120
        %v2122 = vpop.f32.mrb[0].mxu0
        %v2123 = vpop.f32.mrb[0].mxu0
        %v2124 = vadd.f32 0.0, %v2123
        %v2125 = vpop.f32.mrb[0].mxu0
        %2126 = vmatprep.mubr.bf16.mxu0 0
        %2127 = vmatmul.mubr.bf16.gmra.mrb[0].mxu0 %v725
        %v2128 = vpop.f32.mrb[0].mxu0
        %v2129 = vadd.f32 0.0, %v2128
        %v2130 = vpop.f32.mrb[0].mxu0
        %v2131 = vpop.f32.mrb[0].mxu0
        %v2132 = vadd.f32 0.0, %v2131
        %v2133 = vpop.f32.mrb[0].mxu0
        %2134 = vmatprep.mubr.bf16.mxu0 0
        %2135 = vmatmul.mubr.bf16.gmra.mrb[0].mxu0 %v726
        %v2136 = vpop.f32.mrb[0].mxu0
        %v2137 = vadd.f32 0.0, %v2136
        %v2138 = vpop.f32.mrb[0].mxu0
        %v2139 = vpop.f32.mrb[0].mxu0
        %v2140 = vadd.f32 0.0, %v2139
        %v2141 = vpop.f32.mrb[0].mxu0
        %2142 = vmatprep.mubr.bf16.mxu0 0
        %2143 = vmatmul.mubr.bf16.gmra.mrb[0].mxu0 %v727
        %v2144 = vpop.f32.mrb[0].mxu0
        %v2145 = vadd.f32 0.0, %v2144
        %v2146 = vpop.f32.mrb[0].mxu0
        %v2147 = vpop.f32.mrb[0].mxu0
        %v2148 = vadd.f32 0.0, %v2147
        %v2149 = vpop.f32.mrb[0].mxu0
        %2150 = vmatprep.mubr.bf16.mxu0 0
        %2151 = vmatmul.mubr.bf16.gmra.mrb[0].mxu0 %v728
        %v2152 = vpop.f32.mrb[0].mxu0
        %v2153 = vadd.f32 0.0, %v2152
        %v2154 = vpop.f32.mrb[0].mxu0
        %v2155 = vpop.f32.mrb[0].mxu0
        %v2156 = vadd.f32 0.0, %v2155
        %v2157 = vpop.f32.mrb[0].mxu0
        %2158 = vmatprep.mubr.bf16.mxu0 0
        %2159 = vmatmul.mubr.bf16.gmra.mrb[0].mxu0 %v729
        %v2160 = vpop.f32.mrb[0].mxu0
        %v2161 = vadd.f32 0.0, %v2160
        %v2162 = vpop.f32.mrb[0].mxu0
        %v2163 = vpop.f32.mrb[0].mxu0
        %v2164 = vadd.f32 0.0, %v2163
        %v2165 = vpop.f32.mrb[0].mxu0
        %2166 = vmatprep.mubr.bf16.mxu0 0
        %2167 = vmatmul.mubr.bf16.gmra.mrb[0].mxu0 %v730
        %v2168 = vpop.f32.mrb[0].mxu0
        %v2169 = vadd.f32 0.0, %v2168
        %v2170 = vpop.f32.mrb[0].mxu0
        %v2171 = vpop.f32.mrb[0].mxu0
        %v2172 = vadd.f32 0.0, %v2171
        %v2173 = vpop.f32.mrb[0].mxu0
        %2174 = vmatprep.mubr.bf16.mxu0 0
        %2175 = vmatmul.mubr.bf16.gmra.mrb[0].mxu0 %v731
        %v2176 = vpop.f32.mrb[0].mxu0
        %v2177 = vadd.f32 0.0, %v2176
        %v2178 = vpop.f32.mrb[0].mxu0
        %v2179 = vpop.f32.mrb[0].mxu0
        %v2180 = vadd.f32 0.0, %v2179
        %v2181 = vpop.f32.mrb[0].mxu0
        %2182 = vmatprep.mubr.bf16.mxu0 0
        %2183 = vmatmul.mubr.bf16.gmra.mrb[0].mxu0 %v732
        %v2184 = vpop.f32.mrb[0].mxu0
        %v2185 = vadd.f32 0.0, %v2184
        %v2186 = vpop.f32.mrb[0].mxu0
        %v2187 = vpop.f32.mrb[0].mxu0
        %v2188 = vadd.f32 0.0, %v2187
        %v2189 = vpop.f32.mrb[0].mxu0
        %2190 = vmatprep.mubr.bf16.mxu0 0
        %2191 = vmatmul.mubr.bf16.gmra.mrb[0].mxu0 %v733
        %v2192 = vpop.f32.mrb[0].mxu0
        %v2193 = vadd.f32 0.0, %v2192
        %v2194 = vpop.f32.mrb[0].mxu0
        %v2195 = vpop.f32.mrb[0].mxu0
        %v2196 = vadd.f32 0.0, %v2195
        %v2197 = vpop.f32.mrb[0].mxu0
        %2198 = vmatprep.mubr.bf16.mxu0 0
        %2199 = vmatmul.mubr.bf16.gmra.mrb[0].mxu0 %v734
        %v2200 = vpop.f32.mrb[0].mxu0
        %v2201 = vadd.f32 0.0, %v2200
        %v2202 = vpop.f32.mrb[0].mxu0
        %v2203 = vpop.f32.mrb[0].mxu0
        %v2204 = vadd.f32 0.0, %v2203
        %v2205 = vpop.f32.mrb[0].mxu0
        %2206 = vmatprep.mubr.bf16.mxu0 0
        %2207 = vmatmul.mubr.bf16.gmra.mrb[0].mxu0 %v735
        %v2208 = vpop.f32.mrb[0].mxu0
        %v2209 = vadd.f32 0.0, %v2208
        %v2210 = vpop.f32.mrb[0].mxu0
        %v2211 = vpop.f32.mrb[0].mxu0
        %v2212 = vadd.f32 0.0, %v2211
        %v2213 = vpop.f32.mrb[0].mxu0
        %2214 = vmatprep.mubr.bf16.mxu0 0
        %2215 = vmatmul.mubr.bf16.gmra.mrb[0].mxu0 %v736
        %v2216 = vpop.f32.mrb[0].mxu0
        %v2217 = vadd.f32 0.0, %v2216
        %v2218 = vpop.f32.mrb[0].mxu0
        %v2219 = vpop.f32.mrb[0].mxu0
        %v2220 = vadd.f32 0.0, %v2219
        %v2221 = vpop.f32.mrb[0].mxu0
        %2222 = vmatprep.mubr.bf16.mxu0 0
        %2223 = vmatmul.mubr.bf16.gmra.mrb[0].mxu0 %v737
        %v2224 = vpop.f32.mrb[0].mxu0
        %v2225 = vadd.f32 0.0, %v2224
        %v2226 = vpop.f32.mrb[0].mxu0
        %v2227 = vpop.f32.mrb[0].mxu0
        %v2228 = vadd.f32 0.0, %v2227
        %v2229 = vpop.f32.mrb[0].mxu0
        %2230 = vmatprep.mubr.bf16.mxu0 0
        %2231 = vmatmul.mubr.bf16.gmra.mrb[0].mxu0 %v2028
        %v2232 = vpop.f32.mrb[0].mxu0
        %v2233 = vadd.f32 0.0, %v2232
        %v2234 = vpop.f32.mrb[0].mxu0
        %v2235 = vpop.f32.mrb[0].mxu0
        %v2236 = vadd.f32 0.0, %v2235
        %v2237 = vpop.f32.mrb[0].mxu0
        %2238 = vdwg.mxu0
        %v2239 = vadd.f32 %v1953, %v2113
        %v2240 = vadd.f32 %v1954, %v2116
        %v2241 = vadd.f32 %v1955, %v2121
        %v2242 = vadd.f32 %v1956, %v2124
        %v2243 = vadd.f32 %v1957, %v2129
        %v2244 = vadd.f32 %v1958, %v2132
        %v2245 = vadd.f32 %v1959, %v2137
        %v2246 = vadd.f32 %v1960, %v2140
        %v2247 = vadd.f32 %v1961, %v2145
        %v2248 = vadd.f32 %v1962, %v2148
        %v2249 = vadd.f32 %v1963, %v2153
        %v2250 = vadd.f32 %v1964, %v2156
        %v2251 = vadd.f32 %v1965, %v2161
        %v2252 = vadd.f32 %v1966, %v2164
        %v2253 = vadd.f32 %v1967, %v2169
        %v2254 = vadd.f32 %v1968, %v2172
        %v2255 = vadd.f32 %v1969, %v2177
        %v2256 = vadd.f32 %v1970, %v2180
        %v2257 = vadd.f32 %v1971, %v2185
        %v2258 = vadd.f32 %v1972, %v2188
        %v2259 = vadd.f32 %v1973, %v2193
        %v2260 = vadd.f32 %v1974, %v2196
        %v2261 = vadd.f32 %v1975, %v2201
        %v2262 = vadd.f32 %v1976, %v2204
        %v2263 = vadd.f32 %v1977, %v2209
        %v2264 = vadd.f32 %v1978, %v2212
        %v2265 = vadd.f32 %v1979, %v2217
        %v2266 = vadd.f32 %v1980, %v2220
        %v2267 = vadd.f32 %v1981, %v2225
        %v2268 = vadd.f32 %v1982, %v2228
        %v2269 = vadd.f32 %v1983, %v2233
        %v2270 = vadd.f32 %v1984, %v2236
        %v2272 = vrot.slane %v264, 5
        %v2273 = vrot.slane %v2272, 4
        %v2274 = vrot.slane %v265, 5
        %v2275 = vsel %vm1286, %v2273, %v2274
        %v2276 = vrot.slane %v2274, 4
        %v2277 = vrot.slane %v266, 5
        %v2278 = vsel %vm1286, %v2276, %v2277
        %s2279 = scalar_lea.vmem [#allocation5], 320
        %v2280 = vld [vmem:[%s2279] sm:$0xf]
        %v2281 = vld [vmem:[%s2279 + $0x4] sm:$0xf]
        %v2282 = vld [vmem:[%s2279 + $0x8] sm:$0xf]
        %v2283 = vld [vmem:[%s2279 + $0xc] sm:$0xf]
        %v2284 = vld [vmem:[%s2279 + $0x10] sm:$0xf]
        %v2285 = vld [vmem:[%s2279 + $0x14] sm:$0xf]
        %v2286 = vld [vmem:[%s2279 + $0x18] sm:$0xf]
        %v2287 = vld [vmem:[%s2279 + $0x1c] sm:$0xf]
        %v2288 = vld [vmem:[%s2279 + $0x20] sm:$0xf]
        %v2289 = vld [vmem:[%s2279 + $0x24] sm:$0xf]
        %v2290 = vld [vmem:[%s2279 + $0x28] sm:$0xf]
        %v2291 = vld [vmem:[%s2279 + $0x2c] sm:$0xf]
        %v2292 = vld [vmem:[%s2279 + $0x30] sm:$0xf]
        %v2293 = vld [vmem:[%s2279 + $0x34] sm:$0xf]
        %v2294 = vld [vmem:[%s2279 + $0x38] sm:$0xf]
        %v2295 = vld [vmem:[%s2279 + $0x3c] sm:$0xf]
        %v2296 = vunpack.c.l.b16 %v2275
        %v2297 = vunpack.c.l.b16 %v2278
        %v2298 = vpack.c.b16 %v2297, %v2296
        %v2316 = vunpack.c.l.b16 %v2280
        %v2317 = vunpack.c.l.b16 %v2281
        %v2318 = vunpack.c.l.b16 %v2282
        %v2319 = vunpack.c.l.b16 %v2283
        %v2320 = vunpack.c.l.b16 %v2284
        %v2321 = vunpack.c.l.b16 %v2285
        %v2322 = vunpack.c.l.b16 %v2286
        %v2323 = vunpack.c.l.b16 %v2287
        %v2324 = vunpack.c.l.b16 %v2288
        %v2325 = vunpack.c.l.b16 %v2289
        %v2326 = vunpack.c.l.b16 %v2290
        %v2327 = vunpack.c.l.b16 %v2291
        %v2328 = vunpack.c.l.b16 %v2292
        %v2329 = vunpack.c.l.b16 %v2293
        %v2330 = vunpack.c.l.b16 %v2294
        %v2331 = vunpack.c.l.b16 %v2295
        %v2332 = vpack.c.b16 %v2317, %v2316
        %v2333 = vpack.c.b16 %v2319, %v2318
        %v2334 = vpack.c.b16 %v2321, %v2320
        %v2335 = vpack.c.b16 %v2323, %v2322
        %v2336 = vpack.c.b16 %v2325, %v2324
        %v2337 = vpack.c.b16 %v2327, %v2326
        %v2338 = vpack.c.b16 %v2329, %v2328
        %v2339 = vpack.c.b16 %v2331, %v2330
        %2348 = vmatprep.subr.bf16.mxu0 0
        %2349 = vmatpush1.bf16.msra.mxu0 %v2332
        %2350 = vmatprep.subr.bf16.mxu0 0
        %2351 = vmatpush1.bf16.msra.mxu0 %v2333
        %2352 = vmatprep.subr.bf16.mxu0 0
        %2353 = vmatpush1.bf16.msra.mxu0 %v2334
        %2354 = vmatprep.subr.bf16.mxu0 0
        %2355 = vmatpush1.bf16.msra.mxu0 %v2335
        %2356 = vmatprep.subr.bf16.mxu0 0
        %2357 = vmatpush1.bf16.msra.mxu0 %v2336
        %2358 = vmatprep.subr.bf16.mxu0 0
        %2359 = vmatpush1.bf16.msra.mxu0 %v2337
        %2360 = vmatprep.subr.bf16.mxu0 0
        %2361 = vmatpush1.bf16.msra.mxu0 %v2338
        %2362 = vmatprep.subr.bf16.mxu0 0
        %2363 = vmatpush1.bf16.msra.mxu0 %v2339
        %2364 = vmatprep.subr.bf16.mxu0 0
        %2365 = vmatpush1.bf16.msra.mxu0 0
        %2366 = vmatprep.subr.bf16.mxu0 0
        %2367 = vmatpush1.bf16.msra.mxu0 0
        %2368 = vmatprep.subr.bf16.mxu0 0
        %2369 = vmatpush1.bf16.msra.mxu0 0
        %2370 = vmatprep.subr.bf16.mxu0 0
        %2371 = vmatpush1.bf16.msra.mxu0 0
        %2372 = vmatprep.subr.bf16.mxu0 0
        %2373 = vmatpush1.bf16.msra.mxu0 0
        %2374 = vmatprep.subr.bf16.mxu0 0
        %2375 = vmatpush1.bf16.msra.mxu0 0
        %2376 = vmatprep.subr.bf16.mxu0 0
        %2377 = vmatpush1.bf16.msra.mxu0 0
        %2378 = vmatprep.subr.bf16.mxu0 0
        %2379 = vmatpush1.bf16.msra.mxu0 0
        %2380 = vmatprep.mubr.bf16.mxu0 0
        %2381 = vmatmul.mubr.bf16.gmra.mrb[0].mxu0 %v1449
        %v2382 = vpop.f32.mrb[0].mxu0
        %v2383 = vadd.f32 0.0, %v2382
        %v2384 = vpop.f32.mrb[0].mxu0
        %v2385 = vpop.f32.mrb[0].mxu0
        %v2386 = vadd.f32 0.0, %v2385
        %v2387 = vpop.f32.mrb[0].mxu0
        %2388 = vmatprep.mubr.bf16.mxu0 0
        %2389 = vmatmul.mubr.bf16.gmra.mrb[0].mxu0 %v1450
        %v2390 = vpop.f32.mrb[0].mxu0
        %v2391 = vadd.f32 0.0, %v2390
        %v2392 = vpop.f32.mrb[0].mxu0
        %v2393 = vpop.f32.mrb[0].mxu0
        %v2394 = vadd.f32 0.0, %v2393
        %v2395 = vpop.f32.mrb[0].mxu0
        %2396 = vmatprep.mubr.bf16.mxu0 0
        %2397 = vmatmul.mubr.bf16.gmra.mrb[0].mxu0 %v1451
        %v2398 = vpop.f32.mrb[0].mxu0
        %v2399 = vadd.f32 0.0, %v2398
        %v2400 = vpop.f32.mrb[0].mxu0
        %v2401 = vpop.f32.mrb[0].mxu0
        %v2402 = vadd.f32 0.0, %v2401
        %v2403 = vpop.f32.mrb[0].mxu0
        %2404 = vmatprep.mubr.bf16.mxu0 0
        %2405 = vmatmul.mubr.bf16.gmra.mrb[0].mxu0 %v1452
        %v2406 = vpop.f32.mrb[0].mxu0
        %v2407 = vadd.f32 0.0, %v2406
        %v2408 = vpop.f32.mrb[0].mxu0
        %v2409 = vpop.f32.mrb[0].mxu0
        %v2410 = vadd.f32 0.0, %v2409
        %v2411 = vpop.f32.mrb[0].mxu0
        %2412 = vmatprep.mubr.bf16.mxu0 0
        %2413 = vmatmul.mubr.bf16.gmra.mrb[0].mxu0 %v1453
        %v2414 = vpop.f32.mrb[0].mxu0
        %v2415 = vadd.f32 0.0, %v2414
        %v2416 = vpop.f32.mrb[0].mxu0
        %v2417 = vpop.f32.mrb[0].mxu0
        %v2418 = vadd.f32 0.0, %v2417
        %v2419 = vpop.f32.mrb[0].mxu0
        %2420 = vmatprep.mubr.bf16.mxu0 0
        %2421 = vmatmul.mubr.bf16.gmra.mrb[0].mxu0 %v1454
        %v2422 = vpop.f32.mrb[0].mxu0
        %v2423 = vadd.f32 0.0, %v2422
        %v2424 = vpop.f32.mrb[0].mxu0
        %v2425 = vpop.f32.mrb[0].mxu0
        %v2426 = vadd.f32 0.0, %v2425
        %v2427 = vpop.f32.mrb[0].mxu0
        %2428 = vmatprep.mubr.bf16.mxu0 0
        %2429 = vmatmul.mubr.bf16.gmra.mrb[0].mxu0 %v1455
        %v2430 = vpop.f32.mrb[0].mxu0
        %v2431 = vadd.f32 0.0, %v2430
        %v2432 = vpop.f32.mrb[0].mxu0
        %v2433 = vpop.f32.mrb[0].mxu0
        %v2434 = vadd.f32 0.0, %v2433
        %v2435 = vpop.f32.mrb[0].mxu0
        %2436 = vmatprep.mubr.bf16.mxu0 0
        %2437 = vmatmul.mubr.bf16.gmra.mrb[0].mxu0 %v1456
        %v2438 = vpop.f32.mrb[0].mxu0
        %v2439 = vadd.f32 0.0, %v2438
        %v2440 = vpop.f32.mrb[0].mxu0
        %v2441 = vpop.f32.mrb[0].mxu0
        %v2442 = vadd.f32 0.0, %v2441
        %v2443 = vpop.f32.mrb[0].mxu0
        %2444 = vmatprep.mubr.bf16.mxu0 0
        %2445 = vmatmul.mubr.bf16.gmra.mrb[0].mxu0 %v1457
        %v2446 = vpop.f32.mrb[0].mxu0
        %v2447 = vadd.f32 0.0, %v2446
        %v2448 = vpop.f32.mrb[0].mxu0
        %v2449 = vpop.f32.mrb[0].mxu0
        %v2450 = vadd.f32 0.0, %v2449
        %v2451 = vpop.f32.mrb[0].mxu0
        %2452 = vmatprep.mubr.bf16.mxu0 0
        %2453 = vmatmul.mubr.bf16.gmra.mrb[0].mxu0 %v1458
        %v2454 = vpop.f32.mrb[0].mxu0
        %v2455 = vadd.f32 0.0, %v2454
        %v2456 = vpop.f32.mrb[0].mxu0
        %v2457 = vpop.f32.mrb[0].mxu0
        %v2458 = vadd.f32 0.0, %v2457
        %v2459 = vpop.f32.mrb[0].mxu0
        %2460 = vmatprep.mubr.bf16.mxu0 0
        %2461 = vmatmul.mubr.bf16.gmra.mrb[0].mxu0 %v1459
        %v2462 = vpop.f32.mrb[0].mxu0
        %v2463 = vadd.f32 0.0, %v2462
        %v2464 = vpop.f32.mrb[0].mxu0
        %v2465 = vpop.f32.mrb[0].mxu0
        %v2466 = vadd.f32 0.0, %v2465
        %v2467 = vpop.f32.mrb[0].mxu0
        %2468 = vmatprep.mubr.bf16.mxu0 0
        %2469 = vmatmul.mubr.bf16.gmra.mrb[0].mxu0 %v1460
        %v2470 = vpop.f32.mrb[0].mxu0
        %v2471 = vadd.f32 0.0, %v2470
        %v2472 = vpop.f32.mrb[0].mxu0
        %v2473 = vpop.f32.mrb[0].mxu0
        %v2474 = vadd.f32 0.0, %v2473
        %v2475 = vpop.f32.mrb[0].mxu0
        %2476 = vmatprep.mubr.bf16.mxu0 0
        %2477 = vmatmul.mubr.bf16.gmra.mrb[0].mxu0 %v1461
        %v2478 = vpop.f32.mrb[0].mxu0
        %v2479 = vadd.f32 0.0, %v2478
        %v2480 = vpop.f32.mrb[0].mxu0
        %v2481 = vpop.f32.mrb[0].mxu0
        %v2482 = vadd.f32 0.0, %v2481
        %v2483 = vpop.f32.mrb[0].mxu0
        %2484 = vmatprep.mubr.bf16.mxu0 0
        %2485 = vmatmul.mubr.bf16.gmra.mrb[0].mxu0 %v1462
        %v2486 = vpop.f32.mrb[0].mxu0
        %v2487 = vadd.f32 0.0, %v2486
        %v2488 = vpop.f32.mrb[0].mxu0
        %v2489 = vpop.f32.mrb[0].mxu0
        %v2490 = vadd.f32 0.0, %v2489
        %v2491 = vpop.f32.mrb[0].mxu0
        %2492 = vmatprep.mubr.bf16.mxu0 0
        %2493 = vmatmul.mubr.bf16.gmra.mrb[0].mxu0 %v1463
        %v2494 = vpop.f32.mrb[0].mxu0
        %v2495 = vadd.f32 0.0, %v2494
        %v2496 = vpop.f32.mrb[0].mxu0
        %v2497 = vpop.f32.mrb[0].mxu0
        %v2498 = vadd.f32 0.0, %v2497
        %v2499 = vpop.f32.mrb[0].mxu0
        %2500 = vmatprep.mubr.bf16.mxu0 0
        %2501 = vmatmul.mubr.bf16.gmra.mrb[0].mxu0 %v2298
        %v2502 = vpop.f32.mrb[0].mxu0
        %v2503 = vadd.f32 0.0, %v2502
        %v2504 = vpop.f32.mrb[0].mxu0
        %v2505 = vpop.f32.mrb[0].mxu0
        %v2506 = vadd.f32 0.0, %v2505
        %v2507 = vpop.f32.mrb[0].mxu0
        %2508 = vdwg.mxu0
        %v2509 = vadd.f32 %v2239, %v2383
        %v2510 = vadd.f32 %v2240, %v2386
        %v2511 = vadd.f32 %v2241, %v2391
        %v2512 = vadd.f32 %v2242, %v2394
        %v2513 = vadd.f32 %v2243, %v2399
        %v2514 = vadd.f32 %v2244, %v2402
        %v2515 = vadd.f32 %v2245, %v2407
        %v2516 = vadd.f32 %v2246, %v2410
        %v2517 = vadd.f32 %v2247, %v2415
        %v2518 = vadd.f32 %v2248, %v2418
        %v2519 = vadd.f32 %v2249, %v2423
        %v2520 = vadd.f32 %v2250, %v2426
        %v2521 = vadd.f32 %v2251, %v2431
        %v2522 = vadd.f32 %v2252, %v2434
        %v2523 = vadd.f32 %v2253, %v2439
        %v2524 = vadd.f32 %v2254, %v2442
        %v2525 = vadd.f32 %v2255, %v2447
        %v2526 = vadd.f32 %v2256, %v2450
        %v2527 = vadd.f32 %v2257, %v2455
        %v2528 = vadd.f32 %v2258, %v2458
        %v2529 = vadd.f32 %v2259, %v2463
        %v2530 = vadd.f32 %v2260, %v2466
        %v2531 = vadd.f32 %v2261, %v2471
        %v2532 = vadd.f32 %v2262, %v2474
        %v2533 = vadd.f32 %v2263, %v2479
        %v2534 = vadd.f32 %v2264, %v2482
        %v2535 = vadd.f32 %v2265, %v2487
        %v2536 = vadd.f32 %v2266, %v2490
        %v2537 = vadd.f32 %v2267, %v2495
        %v2538 = vadd.f32 %v2268, %v2498
        %v2539 = vadd.f32 %v2269, %v2503
        %v2540 = vadd.f32 %v2270, %v2506
        %s2541 = scalar_lea.vmem [#allocation5], 384
        %v2542 = vld [vmem:[%s2541] sm:$0xf]
        %v2543 = vld [vmem:[%s2541 + $0x4] sm:$0xf]
        %v2544 = vld [vmem:[%s2541 + $0x8] sm:$0xf]
        %v2545 = vld [vmem:[%s2541 + $0xc] sm:$0xf]
        %v2546 = vld [vmem:[%s2541 + $0x10] sm:$0xf]
        %v2547 = vld [vmem:[%s2541 + $0x14] sm:$0xf]
        %v2548 = vld [vmem:[%s2541 + $0x18] sm:$0xf]
        %v2549 = vld [vmem:[%s2541 + $0x1c] sm:$0xf]
        %v2550 = vld [vmem:[%s2541 + $0x20] sm:$0xf]
        %v2551 = vld [vmem:[%s2541 + $0x24] sm:$0xf]
        %v2552 = vld [vmem:[%s2541 + $0x28] sm:$0xf]
        %v2553 = vld [vmem:[%s2541 + $0x2c] sm:$0xf]
        %v2554 = vld [vmem:[%s2541 + $0x30] sm:$0xf]
        %v2555 = vld [vmem:[%s2541 + $0x34] sm:$0xf]
        %v2556 = vld [vmem:[%s2541 + $0x38] sm:$0xf]
        %v2557 = vld [vmem:[%s2541 + $0x3c] sm:$0xf]
        %v2560 = vunpack.c.l.b16 %v267
        %v2561 = vunpack.c.l.b16 %v268
        %v2562 = vpack.c.b16 %v2561, %v2560
        %v2580 = vunpack.c.l.b16 %v2542
        %v2581 = vunpack.c.l.b16 %v2543
        %v2582 = vunpack.c.l.b16 %v2544
        %v2583 = vunpack.c.l.b16 %v2545
        %v2584 = vunpack.c.l.b16 %v2546
        %v2585 = vunpack.c.l.b16 %v2547
        %v2586 = vunpack.c.l.b16 %v2548
        %v2587 = vunpack.c.l.b16 %v2549
        %v2588 = vunpack.c.l.b16 %v2550
        %v2589 = vunpack.c.l.b16 %v2551
        %v2590 = vunpack.c.l.b16 %v2552
        %v2591 = vunpack.c.l.b16 %v2553
        %v2592 = vunpack.c.l.b16 %v2554
        %v2593 = vunpack.c.l.b16 %v2555
        %v2594 = vunpack.c.l.b16 %v2556
        %v2595 = vunpack.c.l.b16 %v2557
        %v2596 = vpack.c.b16 %v2581, %v2580
        %v2597 = vpack.c.b16 %v2583, %v2582
        %v2598 = vpack.c.b16 %v2585, %v2584
        %v2599 = vpack.c.b16 %v2587, %v2586
        %v2600 = vpack.c.b16 %v2589, %v2588
        %v2601 = vpack.c.b16 %v2591, %v2590
        %v2602 = vpack.c.b16 %v2593, %v2592
        %v2603 = vpack.c.b16 %v2595, %v2594
        %2612 = vmatprep.subr.bf16.mxu0 0
        %2613 = vmatpush1.bf16.msra.mxu0 %v2596
        %2614 = vmatprep.subr.bf16.mxu0 0
        %2615 = vmatpush1.bf16.msra.mxu0 %v2597
        %2616 = vmatprep.subr.bf16.mxu0 0
        %2617 = vmatpush1.bf16.msra.mxu0 %v2598
        %2618 = vmatprep.subr.bf16.mxu0 0
        %2619 = vmatpush1.bf16.msra.mxu0 %v2599
        %2620 = vmatprep.subr.bf16.mxu0 0
        %2621 = vmatpush1.bf16.msra.mxu0 %v2600
        %2622 = vmatprep.subr.bf16.mxu0 0
        %2623 = vmatpush1.bf16.msra.mxu0 %v2601
        %2624 = vmatprep.subr.bf16.mxu0 0
        %2625 = vmatpush1.bf16.msra.mxu0 %v2602
        %2626 = vmatprep.subr.bf16.mxu0 0
        %2627 = vmatpush1.bf16.msra.mxu0 %v2603
        %2628 = vmatprep.subr.bf16.mxu0 0
        %2629 = vmatpush1.bf16.msra.mxu0 0
        %2630 = vmatprep.subr.bf16.mxu0 0
        %2631 = vmatpush1.bf16.msra.mxu0 0
        %2632 = vmatprep.subr.bf16.mxu0 0
        %2633 = vmatpush1.bf16.msra.mxu0 0
        %2634 = vmatprep.subr.bf16.mxu0 0
        %2635 = vmatpush1.bf16.msra.mxu0 0
        %2636 = vmatprep.subr.bf16.mxu0 0
        %2637 = vmatpush1.bf16.msra.mxu0 0
        %2638 = vmatprep.subr.bf16.mxu0 0
        %2639 = vmatpush1.bf16.msra.mxu0 0
        %2640 = vmatprep.subr.bf16.mxu0 0
        %2641 = vmatpush1.bf16.msra.mxu0 0
        %2642 = vmatprep.subr.bf16.mxu0 0
        %2643 = vmatpush1.bf16.msra.mxu0 0
        %2644 = vmatprep.mubr.bf16.mxu0 0
        %2645 = vmatmul.mubr.bf16.gmra.mrb[0].mxu0 %v1029
        %v2646 = vpop.f32.mrb[0].mxu0
        %v2647 = vadd.f32 0.0, %v2646
        %v2648 = vpop.f32.mrb[0].mxu0
        %v2649 = vpop.f32.mrb[0].mxu0
        %v2650 = vadd.f32 0.0, %v2649
        %v2651 = vpop.f32.mrb[0].mxu0
        %2652 = vmatprep.mubr.bf16.mxu0 0
        %2653 = vmatmul.mubr.bf16.gmra.mrb[0].mxu0 %v1030
        %v2654 = vpop.f32.mrb[0].mxu0
        %v2655 = vadd.f32 0.0, %v2654
        %v2656 = vpop.f32.mrb[0].mxu0
        %v2657 = vpop.f32.mrb[0].mxu0
        %v2658 = vadd.f32 0.0, %v2657
        %v2659 = vpop.f32.mrb[0].mxu0
        %2660 = vmatprep.mubr.bf16.mxu0 0
        %2661 = vmatmul.mubr.bf16.gmra.mrb[0].mxu0 %v1031
        %v2662 = vpop.f32.mrb[0].mxu0
        %v2663 = vadd.f32 0.0, %v2662
        %v2664 = vpop.f32.mrb[0].mxu0
        %v2665 = vpop.f32.mrb[0].mxu0
        %v2666 = vadd.f32 0.0, %v2665
        %v2667 = vpop.f32.mrb[0].mxu0
        %2668 = vmatprep.mubr.bf16.mxu0 0
        %2669 = vmatmul.mubr.bf16.gmra.mrb[0].mxu0 %v1032
        %v2670 = vpop.f32.mrb[0].mxu0
        %v2671 = vadd.f32 0.0, %v2670
        %v2672 = vpop.f32.mrb[0].mxu0
        %v2673 = vpop.f32.mrb[0].mxu0
        %v2674 = vadd.f32 0.0, %v2673
        %v2675 = vpop.f32.mrb[0].mxu0
        %2676 = vmatprep.mubr.bf16.mxu0 0
        %2677 = vmatmul.mubr.bf16.gmra.mrb[0].mxu0 %v1033
        %v2678 = vpop.f32.mrb[0].mxu0
        %v2679 = vadd.f32 0.0, %v2678
        %v2680 = vpop.f32.mrb[0].mxu0
        %v2681 = vpop.f32.mrb[0].mxu0
        %v2682 = vadd.f32 0.0, %v2681
        %v2683 = vpop.f32.mrb[0].mxu0
        %2684 = vmatprep.mubr.bf16.mxu0 0
        %2685 = vmatmul.mubr.bf16.gmra.mrb[0].mxu0 %v1034
        %v2686 = vpop.f32.mrb[0].mxu0
        %v2687 = vadd.f32 0.0, %v2686
        %v2688 = vpop.f32.mrb[0].mxu0
        %v2689 = vpop.f32.mrb[0].mxu0
        %v2690 = vadd.f32 0.0, %v2689
        %v2691 = vpop.f32.mrb[0].mxu0
        %2692 = vmatprep.mubr.bf16.mxu0 0
        %2693 = vmatmul.mubr.bf16.gmra.mrb[0].mxu0 %v1035
        %v2694 = vpop.f32.mrb[0].mxu0
        %v2695 = vadd.f32 0.0, %v2694
        %v2696 = vpop.f32.mrb[0].mxu0
        %v2697 = vpop.f32.mrb[0].mxu0
        %v2698 = vadd.f32 0.0, %v2697
        %v2699 = vpop.f32.mrb[0].mxu0
        %2700 = vmatprep.mubr.bf16.mxu0 0
        %2701 = vmatmul.mubr.bf16.gmra.mrb[0].mxu0 %v1036
        %v2702 = vpop.f32.mrb[0].mxu0
        %v2703 = vadd.f32 0.0, %v2702
        %v2704 = vpop.f32.mrb[0].mxu0
        %v2705 = vpop.f32.mrb[0].mxu0
        %v2706 = vadd.f32 0.0, %v2705
        %v2707 = vpop.f32.mrb[0].mxu0
        %2708 = vmatprep.mubr.bf16.mxu0 0
        %2709 = vmatmul.mubr.bf16.gmra.mrb[0].mxu0 %v1037
        %v2710 = vpop.f32.mrb[0].mxu0
        %v2711 = vadd.f32 0.0, %v2710
        %v2712 = vpop.f32.mrb[0].mxu0
        %v2713 = vpop.f32.mrb[0].mxu0
        %v2714 = vadd.f32 0.0, %v2713
        %v2715 = vpop.f32.mrb[0].mxu0
        %2716 = vmatprep.mubr.bf16.mxu0 0
        %2717 = vmatmul.mubr.bf16.gmra.mrb[0].mxu0 %v1038
        %v2718 = vpop.f32.mrb[0].mxu0
        %v2719 = vadd.f32 0.0, %v2718
        %v2720 = vpop.f32.mrb[0].mxu0
        %v2721 = vpop.f32.mrb[0].mxu0
        %v2722 = vadd.f32 0.0, %v2721
        %v2723 = vpop.f32.mrb[0].mxu0
        %2724 = vmatprep.mubr.bf16.mxu0 0
        %2725 = vmatmul.mubr.bf16.gmra.mrb[0].mxu0 %v1039
        %v2726 = vpop.f32.mrb[0].mxu0
        %v2727 = vadd.f32 0.0, %v2726
        %v2728 = vpop.f32.mrb[0].mxu0
        %v2729 = vpop.f32.mrb[0].mxu0
        %v2730 = vadd.f32 0.0, %v2729
        %v2731 = vpop.f32.mrb[0].mxu0
        %2732 = vmatprep.mubr.bf16.mxu0 0
        %2733 = vmatmul.mubr.bf16.gmra.mrb[0].mxu0 %v1040
        %v2734 = vpop.f32.mrb[0].mxu0
        %v2735 = vadd.f32 0.0, %v2734
        %v2736 = vpop.f32.mrb[0].mxu0
        %v2737 = vpop.f32.mrb[0].mxu0
        %v2738 = vadd.f32 0.0, %v2737
        %v2739 = vpop.f32.mrb[0].mxu0
        %2740 = vmatprep.mubr.bf16.mxu0 0
        %2741 = vmatmul.mubr.bf16.gmra.mrb[0].mxu0 %v1041
        %v2742 = vpop.f32.mrb[0].mxu0
        %v2743 = vadd.f32 0.0, %v2742
        %v2744 = vpop.f32.mrb[0].mxu0
        %v2745 = vpop.f32.mrb[0].mxu0
        %v2746 = vadd.f32 0.0, %v2745
        %v2747 = vpop.f32.mrb[0].mxu0
        %2748 = vmatprep.mubr.bf16.mxu0 0
        %2749 = vmatmul.mubr.bf16.gmra.mrb[0].mxu0 %v1042
        %v2750 = vpop.f32.mrb[0].mxu0
        %v2751 = vadd.f32 0.0, %v2750
        %v2752 = vpop.f32.mrb[0].mxu0
        %v2753 = vpop.f32.mrb[0].mxu0
        %v2754 = vadd.f32 0.0, %v2753
        %v2755 = vpop.f32.mrb[0].mxu0
        %2756 = vmatprep.mubr.bf16.mxu0 0
        %2757 = vmatmul.mubr.bf16.gmra.mrb[0].mxu0 %v1742
        %v2758 = vpop.f32.mrb[0].mxu0
        %v2759 = vadd.f32 0.0, %v2758
        %v2760 = vpop.f32.mrb[0].mxu0
        %v2761 = vpop.f32.mrb[0].mxu0
        %v2762 = vadd.f32 0.0, %v2761
        %v2763 = vpop.f32.mrb[0].mxu0
        %2764 = vmatprep.mubr.bf16.mxu0 0
        %2765 = vmatmul.mubr.bf16.gmra.mrb[0].mxu0 %v2562
        %v2766 = vpop.f32.mrb[0].mxu0
        %v2767 = vadd.f32 0.0, %v2766
        %v2768 = vpop.f32.mrb[0].mxu0
        %v2769 = vpop.f32.mrb[0].mxu0
        %v2770 = vadd.f32 0.0, %v2769
        %v2771 = vpop.f32.mrb[0].mxu0
        %2772 = vdwg.mxu0
        %v2773 = vadd.f32 %v2509, %v2647
        %v2774 = vadd.f32 %v2510, %v2650
        %v2775 = vadd.f32 %v2511, %v2655
        %v2776 = vadd.f32 %v2512, %v2658
        %v2777 = vadd.f32 %v2513, %v2663
        %v2778 = vadd.f32 %v2514, %v2666
        %v2779 = vadd.f32 %v2515, %v2671
        %v2780 = vadd.f32 %v2516, %v2674
        %v2781 = vadd.f32 %v2517, %v2679
        %v2782 = vadd.f32 %v2518, %v2682
        %v2783 = vadd.f32 %v2519, %v2687
        %v2784 = vadd.f32 %v2520, %v2690
        %v2785 = vadd.f32 %v2521, %v2695
        %v2786 = vadd.f32 %v2522, %v2698
        %v2787 = vadd.f32 %v2523, %v2703
        %v2788 = vadd.f32 %v2524, %v2706
        %v2789 = vadd.f32 %v2525, %v2711
        %v2790 = vadd.f32 %v2526, %v2714
        %v2791 = vadd.f32 %v2527, %v2719
        %v2792 = vadd.f32 %v2528, %v2722
        %v2793 = vadd.f32 %v2529, %v2727
        %v2794 = vadd.f32 %v2530, %v2730
        %v2795 = vadd.f32 %v2531, %v2735
        %v2796 = vadd.f32 %v2532, %v2738
        %v2797 = vadd.f32 %v2533, %v2743
        %v2798 = vadd.f32 %v2534, %v2746
        %v2799 = vadd.f32 %v2535, %v2751
        %v2800 = vadd.f32 %v2536, %v2754
        %v2801 = vadd.f32 %v2537, %v2759
        %v2802 = vadd.f32 %v2538, %v2762
        %v2803 = vadd.f32 %v2539, %v2767
        %v2804 = vadd.f32 %v2540, %v2770
        %v2806 = vshrl.u32 %v267, 16
        %v2808 = vrot.slane %v2806, 4
        %v2809 = vshll.u32 %v267, 16
        %v2811 = vrot.slane %v2809, 5
        %v2812 = vor.u32 %v2808, %v2811
        %v2813 = vrot.slane %v2812, 4
        %v2815 = vshll.u32 %v268, 16
        %v2817 = vrot.slane %v2815, 5
        %v2818 = vsel %vm288, %v2813, %v2817
        %v2819 = vshrl.u32 %v268, 16
        %v2821 = vrot.slane %v2819, 4
        %v2822 = vor.u32 %v2821, %v2817
        %v2823 = vrot.slane %v2822, 4
        %v2825 = vshll.u32 %v269, 16
        %v2827 = vrot.slane %v2825, 5
        %v2828 = vsel %vm288, %v2823, %v2827
        %s2829 = scalar_lea.vmem [#allocation5], 448
        %v2830 = vld [vmem:[%s2829] sm:$0xf]
        %v2831 = vld [vmem:[%s2829 + $0x4] sm:$0xf]
        %v2832 = vld [vmem:[%s2829 + $0x8] sm:$0xf]
        %v2833 = vld [vmem:[%s2829 + $0xc] sm:$0xf]
        %v2834 = vld [vmem:[%s2829 + $0x10] sm:$0xf]
        %v2835 = vld [vmem:[%s2829 + $0x14] sm:$0xf]
        %v2836 = vld [vmem:[%s2829 + $0x18] sm:$0xf]
        %v2837 = vld [vmem:[%s2829 + $0x1c] sm:$0xf]
        %v2838 = vld [vmem:[%s2829 + $0x20] sm:$0xf]
        %v2839 = vld [vmem:[%s2829 + $0x24] sm:$0xf]
        %v2840 = vld [vmem:[%s2829 + $0x28] sm:$0xf]
        %v2841 = vld [vmem:[%s2829 + $0x2c] sm:$0xf]
        %v2842 = vld [vmem:[%s2829 + $0x30] sm:$0xf]
        %v2843 = vld [vmem:[%s2829 + $0x34] sm:$0xf]
        %v2844 = vld [vmem:[%s2829 + $0x38] sm:$0xf]
        %v2845 = vld [vmem:[%s2829 + $0x3c] sm:$0xf]
        %v2846 = vunpack.c.l.b16 %v2818
        %v2847 = vunpack.c.l.b16 %v2828
        %v2848 = vpack.c.b16 %v2847, %v2846
        %v2866 = vunpack.c.l.b16 %v2830
        %v2867 = vunpack.c.l.b16 %v2831
        %v2868 = vunpack.c.l.b16 %v2832
        %v2869 = vunpack.c.l.b16 %v2833
        %v2870 = vunpack.c.l.b16 %v2834
        %v2871 = vunpack.c.l.b16 %v2835
        %v2872 = vunpack.c.l.b16 %v2836
        %v2873 = vunpack.c.l.b16 %v2837
        %v2874 = vunpack.c.l.b16 %v2838
        %v2875 = vunpack.c.l.b16 %v2839
        %v2876 = vunpack.c.l.b16 %v2840
        %v2877 = vunpack.c.l.b16 %v2841
        %v2878 = vunpack.c.l.b16 %v2842
        %v2879 = vunpack.c.l.b16 %v2843
        %v2880 = vunpack.c.l.b16 %v2844
        %v2881 = vunpack.c.l.b16 %v2845
        %v2882 = vpack.c.b16 %v2867, %v2866
        %v2883 = vpack.c.b16 %v2869, %v2868
        %v2884 = vpack.c.b16 %v2871, %v2870
        %v2885 = vpack.c.b16 %v2873, %v2872
        %v2886 = vpack.c.b16 %v2875, %v2874
        %v2887 = vpack.c.b16 %v2877, %v2876
        %v2888 = vpack.c.b16 %v2879, %v2878
        %v2889 = vpack.c.b16 %v2881, %v2880
        %2898 = vmatprep.subr.bf16.mxu0 0
        %2899 = vmatpush1.bf16.msra.mxu0 %v2882
        %2900 = vmatprep.subr.bf16.mxu0 0
        %2901 = vmatpush1.bf16.msra.mxu0 %v2883
        %2902 = vmatprep.subr.bf16.mxu0 0
        %2903 = vmatpush1.bf16.msra.mxu0 %v2884
        %2904 = vmatprep.subr.bf16.mxu0 0
        %2905 = vmatpush1.bf16.msra.mxu0 %v2885
        %2906 = vmatprep.subr.bf16.mxu0 0
        %2907 = vmatpush1.bf16.msra.mxu0 %v2886
        %2908 = vmatprep.subr.bf16.mxu0 0
        %2909 = vmatpush1.bf16.msra.mxu0 %v2887
        %2910 = vmatprep.subr.bf16.mxu0 0
        %2911 = vmatpush1.bf16.msra.mxu0 %v2888
        %2912 = vmatprep.subr.bf16.mxu0 0
        %2913 = vmatpush1.bf16.msra.mxu0 %v2889
        %2914 = vmatprep.subr.bf16.mxu0 0
        %2915 = vmatpush1.bf16.msra.mxu0 0
        %2916 = vmatprep.subr.bf16.mxu0 0
        %2917 = vmatpush1.bf16.msra.mxu0 0
        %2918 = vmatprep.subr.bf16.mxu0 0
        %2919 = vmatpush1.bf16.msra.mxu0 0
        %2920 = vmatprep.subr.bf16.mxu0 0
        %2921 = vmatpush1.bf16.msra.mxu0 0
        %2922 = vmatprep.subr.bf16.mxu0 0
        %2923 = vmatpush1.bf16.msra.mxu0 0
        %2924 = vmatprep.subr.bf16.mxu0 0
        %2925 = vmatpush1.bf16.msra.mxu0 0
        %2926 = vmatprep.subr.bf16.mxu0 0
        %2927 = vmatpush1.bf16.msra.mxu0 0
        %2928 = vmatprep.subr.bf16.mxu0 0
        %2929 = vmatpush1.bf16.msra.mxu0 0
        %2930 = vmatprep.mubr.bf16.mxu0 0
        %2931 = vmatmul.mubr.bf16.gmra.mrb[0].mxu0 %v724
        %v2932 = vpop.f32.mrb[0].mxu0
        %v2933 = vadd.f32 0.0, %v2932
        %v2934 = vpop.f32.mrb[0].mxu0
        %v2935 = vpop.f32.mrb[0].mxu0
        %v2936 = vadd.f32 0.0, %v2935
        %v2937 = vpop.f32.mrb[0].mxu0
        %2938 = vmatprep.mubr.bf16.mxu0 0
        %2939 = vmatmul.mubr.bf16.gmra.mrb[0].mxu0 %v725
        %v2940 = vpop.f32.mrb[0].mxu0
        %v2941 = vadd.f32 0.0, %v2940
        %v2942 = vpop.f32.mrb[0].mxu0
        %v2943 = vpop.f32.mrb[0].mxu0
        %v2944 = vadd.f32 0.0, %v2943
        %v2945 = vpop.f32.mrb[0].mxu0
        %2946 = vmatprep.mubr.bf16.mxu0 0
        %2947 = vmatmul.mubr.bf16.gmra.mrb[0].mxu0 %v726
        %v2948 = vpop.f32.mrb[0].mxu0
        %v2949 = vadd.f32 0.0, %v2948
        %v2950 = vpop.f32.mrb[0].mxu0
        %v2951 = vpop.f32.mrb[0].mxu0
        %v2952 = vadd.f32 0.0, %v2951
        %v2953 = vpop.f32.mrb[0].mxu0
        %2954 = vmatprep.mubr.bf16.mxu0 0
        %2955 = vmatmul.mubr.bf16.gmra.mrb[0].mxu0 %v727
        %v2956 = vpop.f32.mrb[0].mxu0
        %v2957 = vadd.f32 0.0, %v2956
        %v2958 = vpop.f32.mrb[0].mxu0
        %v2959 = vpop.f32.mrb[0].mxu0
        %v2960 = vadd.f32 0.0, %v2959
        %v2961 = vpop.f32.mrb[0].mxu0
        %2962 = vmatprep.mubr.bf16.mxu0 0
        %2963 = vmatmul.mubr.bf16.gmra.mrb[0].mxu0 %v728
        %v2964 = vpop.f32.mrb[0].mxu0
        %v2965 = vadd.f32 0.0, %v2964
        %v2966 = vpop.f32.mrb[0].mxu0
        %v2967 = vpop.f32.mrb[0].mxu0
        %v2968 = vadd.f32 0.0, %v2967
        %v2969 = vpop.f32.mrb[0].mxu0
        %2970 = vmatprep.mubr.bf16.mxu0 0
        %2971 = vmatmul.mubr.bf16.gmra.mrb[0].mxu0 %v729
        %v2972 = vpop.f32.mrb[0].mxu0
        %v2973 = vadd.f32 0.0, %v2972
        %v2974 = vpop.f32.mrb[0].mxu0
        %v2975 = vpop.f32.mrb[0].mxu0
        %v2976 = vadd.f32 0.0, %v2975
        %v2977 = vpop.f32.mrb[0].mxu0
        %2978 = vmatprep.mubr.bf16.mxu0 0
        %2979 = vmatmul.mubr.bf16.gmra.mrb[0].mxu0 %v730
        %v2980 = vpop.f32.mrb[0].mxu0
        %v2981 = vadd.f32 0.0, %v2980
        %v2982 = vpop.f32.mrb[0].mxu0
        %v2983 = vpop.f32.mrb[0].mxu0
        %v2984 = vadd.f32 0.0, %v2983
        %v2985 = vpop.f32.mrb[0].mxu0
        %2986 = vmatprep.mubr.bf16.mxu0 0
        %2987 = vmatmul.mubr.bf16.gmra.mrb[0].mxu0 %v731
        %v2988 = vpop.f32.mrb[0].mxu0
        %v2989 = vadd.f32 0.0, %v2988
        %v2990 = vpop.f32.mrb[0].mxu0
        %v2991 = vpop.f32.mrb[0].mxu0
        %v2992 = vadd.f32 0.0, %v2991
        %v2993 = vpop.f32.mrb[0].mxu0
        %2994 = vmatprep.mubr.bf16.mxu0 0
        %2995 = vmatmul.mubr.bf16.gmra.mrb[0].mxu0 %v732
        %v2996 = vpop.f32.mrb[0].mxu0
        %v2997 = vadd.f32 0.0, %v2996
        %v2998 = vpop.f32.mrb[0].mxu0
        %v2999 = vpop.f32.mrb[0].mxu0
        %v3000 = vadd.f32 0.0, %v2999
        %v3001 = vpop.f32.mrb[0].mxu0
        %3002 = vmatprep.mubr.bf16.mxu0 0
        %3003 = vmatmul.mubr.bf16.gmra.mrb[0].mxu0 %v733
        %v3004 = vpop.f32.mrb[0].mxu0
        %v3005 = vadd.f32 0.0, %v3004
        %v3006 = vpop.f32.mrb[0].mxu0
        %v3007 = vpop.f32.mrb[0].mxu0
        %v3008 = vadd.f32 0.0, %v3007
        %v3009 = vpop.f32.mrb[0].mxu0
        %3010 = vmatprep.mubr.bf16.mxu0 0
        %3011 = vmatmul.mubr.bf16.gmra.mrb[0].mxu0 %v734
        %v3012 = vpop.f32.mrb[0].mxu0
        %v3013 = vadd.f32 0.0, %v3012
        %v3014 = vpop.f32.mrb[0].mxu0
        %v3015 = vpop.f32.mrb[0].mxu0
        %v3016 = vadd.f32 0.0, %v3015
        %v3017 = vpop.f32.mrb[0].mxu0
        %3018 = vmatprep.mubr.bf16.mxu0 0
        %3019 = vmatmul.mubr.bf16.gmra.mrb[0].mxu0 %v735
        %v3020 = vpop.f32.mrb[0].mxu0
        %v3021 = vadd.f32 0.0, %v3020
        %v3022 = vpop.f32.mrb[0].mxu0
        %v3023 = vpop.f32.mrb[0].mxu0
        %v3024 = vadd.f32 0.0, %v3023
        %v3025 = vpop.f32.mrb[0].mxu0
        %3026 = vmatprep.mubr.bf16.mxu0 0
        %3027 = vmatmul.mubr.bf16.gmra.mrb[0].mxu0 %v736
        %v3028 = vpop.f32.mrb[0].mxu0
        %v3029 = vadd.f32 0.0, %v3028
        %v3030 = vpop.f32.mrb[0].mxu0
        %v3031 = vpop.f32.mrb[0].mxu0
        %v3032 = vadd.f32 0.0, %v3031
        %v3033 = vpop.f32.mrb[0].mxu0
        %3034 = vmatprep.mubr.bf16.mxu0 0
        %3035 = vmatmul.mubr.bf16.gmra.mrb[0].mxu0 %v737
        %v3036 = vpop.f32.mrb[0].mxu0
        %v3037 = vadd.f32 0.0, %v3036
        %v3038 = vpop.f32.mrb[0].mxu0
        %v3039 = vpop.f32.mrb[0].mxu0
        %v3040 = vadd.f32 0.0, %v3039
        %v3041 = vpop.f32.mrb[0].mxu0
        %3042 = vmatprep.mubr.bf16.mxu0 0
        %3043 = vmatmul.mubr.bf16.gmra.mrb[0].mxu0 %v2028
        %v3044 = vpop.f32.mrb[0].mxu0
        %v3045 = vadd.f32 0.0, %v3044
        %v3046 = vpop.f32.mrb[0].mxu0
        %v3047 = vpop.f32.mrb[0].mxu0
        %v3048 = vadd.f32 0.0, %v3047
        %v3049 = vpop.f32.mrb[0].mxu0
        %3050 = vmatprep.mubr.bf16.mxu0 0
        %3051 = vmatmul.mubr.bf16.gmra.mrb[0].mxu0 %v2848
        %v3052 = vpop.f32.mrb[0].mxu0
        %v3053 = vadd.f32 0.0, %v3052
        %v3054 = vpop.f32.mrb[0].mxu0
        %v3055 = vpop.f32.mrb[0].mxu0
        %v3056 = vadd.f32 0.0, %v3055
        %v3057 = vpop.f32.mrb[0].mxu0
        %3058 = vdwg.mxu0
        %v3059 = vadd.f32 %v2773, %v2933
        %v3060 = vadd.f32 %v2774, %v2936
        %v3061 = vadd.f32 %v2775, %v2941
        %v3062 = vadd.f32 %v2776, %v2944
        %v3063 = vadd.f32 %v2777, %v2949
        %v3064 = vadd.f32 %v2778, %v2952
        %v3065 = vadd.f32 %v2779, %v2957
        %v3066 = vadd.f32 %v2780, %v2960
        %v3067 = vadd.f32 %v2781, %v2965
        %v3068 = vadd.f32 %v2782, %v2968
        %v3069 = vadd.f32 %v2783, %v2973
        %v3070 = vadd.f32 %v2784, %v2976
        %v3071 = vadd.f32 %v2785, %v2981
        %v3072 = vadd.f32 %v2786, %v2984
        %v3073 = vadd.f32 %v2787, %v2989
        %v3074 = vadd.f32 %v2788, %v2992
        %v3075 = vadd.f32 %v2789, %v2997
        %v3076 = vadd.f32 %v2790, %v3000
        %v3077 = vadd.f32 %v2791, %v3005
        %v3078 = vadd.f32 %v2792, %v3008
        %v3079 = vadd.f32 %v2793, %v3013
        %v3080 = vadd.f32 %v2794, %v3016
        %v3081 = vadd.f32 %v2795, %v3021
        %v3082 = vadd.f32 %v2796, %v3024
        %v3083 = vadd.f32 %v2797, %v3029
        %v3084 = vadd.f32 %v2798, %v3032
        %v3085 = vadd.f32 %v2799, %v3037
        %v3086 = vadd.f32 %v2800, %v3040
        %v3087 = vadd.f32 %v2801, %v3045
        %v3088 = vadd.f32 %v2802, %v3048
        %v3089 = vadd.f32 %v2803, %v3053
        %v3090 = vadd.f32 %v2804, %v3056
        %v3092 = vrot.slane %v267, 5
        %v3093 = vrot.slane %v3092, 4
        %v3094 = vrot.slane %v268, 5
        %v3095 = vsel %vm1286, %v3093, %v3094
        %v3096 = vrot.slane %v3094, 4
        %v3097 = vrot.slane %v269, 5
        %v3098 = vsel %vm1286, %v3096, %v3097
        %s3099 = scalar_lea.vmem [#allocation5], 512
        %v3100 = vld [vmem:[%s3099] sm:$0xf]
        %v3101 = vld [vmem:[%s3099 + $0x4] sm:$0xf]
        %v3102 = vld [vmem:[%s3099 + $0x8] sm:$0xf]
        %v3103 = vld [vmem:[%s3099 + $0xc] sm:$0xf]
        %v3104 = vld [vmem:[%s3099 + $0x10] sm:$0xf]
        %v3105 = vld [vmem:[%s3099 + $0x14] sm:$0xf]
        %v3106 = vld [vmem:[%s3099 + $0x18] sm:$0xf]
        %v3107 = vld [vmem:[%s3099 + $0x1c] sm:$0xf]
        %v3108 = vld [vmem:[%s3099 + $0x20] sm:$0xf]
        %v3109 = vld [vmem:[%s3099 + $0x24] sm:$0xf]
        %v3110 = vld [vmem:[%s3099 + $0x28] sm:$0xf]
        %v3111 = vld [vmem:[%s3099 + $0x2c] sm:$0xf]
        %v3112 = vld [vmem:[%s3099 + $0x30] sm:$0xf]
        %v3113 = vld [vmem:[%s3099 + $0x34] sm:$0xf]
        %v3114 = vld [vmem:[%s3099 + $0x38] sm:$0xf]
        %v3115 = vld [vmem:[%s3099 + $0x3c] sm:$0xf]
        %v3116 = vunpack.c.l.b16 %v3095
        %v3117 = vunpack.c.l.b16 %v3098
        %v3118 = vpack.c.b16 %v3117, %v3116
        %v3136 = vunpack.c.l.b16 %v3100
        %v3137 = vunpack.c.l.b16 %v3101
        %v3138 = vunpack.c.l.b16 %v3102
        %v3139 = vunpack.c.l.b16 %v3103
        %v3140 = vunpack.c.l.b16 %v3104
        %v3141 = vunpack.c.l.b16 %v3105
        %v3142 = vunpack.c.l.b16 %v3106
        %v3143 = vunpack.c.l.b16 %v3107
        %v3144 = vunpack.c.l.b16 %v3108
        %v3145 = vunpack.c.l.b16 %v3109
        %v3146 = vunpack.c.l.b16 %v3110
        %v3147 = vunpack.c.l.b16 %v3111
        %v3148 = vunpack.c.l.b16 %v3112
        %v3149 = vunpack.c.l.b16 %v3113
        %v3150 = vunpack.c.l.b16 %v3114
        %v3151 = vunpack.c.l.b16 %v3115
        %v3152 = vpack.c.b16 %v3137, %v3136
        %v3153 = vpack.c.b16 %v3139, %v3138
        %v3154 = vpack.c.b16 %v3141, %v3140
        %v3155 = vpack.c.b16 %v3143, %v3142
        %v3156 = vpack.c.b16 %v3145, %v3144
        %v3157 = vpack.c.b16 %v3147, %v3146
        %v3158 = vpack.c.b16 %v3149, %v3148
        %v3159 = vpack.c.b16 %v3151, %v3150
        %3168 = vmatprep.subr.bf16.mxu0 0
        %3169 = vmatpush1.bf16.msra.mxu0 %v3152
        %3170 = vmatprep.subr.bf16.mxu0 0
        %3171 = vmatpush1.bf16.msra.mxu0 %v3153
        %3172 = vmatprep.subr.bf16.mxu0 0
        %3173 = vmatpush1.bf16.msra.mxu0 %v3154
        %3174 = vmatprep.subr.bf16.mxu0 0
        %3175 = vmatpush1.bf16.msra.mxu0 %v3155
        %3176 = vmatprep.subr.bf16.mxu0 0
        %3177 = vmatpush1.bf16.msra.mxu0 %v3156
        %3178 = vmatprep.subr.bf16.mxu0 0
        %3179 = vmatpush1.bf16.msra.mxu0 %v3157
        %3180 = vmatprep.subr.bf16.mxu0 0
        %3181 = vmatpush1.bf16.msra.mxu0 %v3158
        %3182 = vmatprep.subr.bf16.mxu0 0
        %3183 = vmatpush1.bf16.msra.mxu0 %v3159
        %3184 = vmatprep.subr.bf16.mxu0 0
        %3185 = vmatpush1.bf16.msra.mxu0 0
        %3186 = vmatprep.subr.bf16.mxu0 0
        %3187 = vmatpush1.bf16.msra.mxu0 0
        %3188 = vmatprep.subr.bf16.mxu0 0
        %3189 = vmatpush1.bf16.msra.mxu0 0
        %3190 = vmatprep.subr.bf16.mxu0 0
        %3191 = vmatpush1.bf16.msra.mxu0 0
        %3192 = vmatprep.subr.bf16.mxu0 0
        %3193 = vmatpush1.bf16.msra.mxu0 0
        %3194 = vmatprep.subr.bf16.mxu0 0
        %3195 = vmatpush1.bf16.msra.mxu0 0
        %3196 = vmatprep.subr.bf16.mxu0 0
        %3197 = vmatpush1.bf16.msra.mxu0 0
        %3198 = vmatprep.subr.bf16.mxu0 0
        %3199 = vmatpush1.bf16.msra.mxu0 0
        %3200 = vmatprep.mubr.bf16.mxu0 0
        %3201 = vmatmul.mubr.bf16.gmra.mrb[0].mxu0 %v1450
        %v3202 = vpop.f32.mrb[0].mxu0
        %v3203 = vadd.f32 0.0, %v3202
        %v3204 = vpop.f32.mrb[0].mxu0
        %v3205 = vpop.f32.mrb[0].mxu0
        %v3206 = vadd.f32 0.0, %v3205
        %v3207 = vpop.f32.mrb[0].mxu0
        %3208 = vmatprep.mubr.bf16.mxu0 0
        %3209 = vmatmul.mubr.bf16.gmra.mrb[0].mxu0 %v1451
        %v3210 = vpop.f32.mrb[0].mxu0
        %v3211 = vadd.f32 0.0, %v3210
        %v3212 = vpop.f32.mrb[0].mxu0
        %v3213 = vpop.f32.mrb[0].mxu0
        %v3214 = vadd.f32 0.0, %v3213
        %v3215 = vpop.f32.mrb[0].mxu0
        %3216 = vmatprep.mubr.bf16.mxu0 0
        %3217 = vmatmul.mubr.bf16.gmra.mrb[0].mxu0 %v1452
        %v3218 = vpop.f32.mrb[0].mxu0
        %v3219 = vadd.f32 0.0, %v3218
        %v3220 = vpop.f32.mrb[0].mxu0
        %v3221 = vpop.f32.mrb[0].mxu0
        %v3222 = vadd.f32 0.0, %v3221
        %v3223 = vpop.f32.mrb[0].mxu0
        %3224 = vmatprep.mubr.bf16.mxu0 0
        %3225 = vmatmul.mubr.bf16.gmra.mrb[0].mxu0 %v1453
        %v3226 = vpop.f32.mrb[0].mxu0
        %v3227 = vadd.f32 0.0, %v3226
        %v3228 = vpop.f32.mrb[0].mxu0
        %v3229 = vpop.f32.mrb[0].mxu0
        %v3230 = vadd.f32 0.0, %v3229
        %v3231 = vpop.f32.mrb[0].mxu0
        %3232 = vmatprep.mubr.bf16.mxu0 0
        %3233 = vmatmul.mubr.bf16.gmra.mrb[0].mxu0 %v1454
        %v3234 = vpop.f32.mrb[0].mxu0
        %v3235 = vadd.f32 0.0, %v3234
        %v3236 = vpop.f32.mrb[0].mxu0
        %v3237 = vpop.f32.mrb[0].mxu0
        %v3238 = vadd.f32 0.0, %v3237
        %v3239 = vpop.f32.mrb[0].mxu0
        %3240 = vmatprep.mubr.bf16.mxu0 0
        %3241 = vmatmul.mubr.bf16.gmra.mrb[0].mxu0 %v1455
        %v3242 = vpop.f32.mrb[0].mxu0
        %v3243 = vadd.f32 0.0, %v3242
        %v3244 = vpop.f32.mrb[0].mxu0
        %v3245 = vpop.f32.mrb[0].mxu0
        %v3246 = vadd.f32 0.0, %v3245
        %v3247 = vpop.f32.mrb[0].mxu0
        %3248 = vmatprep.mubr.bf16.mxu0 0
        %3249 = vmatmul.mubr.bf16.gmra.mrb[0].mxu0 %v1456
        %v3250 = vpop.f32.mrb[0].mxu0
        %v3251 = vadd.f32 0.0, %v3250
        %v3252 = vpop.f32.mrb[0].mxu0
        %v3253 = vpop.f32.mrb[0].mxu0
        %v3254 = vadd.f32 0.0, %v3253
        %v3255 = vpop.f32.mrb[0].mxu0
        %3256 = vmatprep.mubr.bf16.mxu0 0
        %3257 = vmatmul.mubr.bf16.gmra.mrb[0].mxu0 %v1457
        %v3258 = vpop.f32.mrb[0].mxu0
        %v3259 = vadd.f32 0.0, %v3258
        %v3260 = vpop.f32.mrb[0].mxu0
        %v3261 = vpop.f32.mrb[0].mxu0
        %v3262 = vadd.f32 0.0, %v3261
        %v3263 = vpop.f32.mrb[0].mxu0
        %3264 = vmatprep.mubr.bf16.mxu0 0
        %3265 = vmatmul.mubr.bf16.gmra.mrb[0].mxu0 %v1458
        %v3266 = vpop.f32.mrb[0].mxu0
        %v3267 = vadd.f32 0.0, %v3266
        %v3268 = vpop.f32.mrb[0].mxu0
        %v3269 = vpop.f32.mrb[0].mxu0
        %v3270 = vadd.f32 0.0, %v3269
        %v3271 = vpop.f32.mrb[0].mxu0
        %3272 = vmatprep.mubr.bf16.mxu0 0
        %3273 = vmatmul.mubr.bf16.gmra.mrb[0].mxu0 %v1459
        %v3274 = vpop.f32.mrb[0].mxu0
        %v3275 = vadd.f32 0.0, %v3274
        %v3276 = vpop.f32.mrb[0].mxu0
        %v3277 = vpop.f32.mrb[0].mxu0
        %v3278 = vadd.f32 0.0, %v3277
        %v3279 = vpop.f32.mrb[0].mxu0
        %3280 = vmatprep.mubr.bf16.mxu0 0
        %3281 = vmatmul.mubr.bf16.gmra.mrb[0].mxu0 %v1460
        %v3282 = vpop.f32.mrb[0].mxu0
        %v3283 = vadd.f32 0.0, %v3282
        %v3284 = vpop.f32.mrb[0].mxu0
        %v3285 = vpop.f32.mrb[0].mxu0
        %v3286 = vadd.f32 0.0, %v3285
        %v3287 = vpop.f32.mrb[0].mxu0
        %3288 = vmatprep.mubr.bf16.mxu0 0
        %3289 = vmatmul.mubr.bf16.gmra.mrb[0].mxu0 %v1461
        %v3290 = vpop.f32.mrb[0].mxu0
        %v3291 = vadd.f32 0.0, %v3290
        %v3292 = vpop.f32.mrb[0].mxu0
        %v3293 = vpop.f32.mrb[0].mxu0
        %v3294 = vadd.f32 0.0, %v3293
        %v3295 = vpop.f32.mrb[0].mxu0
        %3296 = vmatprep.mubr.bf16.mxu0 0
        %3297 = vmatmul.mubr.bf16.gmra.mrb[0].mxu0 %v1462
        %v3298 = vpop.f32.mrb[0].mxu0
        %v3299 = vadd.f32 0.0, %v3298
        %v3300 = vpop.f32.mrb[0].mxu0
        %v3301 = vpop.f32.mrb[0].mxu0
        %v3302 = vadd.f32 0.0, %v3301
        %v3303 = vpop.f32.mrb[0].mxu0
        %3304 = vmatprep.mubr.bf16.mxu0 0
        %3305 = vmatmul.mubr.bf16.gmra.mrb[0].mxu0 %v1463
        %v3306 = vpop.f32.mrb[0].mxu0
        %v3307 = vadd.f32 0.0, %v3306
        %v3308 = vpop.f32.mrb[0].mxu0
        %v3309 = vpop.f32.mrb[0].mxu0
        %v3310 = vadd.f32 0.0, %v3309
        %v3311 = vpop.f32.mrb[0].mxu0
        %3312 = vmatprep.mubr.bf16.mxu0 0
        %3313 = vmatmul.mubr.bf16.gmra.mrb[0].mxu0 %v2298
        %v3314 = vpop.f32.mrb[0].mxu0
        %v3315 = vadd.f32 0.0, %v3314
        %v3316 = vpop.f32.mrb[0].mxu0
        %v3317 = vpop.f32.mrb[0].mxu0
        %v3318 = vadd.f32 0.0, %v3317
        %v3319 = vpop.f32.mrb[0].mxu0
        %3320 = vmatprep.mubr.bf16.mxu0 0
        %3321 = vmatmul.mubr.bf16.gmra.mrb[0].mxu0 %v3118
        %v3322 = vpop.f32.mrb[0].mxu0
        %v3323 = vadd.f32 0.0, %v3322
        %v3324 = vpop.f32.mrb[0].mxu0
        %v3325 = vpop.f32.mrb[0].mxu0
        %v3326 = vadd.f32 0.0, %v3325
        %v3327 = vpop.f32.mrb[0].mxu0
        %3328 = vdwg.mxu0
        %v3329 = vadd.f32 %v3059, %v3203
        %v3330 = vadd.f32 %v3060, %v3206
        %v3331 = vadd.f32 %v3061, %v3211
        %v3332 = vadd.f32 %v3062, %v3214
        %v3333 = vadd.f32 %v3063, %v3219
        %v3334 = vadd.f32 %v3064, %v3222
        %v3335 = vadd.f32 %v3065, %v3227
        %v3336 = vadd.f32 %v3066, %v3230
        %v3337 = vadd.f32 %v3067, %v3235
        %v3338 = vadd.f32 %v3068, %v3238
        %v3339 = vadd.f32 %v3069, %v3243
        %v3340 = vadd.f32 %v3070, %v3246
        %v3341 = vadd.f32 %v3071, %v3251
        %v3342 = vadd.f32 %v3072, %v3254
        %v3343 = vadd.f32 %v3073, %v3259
        %v3344 = vadd.f32 %v3074, %v3262
        %v3345 = vadd.f32 %v3075, %v3267
        %v3346 = vadd.f32 %v3076, %v3270
        %v3347 = vadd.f32 %v3077, %v3275
        %v3348 = vadd.f32 %v3078, %v3278
        %v3349 = vadd.f32 %v3079, %v3283
        %v3350 = vadd.f32 %v3080, %v3286
        %v3351 = vadd.f32 %v3081, %v3291
        %v3352 = vadd.f32 %v3082, %v3294
        %v3353 = vadd.f32 %v3083, %v3299
        %v3354 = vadd.f32 %v3084, %v3302
        %v3355 = vadd.f32 %v3085, %v3307
        %v3356 = vadd.f32 %v3086, %v3310
        %v3357 = vadd.f32 %v3087, %v3315
        %v3358 = vadd.f32 %v3088, %v3318
        %v3359 = vadd.f32 %v3089, %v3323
        %v3360 = vadd.f32 %v3090, %v3326
        %3361 = vst [vmem:[%s207] sm:$0xff] %v3329
        %3362 = vst [vmem:[%s207 + $0x8] sm:$0xff] %v3330
        %3363 = vst [vmem:[%s207 + $0x10] sm:$0xff] %v3331
        %3364 = vst [vmem:[%s207 + $0x18] sm:$0xff] %v3332
        %3365 = vst [vmem:[%s207 + $0x20] sm:$0xff] %v3333
        %3366 = vst [vmem:[%s207 + $0x28] sm:$0xff] %v3334
        %3367 = vst [vmem:[%s207 + $0x30] sm:$0xff] %v3335
        %3368 = vst [vmem:[%s207 + $0x38] sm:$0xff] %v3336
        %3369 = vst [vmem:[%s207 + $0x40] sm:$0xff] %v3337
        %3370 = vst [vmem:[%s207 + $0x48] sm:$0xff] %v3338
        %3371 = vst [vmem:[%s207 + $0x50] sm:$0xff] %v3339
        %3372 = vst [vmem:[%s207 + $0x58] sm:$0xff] %v3340
        %3373 = vst [vmem:[%s207 + $0x60] sm:$0xff] %v3341
        %3374 = vst [vmem:[%s207 + $0x68] sm:$0xff] %v3342
        %3375 = vst [vmem:[%s207 + $0x70] sm:$0xff] %v3343
        %3376 = vst [vmem:[%s207 + $0x78] sm:$0xff] %v3344
        %3377 = vst [vmem:[%s207 + $0x80] sm:$0xff] %v3345
        %3378 = vst [vmem:[%s207 + $0x88] sm:$0xff] %v3346
        %3379 = vst [vmem:[%s207 + $0x90] sm:$0xff] %v3347
        %3380 = vst [vmem:[%s207 + $0x98] sm:$0xff] %v3348
        %3381 = vst [vmem:[%s207 + $0xa0] sm:$0xff] %v3349
        %3382 = vst [vmem:[%s207 + $0xa8] sm:$0xff] %v3350
        %3383 = vst [vmem:[%s207 + $0xb0] sm:$0xff] %v3351
        %3384 = vst [vmem:[%s207 + $0xb8] sm:$0xff] %v3352
        %3385 = vst [vmem:[%s207 + $0xc0] sm:$0xff] %v3353
        %3386 = vst [vmem:[%s207 + $0xc8] sm:$0xff] %v3354
        %3387 = vst [vmem:[%s207 + $0xd0] sm:$0xff] %v3355
        %3388 = vst [vmem:[%s207 + $0xd8] sm:$0xff] %v3356
        %3389 = vst [vmem:[%s207 + $0xe0] sm:$0xff] %v3357
        %3390 = vst [vmem:[%s207 + $0xe8] sm:$0xff] %v3358
        %3391 = vst [vmem:[%s207 + $0xf0] sm:$0xff] %v3359
        %3392 = vst [vmem:[%s207 + $0xf8] sm:$0xff] %v3360
        %v3393 = vadd.f32 %v3329, %v3330
        %v3394 = vadd.f32 %v3393, %v3331
        %v3395 = vadd.f32 %v3394, %v3332
        %v3396 = vadd.f32 %v3395, %v3333
        %v3397 = vadd.f32 %v3396, %v3334
        %v3398 = vadd.f32 %v3397, %v3335
        %v3399 = vadd.f32 %v3398, %v3336
        %v3400 = vadd.f32 %v3399, %v3337
        %v3401 = vadd.f32 %v3400, %v3338
        %v3402 = vadd.f32 %v3401, %v3339
        %v3403 = vadd.f32 %v3402, %v3340
        %v3404 = vadd.f32 %v3403, %v3341
        %v3405 = vadd.f32 %v3404, %v3342
        %v3406 = vadd.f32 %v3405, %v3343
        %v3407 = vadd.f32 %v3406, %v3344
        %v3408 = vadd.f32 %v3407, %v3345
        %v3409 = vadd.f32 %v3408, %v3346
        %v3410 = vadd.f32 %v3409, %v3347
        %v3411 = vadd.f32 %v3410, %v3348
        %v3412 = vadd.f32 %v3411, %v3349
        %v3413 = vadd.f32 %v3412, %v3350
        %v3414 = vadd.f32 %v3413, %v3351
        %v3415 = vadd.f32 %v3414, %v3352
        %v3416 = vadd.f32 %v3415, %v3353
        %v3417 = vadd.f32 %v3416, %v3354
        %v3418 = vadd.f32 %v3417, %v3355
        %v3419 = vadd.f32 %v3418, %v3356
        %v3420 = vadd.f32 %v3419, %v3357
        %v3421 = vadd.f32 %v3420, %v3358
        %v3422 = vadd.f32 %v3421, %v3359
        %v3423 = vadd.f32 %v3422, %v3360
        %v3424 = vrot.slane %v3423, 4
        %v3425 = vadd.f32 %v3423, %v3424
        %v3426 = vrot.slane %v3425, 2
        %v3427 = vadd.f32 %v3425, %v3426
        %v3428 = vrot.slane %v3427, 1
        %v3429 = vadd.f32 %v3427, %v3428
        %v3430 = vmul.f32 %v3329, %v3329
        %v3431 = vmul.f32 %v3330, %v3330
        %v3432 = vmul.f32 %v3331, %v3331
        %v3433 = vmul.f32 %v3332, %v3332
        %v3434 = vmul.f32 %v3333, %v3333
        %v3435 = vmul.f32 %v3334, %v3334
        %v3436 = vmul.f32 %v3335, %v3335
        %v3437 = vmul.f32 %v3336, %v3336
        %v3438 = vmul.f32 %v3337, %v3337
        %v3439 = vmul.f32 %v3338, %v3338
        %v3440 = vmul.f32 %v3339, %v3339
        %v3441 = vmul.f32 %v3340, %v3340
        %v3442 = vmul.f32 %v3341, %v3341
        %v3443 = vmul.f32 %v3342, %v3342
        %v3444 = vmul.f32 %v3343, %v3343
        %v3445 = vmul.f32 %v3344, %v3344
        %v3446 = vmul.f32 %v3345, %v3345
        %v3447 = vmul.f32 %v3346, %v3346
        %v3448 = vmul.f32 %v3347, %v3347
        %v3449 = vmul.f32 %v3348, %v3348
        %v3450 = vmul.f32 %v3349, %v3349
        %v3451 = vmul.f32 %v3350, %v3350
        %v3452 = vmul.f32 %v3351, %v3351
        %v3453 = vmul.f32 %v3352, %v3352
        %v3454 = vmul.f32 %v3353, %v3353
        %v3455 = vmul.f32 %v3354, %v3354
        %v3456 = vmul.f32 %v3355, %v3355
        %v3457 = vmul.f32 %v3356, %v3356
        %v3458 = vmul.f32 %v3357, %v3357
        %v3459 = vmul.f32 %v3358, %v3358
        %v3460 = vmul.f32 %v3359, %v3359
        %v3461 = vmul.f32 %v3360, %v3360
        %v3462 = vadd.f32 %v3430, %v3431
        %v3463 = vadd.f32 %v3462, %v3432
        %v3464 = vadd.f32 %v3463, %v3433
        %v3465 = vadd.f32 %v3464, %v3434
        %v3466 = vadd.f32 %v3465, %v3435
        %v3467 = vadd.f32 %v3466, %v3436
        %v3468 = vadd.f32 %v3467, %v3437
        %v3469 = vadd.f32 %v3468, %v3438
        %v3470 = vadd.f32 %v3469, %v3439
        %v3471 = vadd.f32 %v3470, %v3440
        %v3472 = vadd.f32 %v3471, %v3441
        %v3473 = vadd.f32 %v3472, %v3442
        %v3474 = vadd.f32 %v3473, %v3443
        %v3475 = vadd.f32 %v3474, %v3444
        %v3476 = vadd.f32 %v3475, %v3445
        %v3477 = vadd.f32 %v3476, %v3446
        %v3478 = vadd.f32 %v3477, %v3447
        %v3479 = vadd.f32 %v3478, %v3448
        %v3480 = vadd.f32 %v3479, %v3449
        %v3481 = vadd.f32 %v3480, %v3450
        %v3482 = vadd.f32 %v3481, %v3451
        %v3483 = vadd.f32 %v3482, %v3452
        %v3484 = vadd.f32 %v3483, %v3453
        %v3485 = vadd.f32 %v3484, %v3454
        %v3486 = vadd.f32 %v3485, %v3455
        %v3487 = vadd.f32 %v3486, %v3456
        %v3488 = vadd.f32 %v3487, %v3457
        %v3489 = vadd.f32 %v3488, %v3458
        %v3490 = vadd.f32 %v3489, %v3459
        %v3491 = vadd.f32 %v3490, %v3460
        %v3492 = vadd.f32 %v3491, %v3461
        %v3493 = vrot.slane %v3492, 4
        %v3494 = vadd.f32 %v3492, %v3493
        %v3495 = vrot.slane %v3494, 2
        %v3496 = vadd.f32 %v3494, %v3495
        %v3497 = vrot.slane %v3496, 1
        %v3498 = vadd.f32 %v3496, %v3497
        %vm3499 = vcmask 1040384
        %v3500 = vsel %vm3499, %v3429, %v3498
        %3501 = vst [vmem:[%s214] sm:$0x3] %v3500
        %s3502 = sand.u32 %s80, 1
        %s3503 = scalar_lea.sflag [#allocation4], %s3502
        %s3504 = sand.u32 %s80, 1
        %s3505 = smul.addr %s3504, 256
        %s3506 = scalar_lea.vmem [#allocation7], %s3505
        %s3507 = sand.u32 %s106, 1
        %s3508 = scalar_lea.sflag [#allocation9], %s3507
        %s3509 = sand.u32 %s106, 1
        %s3510 = smul.addr %s3509, 2
        %s3511 = scalar_lea.vmem [#allocation8], %s3510
        // Predicated region
        $region37: #{tpu_custom_call.1} parent=27 // pred_check
          %p3512 = pneg %p90
        $region38: #{tpu_custom_call.1} parent=27 // pred_check_branch
          %3514 = sbr.rel (%p3512) target = $region40
        $region39: #{tpu_custom_call.1} parent=27 // pred_region
          %s3516 = ssub.s32 4096, 4096
          %3517 = vsyncadd %s3503, %s3516
          %s3518 = smul.addr %s25, 32
          %s3519 = smul.addr %s3518, 128
          %s3520 = scalar_lea.hbm %s2, %s3519
          %s3521 = sshll.u32 %s3506, 4
          %s3522 = int_to_ptr.vmem [resolvable:$true] %s3521
          %3527 = dma.vmem_to_hbm [thread:$0]  %s3522, 4096, %s3520, %s3503, 128, 128, 8
        $region40: #{tpu_custom_call.1} parent=27 // pred_fallthru
          _
        // Predicated region
        $region41: #{tpu_custom_call.1} parent=27 // pred_check
          %p3528 = pneg %p116
        $region42: #{tpu_custom_call.1} parent=27 // pred_check_branch
          %3530 = sbr.rel (%p3528) target = $region44
        $region43: #{tpu_custom_call.1} parent=27 // pred_region
          %s3532 = ssub.s32 32, 32
          %3533 = vsyncadd %s3508, %s3532
          %s3534 = smul.addr %s25, 32
          %s3535 = scalar_lea.hbm %s3, %s3534
          %s3537 = sshll.u32 %s3511, 4
          %s3538 = int_to_ptr.vmem [resolvable:$true] %s3537
          %3540 = dma.vmem_to_hbm [thread:$0]  %s3538, 32, %s3535, %s3508
        $region44: #{tpu_custom_call.1} parent=27 // pred_fallthru
          _
      $region28: #{tpu_custom_call.1} parent=5 // pred_fallthru
        _
      %p3541 = scmp.le.s32.totalorder 2, %s20
      // Predicated region
      $region45: #{tpu_custom_call.1} parent=5 // pred_check
        %p3542 = pneg %p3541
      $region46: #{tpu_custom_call.1} parent=5 // pred_check_branch
        %3544 = sbr.rel (%p3542) target = $region48
      $region47: #{tpu_custom_call.1} parent=5 // pred_region
        %s3545 = ssub.s32 %s20, 2
        // Predicated region
        $region49: #{tpu_custom_call.1} parent=47 // pred_check
          %p3546 = pneg %p96
        $region50: #{tpu_custom_call.1} parent=47 // pred_check_branch
          %3548 = sbr.rel (%p3546) target = $region52
        $region51: #{tpu_custom_call.1} parent=47 // pred_region
          %s3549 = sand.u32 %s81, 1
          %s3550 = scalar_lea.sflag [#allocation4], %s3549
          %s3551 = sand.u32 %s81, 1
          %s3552 = smul.addr %s3551, 256
          %s3553 = scalar_lea.vmem [#allocation7], %s3552
          %3554 = dma.done %s3550, 4096
        $region52: #{tpu_custom_call.1} parent=47 // pred_fallthru
          _
        // Predicated region
        $region53: #{tpu_custom_call.1} parent=47 // pred_check
          %p3555 = pneg %p122
        $region54: #{tpu_custom_call.1} parent=47 // pred_check_branch
          %3557 = sbr.rel (%p3555) target = $region56
        $region55: #{tpu_custom_call.1} parent=47 // pred_region
          %s3558 = sand.u32 %s107, 1
          %s3559 = scalar_lea.sflag [#allocation9], %s3558
          %s3560 = sand.u32 %s107, 1
          %s3561 = smul.addr %s3560, 2
          %s3562 = scalar_lea.vmem [#allocation8], %s3561
          %3563 = dma.done %s3559, 32
        $region56: #{tpu_custom_call.1} parent=47 // pred_fallthru
          _
      $region48: #{tpu_custom_call.1} parent=5 // pred_fallthru
        _
    $region6: #{tpu_custom_call.1} parent=1 // loop_footer
      %s24 = sadd.s32 1, %s20
    $region7: #{tpu_custom_call.1} parent=1 // loop_footer_branch
      %19 = sbr.rel target = $region3
    $region8: #{tpu_custom_call.1} parent=1 // loop_exit
      _
    %3564 = vsyncpa [#allocation3], 1
    %s3565 = scalar_lea.sflag [#allocation3], 1
    %3566 = vsyncpa %s3565, 1
    %3567 = vsyncpa [#allocation6], 1
    %3568 = vsyncpa [#allocation4], 1
    %s3569 = scalar_lea.sflag [#allocation4], 1
    %3570 = vsyncpa %s3569, 1
    %3571 = vsyncpa [#allocation9], 1
    %s3572 = scalar_lea.sflag [#allocation9], 1
    %3573 = vsyncpa %s3572, 1

</llo_original>
